<compile_context>
chip_gen: v6e
topology: v6e:2x2x1
jax: 0.10.0
libtpu: 0.0.40
codegen_flags: <defaults>
</compile_context>

<pallas_src>
import jax
import jax.numpy as jnp
from jax import lax
from jax.experimental import pallas as pl
from jax.experimental.pallas import tpu as pltpu

# bf16 storage & MXU path (fp32 accumulation via preferred_element_type and
# fp32 h/c carries are kept inside the kernels).
COMPUTE_DTYPE = jnp.bfloat16

TIME_CHUNK = 16          # timesteps per sequential recurrence grid step


def _round_up(x, m):
    return (x + m - 1) // m * m


def _pick_vocab_tile(vp, candidates=(512, 256, 128)):
    for c in candidates:
        if vp % c == 0:
            return c
    return vp


def _vmem_limit_bytes():
    """Scoped-VMEM budget derived per chip generation (64 MiB phys on v7x,
    128 MiB on v5e/v6e). Falls back to a value that is safe everywhere."""
    try:
        info = pltpu.get_tpu_info()
        cap = int(getattr(info, "vmem_capacity_bytes", 0))
        if cap > 0:
            return min(int(cap * 0.7), 96 * 1024 * 1024)
    except Exception:
        pass
    return 40 * 1024 * 1024


def _num_tensorcores():
    """v7x has 2 TensorCores/chip; v5e/v6e have 1 (batch split is overhead)."""
    try:
        kind = (jax.devices()[0].device_kind or "").lower()
        if "v7" in kind:
            return 2
    except Exception:
        pass
    return 1


# ----------------------------------------------------------------------------
# Kernel 1: fused input projection + serial LSTM recurrence
# ----------------------------------------------------------------------------
def lstm_recurrence_kernel(emb_ref, wih_ref, whh_ref, bias_ref, hseq_ref,
                           h_ref, c_ref, gx_ref):
    """emb_ref : (TC, BC, Ep)   bf16  embedded token chunk (streamed)
       wih_ref : (Ep, 4*Hp)     bf16  resident input-projection weights
       whh_ref : (Hp, 4*Hp)     bf16  resident recurrent weights
       bias_ref: (1, 4*Hp)      f32   fused b_ih + b_hh
       hseq_ref: (TC, BC, Hp)   bf16  hidden states out
       h_ref/c_ref: (BC, Hp)    f32   VMEM carries across time chunks
       gx_ref  : (TC, BC, 4*Hp) f32   per-chunk gates scratch (VMEM only)
    """
    t_chunk = pl.program_id(1)

    @pl.when(t_chunk == 0)
    def _():
        h_ref[...] = jnp.zeros_like(h_ref)
        c_ref[...] = jnp.zeros_like(c_ref)

    tc, bc, ep = emb_ref.shape
    hp = h_ref.shape[-1]

    # Parallel part of the chunk: x @ W_ih + bias for all TC steps at once
    # (M = TC*BC -> good MXU fill); result stays in VMEM scratch, never HBM.
    gx = jnp.dot(emb_ref[...].reshape(tc * bc, ep), wih_ref[...],
                 preferred_element_type=jnp.float32)
    gx_ref[...] = (gx + bias_ref[...]).reshape(tc, bc, 4 * hp)

    # Hoist the recurrent-weight read out of the unrolled step closure.
    whh = whh_ref[...]

    def step(i, carry):
        h, c = carry
        gates = gx_ref[i] + jnp.dot(h.astype(whh.dtype), whh,
                                    preferred_element_type=jnp.float32)
        # PyTorch gate order i, f, g, o; Hp % 128 == 0 -> lane-aligned slices.
        i_g = jax.nn.sigmoid(gates[:, 0 * hp:1 * hp])
        f_g = jax.nn.sigmoid(gates[:, 1 * hp:2 * hp])
        g_g = jnp.tanh(gates[:, 2 * hp:3 * hp])
        o_g = jax.nn.sigmoid(gates[:, 3 * hp:4 * hp])
        c_new = f_g * c + i_g * g_g
        h_new = o_g * jnp.tanh(c_new)
        hseq_ref[i] = h_new.astype(hseq_ref.dtype)
        return h_new, c_new

    # Fully unroll when a step's live gates tile is small; otherwise unroll by
    # 4 so the unrolled chunk does not spill the 64-vreg file.
    gates_tile_bytes = bc * 4 * hp * 4
    unroll = True if gates_tile_bytes <= 128 * 1024 else 4
    h_fin, c_fin = lax.fori_loop(0, tc, step, (h_ref[...], c_ref[...]),
                                 unroll=unroll)
    h_ref[...] = h_fin
    c_ref[...] = c_fin


# ----------------------------------------------------------------------------
# Kernel 2: hoisted output projection (two output layouts)
# ----------------------------------------------------------------------------
def output_head_kernel(h_ref, wout_ref, bout_ref, out_ref):
    """h_ref: (THEAD, Bp, Hp) bf16, wout: (Hp, TV) bf16, bout: (1, TV) f32,
       out_ref: (THEAD, Bp, TV) f32  (time-major; transposed outside)."""
    th, bp, hp = h_ref.shape
    hm = h_ref[...].reshape(th * bp, hp)                 # big M for the MXU
    logits = jnp.dot(hm, wout_ref[...], preferred_element_type=jnp.float32)
    out_ref[...] = (logits + bout_ref[...]).reshape(th, bp, -1)


def output_head_kernel_bvt(h_ref, wout_ref, bout_ref, out_ref):
    """Same compute, but writes the (Bp, TV, THEAD) layout directly so the
       final permute(0,2,1) needs no extra HBM pass. Only used when
       THEAD % 128 == 0 (lane-dense T-last stores)."""
    th, bp, hp = h_ref.shape
    hm = h_ref[...].reshape(th * bp, hp)
    logits = jnp.dot(hm, wout_ref[...], preferred_element_type=jnp.float32)
    logits = (logits + bout_ref[...]).reshape(th, bp, -1)
    out_ref[...] = jnp.transpose(logits, (1, 2, 0))


# ----------------------------------------------------------------------------
# Forward pass
# ----------------------------------------------------------------------------
@jax.jit
def lm_lstm_forward(tokens, kp):
    """tokens: (B, T) int32. kp: kernel-ready (padded) params. -> (B, V, T) f32."""
    emb_p = kp["embedding"]      # (V, Ep)   compute dtype
    w_ih_t = kp["w_ih_t"]        # (Ep, 4Hp) compute dtype
    w_hh_t = kp["w_hh_t"]        # (Hp, 4Hp) compute dtype
    bias = kp["bias"]            # (1, 4Hp)  f32 (b_ih + b_hh, folded)
    w_out_t = kp["w_out_t"]      # (Hp, Vp)  compute dtype
    b_out = kp["b_out"]          # (1, Vp)   f32

    B, T = tokens.shape
    V, Ep = emb_p.shape
    Hp = w_hh_t.shape[0]
    Vp = w_out_t.shape[1]
    compute_dtype = w_hh_t.dtype
    itemsize = jnp.dtype(compute_dtype).itemsize
    vmem_limit = _vmem_limit_bytes()

    TC = TIME_CHUNK
    sub = 16 if jnp.dtype(compute_dtype) == jnp.dtype(jnp.bfloat16) else 8
    Bp = _round_up(B, sub)           # sublane-dense tiles (bf16 packs 16 rows)
    Tp = _round_up(T, TC)
    nt = Tp // TC

    # Batch split across the leading "parallel" grid axis only where there are
    # two TensorCores (v7x); on 1-TC chips it would just be serial overhead.
    ncores = _num_tensorcores()
    nb = 2 if (ncores >= 2 and Bp % (2 * sub) == 0) else 1
    BC = Bp // nb

    # --- glue (XLA): pad + time-major embedding gather.  Padding tokens (id 0)
    # only appear AFTER the real sequence, so the contaminated h/c carry is
    # sliced away below (right-padding assumption).
    tokens_p = jnp.pad(tokens, ((0, Bp - B), (0, Tp - T)))
    emb_t = jnp.take(emb_p, tokens_p.T, axis=0)          # (Tp, Bp, Ep) bf16

    # --- Kernel 1: fused input projection + serial recurrence over time chunks
    hseq = pl.pallas_call(
        lstm_recurrence_kernel,
        out_shape=jax.ShapeDtypeStruct((Tp, Bp, Hp), compute_dtype),
        grid_spec=pltpu.PrefetchScalarGridSpec(
            num_scalar_prefetch=0,
            grid=(nb, nt),
            in_specs=[
                pl.BlockSpec((TC, BC, Ep), lambda b, t: (t, b, 0)),
                pl.BlockSpec((Ep, 4 * Hp), lambda b, t: (0, 0)),   # W_ih resident
                pl.BlockSpec((Hp, 4 * Hp), lambda b, t: (0, 0)),   # W_hh resident
                pl.BlockSpec((1, 4 * Hp), lambda b, t: (0, 0)),    # bias resident
            ],
            out_specs=pl.BlockSpec((TC, BC, Hp), lambda b, t: (t, b, 0)),
            scratch_shapes=[
                pltpu.VMEM((BC, Hp), jnp.float32),           # h carry (fp32)
                pltpu.VMEM((BC, Hp), jnp.float32),           # c carry (fp32)
                pltpu.VMEM((TC, BC, 4 * Hp), jnp.float32),   # per-chunk gates
            ],
        ),
        compiler_params=pltpu.CompilerParams(
            # On v7x the leading axis (nb=2) megacore-shards; if plain
            # "parallel" doesn't shard, switch it to pltpu.CORE_PARALLEL.
            dimension_semantics=("parallel", "arbitrary"),
            vmem_limit_bytes=vmem_limit,
        ),
    )(emb_t, w_ih_t, w_hh_t, bias)

    # --- Kernel 2: output head, time block decoupled from TIME_CHUNK ---------
    if Tp <= 128:
        THEAD = Tp                                      # single time block
    else:
        THEAD = next(c for c in (128, 64, 32, 16, 8) if Tp % c == 0)
    nth = Tp // THEAD
    TV = _pick_vocab_tile(Vp)
    nv = Vp // TV

    # Grid order: put the larger streamed operand on the axis whose block
    # index is constant along the inner loop, so it is fetched ~once total.
    wout_bytes = Hp * Vp * itemsize
    hseq_bytes = Tp * Bp * Hp * itemsize
    vocab_outer = wout_bytes > hseq_bytes
    if vocab_outer:
        grid_head = (nv, nth)
        t_of = lambda a, b: b
        v_of = lambda a, b: a
    else:
        grid_head = (nth, nv)
        t_of = lambda a, b: a
        v_of = lambda a, b: b

    direct_bvt = (THEAD % 128 == 0)   # lane-dense T-last stores only then

    h_spec = pl.BlockSpec((THEAD, Bp, Hp), lambda a, b: (t_of(a, b), 0, 0))
    w_spec = pl.BlockSpec((Hp, TV), lambda a, b: (0, v_of(a, b)))
    bo_spec = pl.BlockSpec((1, TV), lambda a, b: (0, v_of(a, b)))

    if direct_bvt:
        head_kernel = output_head_kernel_bvt
        head_out_shape = jax.ShapeDtypeStruct((Bp, Vp, Tp), jnp.float32)
        out_spec = pl.BlockSpec((Bp, TV, THEAD),
                                lambda a, b: (0, v_of(a, b), t_of(a, b)))
    else:
        head_kernel = output_head_kernel
        head_out_shape = jax.ShapeDtypeStruct((Tp, Bp, Vp), jnp.float32)
        out_spec = pl.BlockSpec((THEAD, Bp, TV),
                                lambda a, b: (t_of(a, b), 0, v_of(a, b)))

    logits_p = pl.pallas_call(
        head_kernel,
        out_shape=head_out_shape,
        grid_spec=pltpu.PrefetchScalarGridSpec(
            num_scalar_prefetch=0,
            grid=grid_head,
            in_specs=[h_spec, w_spec, bo_spec],
            out_specs=out_spec,
        ),
        compiler_params=pltpu.CompilerParams(
            dimension_semantics=("parallel", "parallel"),
            vmem_limit_bytes=vmem_limit,
        ),
    )(hseq, w_out_t, b_out)

    if direct_bvt:
        # Head already wrote (B, V, T); just strip padding.
        return logits_p[:B, :V, :T]
    # (T, B, V) -> strip padding -> (B, V, T) == output(lstm_out).permute(0,2,1)
    logits = logits_p[:T, :B, :V]
    return jnp.transpose(logits, (1, 2, 0))


# ----------------------------------------------------------------------------
# Parameter handling
# ----------------------------------------------------------------------------
def init_raw_params(key, vocab_size, emb_size, hidden_size, pad_index=0):
    """PyTorch-layout parameters (fp32)."""
    ks = jax.random.split(key, 7)
    s = hidden_size ** -0.5
    emb = jax.random.normal(ks[0], (vocab_size, emb_size), jnp.float32) * 0.1
    emb = emb.at[pad_index].set(0.0)                     # padding_idx row = 0
    w_ih = jax.random.uniform(ks[1], (4 * hidden_size, emb_size), jnp.float32, -s, s)
    w_hh = jax.random.uniform(ks[2], (4 * hidden_size, hidden_size), jnp.float32, -s, s)
    b_ih = jax.random.uniform(ks[3], (4 * hidden_size,), jnp.float32, -s, s)
    b_hh = jax.random.uniform(ks[4], (4 * hidden_size,), jnp.float32, -s, s)
    w_out = jax.random.uniform(ks[5], (vocab_size, hidden_size), jnp.float32, -s, s)
    b_out = jax.random.uniform(ks[6], (vocab_size,), jnp.float32, -s, s)
    return dict(embedding=emb, w_ih=w_ih, w_hh=w_hh, b_ih=b_ih, b_hh=b_hh,
                w_out=w_out, b_out=b_out)


def prepare_params(raw, compute_dtype=COMPUTE_DTYPE):
    """Pad to the (8/16, 128) vreg tile (per-gate!) and transpose to kernel layout.

    Zero-padding per gate keeps padded hidden units exactly zero for all t
    (pre-activation 0 -> g=0, c stays 0, h = 0.5*tanh(0) = 0), so results on
    the real H/V/E slices are unchanged.
    """
    emb, w_ih, w_hh = raw["embedding"], raw["w_ih"], raw["w_hh"]
    bias = raw["b_ih"] + raw["b_hh"]
    w_out, b_out = raw["w_out"], raw["b_out"]

    V, E = emb.shape
    H = w_hh.shape[1]
    Ep, Hp, Vp = _round_up(E, 128), _round_up(H, 128), _round_up(V, 128)

    def pad_gate_rows(w):                       # (4H, X) -> (4Hp, X), per gate
        x = w.reshape(4, H, -1)
        x = jnp.pad(x, ((0, 0), (0, Hp - H), (0, 0)))
        return x.reshape(4 * Hp, -1)

    w_ih_p = jnp.pad(pad_gate_rows(w_ih), ((0, 0), (0, Ep - E)))    # (4Hp, Ep)
    w_hh_p = jnp.pad(pad_gate_rows(w_hh), ((0, 0), (0, Hp - H)))    # (4Hp, Hp)
    bias_p = jnp.pad(bias.reshape(4, H), ((0, 0), (0, Hp - H))).reshape(4 * Hp)
    w_out_p = jnp.pad(w_out, ((0, Vp - V), (0, Hp - H)))            # (Vp, Hp)
    b_out_p = jnp.pad(b_out, (0, Vp - V))                           # (Vp,)
    emb_p = jnp.pad(emb, ((0, 0), (0, Ep - E)))                     # (V, Ep)

    return {
        "embedding": emb_p.astype(compute_dtype),
        "w_ih_t": jnp.transpose(w_ih_p).astype(compute_dtype),      # (Ep, 4Hp)
        "w_hh_t": jnp.transpose(w_hh_p).astype(compute_dtype),      # (Hp, 4Hp)
        "bias": bias_p[None, :].astype(jnp.float32),                # (1, 4Hp)
        "w_out_t": jnp.transpose(w_out_p).astype(compute_dtype),    # (Hp, Vp)
        "b_out": b_out_p[None, :].astype(jnp.float32),              # (1, Vp)
    }


# ----------------------------------------------------------------------------
# Pure-JAX reference (fp32, unpadded) for numerical comparison
# ----------------------------------------------------------------------------
def lm_lstm_reference(tokens, raw):
    emb = jnp.take(raw["embedding"], tokens, axis=0)                # (B, T, E)
    B = emb.shape[0]
    H = raw["w_hh"].shape[1]
    w_ih_t, w_hh_t = raw["w_ih"].T, raw["w_hh"].T
    bias = raw["b_ih"] + raw["b_hh"]

    def step(carry, x_t):
        h, c = carry
        g = x_t @ w_ih_t + h @ w_hh_t + bias
        i_g = jax.nn.sigmoid(g[:, 0 * H:1 * H])
        f_g = jax.nn.sigmoid(g[:, 1 * H:2 * H])
        g_g = jnp.tanh(g[:, 2 * H:3 * H])
        o_g = jax.nn.sigmoid(g[:, 3 * H:4 * H])
        c = f_g * c + i_g * g_g
        h = o_g * jnp.tanh(c)
        return (h, c), h

    h0 = jnp.zeros((B, H), jnp.float32)
    c0 = jnp.zeros((B, H), jnp.float32)
    _, hs = lax.scan(step, (h0, c0), jnp.transpose(emb, (1, 0, 2)))  # (T, B, H)
    logits = hs @ raw["w_out"].T + raw["b_out"]                      # (T, B, V)
    return jnp.transpose(logits, (1, 2, 0))                          # (B, V, T)


if __name__ == "__main__":
    # Small shapes consistent with the module's forward pass.
    B, T = 2, 8           # batch, sequence length
    E, H, V = 32, 32, 64  # emb_size, hidden_size, output_size (vocab)
    PAD = 0

    key = jax.random.PRNGKey(0)
    pkey, tkey = jax.random.split(key)
    raw = init_raw_params(pkey, V, E, H, pad_index=PAD)
    tokens = jax.random.randint(tkey, (B, T), 0, V, dtype=jnp.int32)

    kparams = prepare_params(raw)
    out = lm_lstm_forward(tokens, kparams)
    out = jax.block_until_ready(out)
    assert out.shape == (B, V, T), out.shape

    ref = lm_lstm_reference(tokens, raw)
    tol = 1e-4 if jnp.dtype(COMPUTE_DTYPE) == jnp.dtype(jnp.float32) else 5e-2
    err = float(jnp.max(jnp.abs(out - ref)))
    assert jnp.allclose(out, ref, atol=tol, rtol=tol), err

    print("KERNEL_OK")
</pallas_src>

<mosaic_0001>
module attributes {stable_mosaic.version = 11 : i64} {
  func.func @output_head_kernel(%arg0: i32, %arg1: i32, %arg2: memref<16x16x128xbf16, #tpu.memory_space<vmem>>, %arg3: memref<128x128xbf16, #tpu.memory_space<vmem>>, %arg4: memref<1x128xf32, #tpu.memory_space<vmem>>, %arg5: memref<16x16x128xf32, #tpu.memory_space<vmem>>) attributes {dimension_semantics = [#tpu.dimension_semantics<parallel>, #tpu.dimension_semantics<parallel>], iteration_bounds = array<i64: 1, 1>, scalar_prefetch = 0 : i64, scratch_operands = 0 : i64, tpu.core_type = #tpu.core_type<tc>, window_params = [{transform_indices = @transform_0, window_bounds = array<i64: 16, 16, 128>}, {transform_indices = @transform_1, window_bounds = array<i64: 128, 128>}, {transform_indices = @transform_2, window_bounds = array<i64: 1, 128>}, {transform_indices = @transform_3, window_bounds = array<i64: 16, 16, 128>}]} {
    %c0 = arith.constant 0 : index
    %c0_0 = arith.constant 0 : index
    %c0_1 = arith.constant 0 : index
    %0 = vector.load %arg2[%c0, %c0_0, %c0_1] : memref<16x16x128xbf16, #tpu.memory_space<vmem>>, vector<16x16x128xbf16>
    %1 = vector.shape_cast %0 : vector<16x16x128xbf16> to vector<256x128xbf16>
    %c0_2 = arith.constant 0 : index
    %c0_3 = arith.constant 0 : index
    %2 = vector.load %arg3[%c0_2, %c0_3] : memref<128x128xbf16, #tpu.memory_space<vmem>>, vector<128x128xbf16>
    %cst = arith.constant dense<0.000000e+00> : vector<256x128xf32>
    %3 = tpu.matmul %1, %2, %cst {dimension_numbers = #tpu.dot_dimension_numbers<[1], [0], [0], [1], [0, 0, 1, 1], [], []>} : vector<256x128xbf16>, vector<128x128xbf16>, vector<256x128xf32> -> vector<256x128xf32>
    %c0_4 = arith.constant 0 : index
    %c0_5 = arith.constant 0 : index
    %4 = vector.load %arg4[%c0_4, %c0_5] : memref<1x128xf32, #tpu.memory_space<vmem>>, vector<1x128xf32>
    %5 = vector.broadcast %4 : vector<1x128xf32> to vector<256x128xf32>
    %6 = arith.addf %3, %5 : vector<256x128xf32>
    %7 = vector.shape_cast %6 : vector<256x128xf32> to vector<16x16x128xf32>
    %c0_6 = arith.constant 0 : index
    %c0_7 = arith.constant 0 : index
    %c0_8 = arith.constant 0 : index
    %8 = vector.load %arg5[%c0_6, %c0_7, %c0_8] : memref<16x16x128xf32, #tpu.memory_space<vmem>>, vector<16x16x128xf32>
    tpu.vector_store %arg5[%c0_6, %c0_7, %c0_8], %7 {strides = array<i32>} : memref<16x16x128xf32, #tpu.memory_space<vmem>>, vector<16x16x128xf32>,
    return
  }
  func.func @transform_0(%arg0: i32, %arg1: i32) -> (i32, i32, i32) {
    %c0_i32 = arith.constant 0 : i32
    %c0_i32_0 = arith.constant 0 : i32
    %c0_i32_1 = arith.constant 0 : i32
    return %arg0, %c0_i32, %c0_i32_0 : i32, i32, i32
  }
  func.func @transform_1(%arg0: i32, %arg1: i32) -> (i32, i32) {
    %c0_i32 = arith.constant 0 : i32
    %c0_i32_0 = arith.constant 0 : i32
    return %c0_i32, %arg1 : i32, i32
  }
  func.func @transform_2(%arg0: i32, %arg1: i32) -> (i32, i32) {
    %c0_i32 = arith.constant 0 : i32
    %c0_i32_0 = arith.constant 0 : i32
    return %c0_i32, %arg1 : i32, i32
  }
  func.func @transform_3(%arg0: i32, %arg1: i32) -> (i32, i32, i32) {
    %c0_i32 = arith.constant 0 : i32
    %c0_i32_0 = arith.constant 0 : i32
    return %arg0, %c0_i32, %arg1 : i32, i32, i32
  }
}

module attributes {stable_mosaic.version = 11 : i64} {
  func.func @lstm_recurrence_kernel(%arg0: i32, %arg1: i32, %arg2: memref<16x16x128xbf16, #tpu.memory_space<vmem>>, %arg3: memref<128x512xbf16, #tpu.memory_space<vmem>>, %arg4: memref<128x512xbf16, #tpu.memory_space<vmem>>, %arg5: memref<1x512xf32, #tpu.memory_space<vmem>>, %arg6: memref<16x16x128xbf16, #tpu.memory_space<vmem>>, %arg7: memref<16x128xf32, #tpu.memory_space<vmem>>, %arg8: memref<16x128xf32, #tpu.memory_space<vmem>>, %arg9: memref<16x16x512xf32, #tpu.memory_space<vmem>>) attributes {dimension_semantics = [#tpu.dimension_semantics<parallel>, #tpu.dimension_semantics<arbitrary>], iteration_bounds = array<i64: 1, 1>, scalar_prefetch = 0 : i64, scratch_operands = 3 : i64, tpu.core_type = #tpu.core_type<tc>, window_params = [{transform_indices = @transform_0, window_bounds = array<i64: 16, 16, 128>}, {pipeline_mode = #tpu.pipeline_mode<synchronous>, transform_indices = @transform_1, window_bounds = array<i64: 128, 512>}, {pipeline_mode = #tpu.pipeline_mode<synchronous>, transform_indices = @transform_2, window_bounds = array<i64: 128, 512>}, {pipeline_mode = #tpu.pipeline_mode<synchronous>, transform_indices = @transform_3, window_bounds = array<i64: 1, 512>}, {transform_indices = @transform_4, window_bounds = array<i64: 16, 16, 128>}]} {
    %c0_i32 = arith.constant 0 : i32
    %0 = arith.cmpi eq, %arg1, %c0_i32 : i32
    %1 = arith.extui %0 : i1 to i32
    %c0_i32_0 = arith.constant 0 : i32
    %2 = arith.cmpi ne, %1, %c0_i32_0 : i32
    scf.if %2 {
      %cst_149 = arith.constant 0.000000e+00 : f32
      %593 = vector.broadcast %cst_149 : f32 to vector<16x128xf32>
      %c0_150 = arith.constant 0 : index
      %c0_151 = arith.constant 0 : index
      %594 = vector.load %arg7[%c0_150, %c0_151] : memref<16x128xf32, #tpu.memory_space<vmem>>, vector<16x128xf32>
      tpu.vector_store %arg7[%c0_150, %c0_151], %593 {strides = array<i32>} : memref<16x128xf32, #tpu.memory_space<vmem>>, vector<16x128xf32>,
      %cst_152 = arith.constant 0.000000e+00 : f32
      %595 = vector.broadcast %cst_152 : f32 to vector<16x128xf32>
      %c0_153 = arith.constant 0 : index
      %c0_154 = arith.constant 0 : index
      %596 = vector.load %arg8[%c0_153, %c0_154] : memref<16x128xf32, #tpu.memory_space<vmem>>, vector<16x128xf32>
      tpu.vector_store %arg8[%c0_153, %c0_154], %595 {strides = array<i32>} : memref<16x128xf32, #tpu.memory_space<vmem>>, vector<16x128xf32>,
    } else {
    }
    %c0 = arith.constant 0 : index
    %c0_1 = arith.constant 0 : index
    %c0_2 = arith.constant 0 : index
    %3 = vector.load %arg2[%c0, %c0_1, %c0_2] : memref<16x16x128xbf16, #tpu.memory_space<vmem>>, vector<16x16x128xbf16>
    %4 = vector.shape_cast %3 : vector<16x16x128xbf16> to vector<256x128xbf16>
    %c0_3 = arith.constant 0 : index
    %c0_4 = arith.constant 0 : index
    %5 = vector.load %arg3[%c0_3, %c0_4] : memref<128x512xbf16, #tpu.memory_space<vmem>>, vector<128x512xbf16>
    %cst = arith.constant dense<0.000000e+00> : vector<256x512xf32>
    %6 = tpu.matmul %4, %5, %cst {dimension_numbers = #tpu.dot_dimension_numbers<[1], [0], [0], [1], [0, 0, 1, 1], [], []>} : vector<256x128xbf16>, vector<128x512xbf16>, vector<256x512xf32> -> vector<256x512xf32>
    %c0_5 = arith.constant 0 : index
    %c0_6 = arith.constant 0 : index
    %7 = vector.load %arg5[%c0_5, %c0_6] : memref<1x512xf32, #tpu.memory_space<vmem>>, vector<1x512xf32>
    %8 = vector.broadcast %7 : vector<1x512xf32> to vector<256x512xf32>
    %9 = arith.addf %6, %8 : vector<256x512xf32>
    %10 = vector.shape_cast %9 : vector<256x512xf32> to vector<16x16x512xf32>
    %c0_7 = arith.constant 0 : index
    %c0_8 = arith.constant 0 : index
    %c0_9 = arith.constant 0 : index
    %11 = vector.load %arg9[%c0_7, %c0_8, %c0_9] : memref<16x16x512xf32, #tpu.memory_space<vmem>>, vector<16x16x512xf32>
    tpu.vector_store %arg9[%c0_7, %c0_8, %c0_9], %10 {strides = array<i32>} : memref<16x16x512xf32, #tpu.memory_space<vmem>>, vector<16x16x512xf32>,
    %c0_10 = arith.constant 0 : index
    %c0_11 = arith.constant 0 : index
    %12 = vector.load %arg4[%c0_10, %c0_11] : memref<128x512xbf16, #tpu.memory_space<vmem>>, vector<128x512xbf16>
    %c0_12 = arith.constant 0 : index
    %c0_13 = arith.constant 0 : index
    %13 = vector.load %arg7[%c0_12, %c0_13] : memref<16x128xf32, #tpu.memory_space<vmem>>, vector<16x128xf32>
    %c0_14 = arith.constant 0 : index
    %c0_15 = arith.constant 0 : index
    %14 = vector.load %arg8[%c0_14, %c0_15] : memref<16x128xf32, #tpu.memory_space<vmem>>, vector<16x128xf32>
    %c0_i32_16 = arith.constant 0 : i32
    %15 = arith.index_cast %c0_i32_16 : i32 to index
    %c0_17 = arith.constant 0 : index
    %c0_18 = arith.constant 0 : index
    %16 = vector.load %arg9[%15, %c0_17, %c0_18] : memref<16x16x512xf32, #tpu.memory_space<vmem>>, vector<1x16x512xf32>
    %17 = vector.shape_cast %16 : vector<1x16x512xf32> to vector<16x512xf32>
    %18 = arith.truncf %13 : vector<16x128xf32> to vector<16x128xbf16>
    %cst_19 = arith.constant dense<0.000000e+00> : vector<16x512xf32>
    %19 = tpu.matmul %18, %12, %cst_19 {dimension_numbers = #tpu.dot_dimension_numbers<[1], [0], [0], [1], [0, 0, 1, 1], [], []>} : vector<16x128xbf16>, vector<128x512xbf16>, vector<16x512xf32> -> vector<16x512xf32>
    %20 = arith.addf %17, %19 : vector<16x512xf32>
    %21 = vector.extract_strided_slice %20 {offsets = [0, 0], sizes = [16, 128], strides = [1, 1]} : vector<16x512xf32> to vector<16x128xf32>
    %22 = arith.negf %21 : vector<16x128xf32>
    %23 = math.exp %22 : vector<16x128xf32>
    %cst_20 = arith.constant 1.000000e+00 : f32
    %24 = vector.broadcast %cst_20 : f32 to vector<16x128xf32>
    %25 = arith.addf %24, %23 : vector<16x128xf32>
    %26 = arith.divf %24, %25 : vector<16x128xf32>
    %27 = vector.extract_strided_slice %20 {offsets = [0, 128], sizes = [16, 128], strides = [1, 1]} : vector<16x512xf32> to vector<16x128xf32>
    %28 = arith.negf %27 : vector<16x128xf32>
    %29 = math.exp %28 : vector<16x128xf32>
    %cst_21 = arith.constant 1.000000e+00 : f32
    %30 = vector.broadcast %cst_21 : f32 to vector<16x128xf32>
    %31 = arith.addf %30, %29 : vector<16x128xf32>
    %32 = arith.divf %30, %31 : vector<16x128xf32>
    %33 = vector.extract_strided_slice %20 {offsets = [0, 256], sizes = [16, 128], strides = [1, 1]} : vector<16x512xf32> to vector<16x128xf32>
    %34 = math.tanh %33 : vector<16x128xf32>
    %35 = vector.extract_strided_slice %20 {offsets = [0, 384], sizes = [16, 128], strides = [1, 1]} : vector<16x512xf32> to vector<16x128xf32>
    %36 = arith.negf %35 : vector<16x128xf32>
    %37 = math.exp %36 : vector<16x128xf32>
    %cst_22 = arith.constant 1.000000e+00 : f32
    %38 = vector.broadcast %cst_22 : f32 to vector<16x128xf32>
    %39 = arith.addf %38, %37 : vector<16x128xf32>
    %40 = arith.divf %38, %39 : vector<16x128xf32>
    %41 = arith.mulf %32, %14 : vector<16x128xf32>
    %42 = arith.mulf %26, %34 : vector<16x128xf32>
    %43 = arith.addf %41, %42 : vector<16x128xf32>
    %44 = math.tanh %43 : vector<16x128xf32>
    %45 = arith.mulf %40, %44 : vector<16x128xf32>
    %46 = arith.truncf %45 : vector<16x128xf32> to vector<16x128xbf16>
    %47 = arith.index_cast %c0_i32_16 : i32 to index
    %c0_23 = arith.constant 0 : index
    %c0_24 = arith.constant 0 : index
    %48 = vector.load %arg6[%47, %c0_23, %c0_24] : memref<16x16x128xbf16, #tpu.memory_space<vmem>>, vector<1x16x128xbf16>
    %49 = vector.shape_cast %48 : vector<1x16x128xbf16> to vector<16x128xbf16>
    %50 = vector.shape_cast %46 : vector<16x128xbf16> to vector<1x16x128xbf16>
    tpu.vector_store %arg6[%47, %c0_23, %c0_24], %50 {strides = array<i32>} : memref<16x16x128xbf16, #tpu.memory_space<vmem>>, vector<1x16x128xbf16>,
    %c1_i32 = arith.constant 1 : i32
    %51 = arith.index_cast %c1_i32 : i32 to index
    %c0_25 = arith.constant 0 : index
    %c0_26 = arith.constant 0 : index
    %52 = vector.load %arg9[%51, %c0_25, %c0_26] : memref<16x16x512xf32, #tpu.memory_space<vmem>>, vector<1x16x512xf32>
    %53 = vector.shape_cast %52 : vector<1x16x512xf32> to vector<16x512xf32>
    %54 = arith.truncf %45 : vector<16x128xf32> to vector<16x128xbf16>
    %cst_27 = arith.constant dense<0.000000e+00> : vector<16x512xf32>
    %55 = tpu.matmul %54, %12, %cst_27 {dimension_numbers = #tpu.dot_dimension_numbers<[1], [0], [0], [1], [0, 0, 1, 1], [], []>} : vector<16x128xbf16>, vector<128x512xbf16>, vector<16x512xf32> -> vector<16x512xf32>
    %56 = arith.addf %53, %55 : vector<16x512xf32>
    %57 = vector.extract_strided_slice %56 {offsets = [0, 0], sizes = [16, 128], strides = [1, 1]} : vector<16x512xf32> to vector<16x128xf32>
    %58 = arith.negf %57 : vector<16x128xf32>
    %59 = math.exp %58 : vector<16x128xf32>
    %cst_28 = arith.constant 1.000000e+00 : f32
    %60 = vector.broadcast %cst_28 : f32 to vector<16x128xf32>
    %61 = arith.addf %60, %59 : vector<16x128xf32>
    %62 = arith.divf %60, %61 : vector<16x128xf32>
    %63 = vector.extract_strided_slice %56 {offsets = [0, 128], sizes = [16, 128], strides = [1, 1]} : vector<16x512xf32> to vector<16x128xf32>
    %64 = arith.negf %63 : vector<16x128xf32>
    %65 = math.exp %64 : vector<16x128xf32>
    %cst_29 = arith.constant 1.000000e+00 : f32
    %66 = vector.broadcast %cst_29 : f32 to vector<16x128xf32>
    %67 = arith.addf %66, %65 : vector<16x128xf32>
    %68 = arith.divf %66, %67 : vector<16x128xf32>
    %69 = vector.extract_strided_slice %56 {offsets = [0, 256], sizes = [16, 128], strides = [1, 1]} : vector<16x512xf32> to vector<16x128xf32>
    %70 = math.tanh %69 : vector<16x128xf32>
    %71 = vector.extract_strided_slice %56 {offsets = [0, 384], sizes = [16, 128], strides = [1, 1]} : vector<16x512xf32> to vector<16x128xf32>
    %72 = arith.negf %71 : vector<16x128xf32>
    %73 = math.exp %72 : vector<16x128xf32>
    %cst_30 = arith.constant 1.000000e+00 : f32
    %74 = vector.broadcast %cst_30 : f32 to vector<16x128xf32>
    %75 = arith.addf %74, %73 : vector<16x128xf32>
    %76 = arith.divf %74, %75 : vector<16x128xf32>
    %77 = arith.mulf %68, %43 : vector<16x128xf32>
    %78 = arith.mulf %62, %70 : vector<16x128xf32>
    %79 = arith.addf %77, %78 : vector<16x128xf32>
    %80 = math.tanh %79 : vector<16x128xf32>
    %81 = arith.mulf %76, %80 : vector<16x128xf32>
    %82 = arith.truncf %81 : vector<16x128xf32> to vector<16x128xbf16>
    %83 = arith.index_cast %c1_i32 : i32 to index
    %c0_31 = arith.constant 0 : index
    %c0_32 = arith.constant 0 : index
    %84 = vector.load %arg6[%83, %c0_31, %c0_32] : memref<16x16x128xbf16, #tpu.memory_space<vmem>>, vector<1x16x128xbf16>
    %85 = vector.shape_cast %84 : vector<1x16x128xbf16> to vector<16x128xbf16>
    %86 = vector.shape_cast %82 : vector<16x128xbf16> to vector<1x16x128xbf16>
    tpu.vector_store %arg6[%83, %c0_31, %c0_32], %86 {strides = array<i32>} : memref<16x16x128xbf16, #tpu.memory_space<vmem>>, vector<1x16x128xbf16>,
    %c2_i32 = arith.constant 2 : i32
    %87 = arith.index_cast %c2_i32 : i32 to index
    %c0_33 = arith.constant 0 : index
    %c0_34 = arith.constant 0 : index
    %88 = vector.load %arg9[%87, %c0_33, %c0_34] : memref<16x16x512xf32, #tpu.memory_space<vmem>>, vector<1x16x512xf32>
    %89 = vector.shape_cast %88 : vector<1x16x512xf32> to vector<16x512xf32>
    %90 = arith.truncf %81 : vector<16x128xf32> to vector<16x128xbf16>
    %cst_35 = arith.constant dense<0.000000e+00> : vector<16x512xf32>
    %91 = tpu.matmul %90, %12, %cst_35 {dimension_numbers = #tpu.dot_dimension_numbers<[1], [0], [0], [1], [0, 0, 1, 1], [], []>} : vector<16x128xbf16>, vector<128x512xbf16>, vector<16x512xf32> -> vector<16x512xf32>
    %92 = arith.addf %89, %91 : vector<16x512xf32>
    %93 = vector.extract_strided_slice %92 {offsets = [0, 0], sizes = [16, 128], strides = [1, 1]} : vector<16x512xf32> to vector<16x128xf32>
    %94 = arith.negf %93 : vector<16x128xf32>
    %95 = math.exp %94 : vector<16x128xf32>
    %cst_36 = arith.constant 1.000000e+00 : f32
    %96 = vector.broadcast %cst_36 : f32 to vector<16x128xf32>
    %97 = arith.addf %96, %95 : vector<16x128xf32>
    %98 = arith.divf %96, %97 : vector<16x128xf32>
    %99 = vector.extract_strided_slice %92 {offsets = [0, 128], sizes = [16, 128], strides = [1, 1]} : vector<16x512xf32> to vector<16x128xf32>
    %100 = arith.negf %99 : vector<16x128xf32>
    %101 = math.exp %100 : vector<16x128xf32>
    %cst_37 = arith.constant 1.000000e+00 : f32
    %102 = vector.broadcast %cst_37 : f32 to vector<16x128xf32>
    %103 = arith.addf %102, %101 : vector<16x128xf32>
    %104 = arith.divf %102, %103 : vector<16x128xf32>
    %105 = vector.extract_strided_slice %92 {offsets = [0, 256], sizes = [16, 128], strides = [1, 1]} : vector<16x512xf32> to vector<16x128xf32>
    %106 = math.tanh %105 : vector<16x128xf32>
    %107 = vector.extract_strided_slice %92 {offsets = [0, 384], sizes = [16, 128], strides = [1, 1]} : vector<16x512xf32> to vector<16x128xf32>
    %108 = arith.negf %107 : vector<16x128xf32>
    %109 = math.exp %108 : vector<16x128xf32>
    %cst_38 = arith.constant 1.000000e+00 : f32
    %110 = vector.broadcast %cst_38 : f32 to vector<16x128xf32>
    %111 = arith.addf %110, %109 : vector<16x128xf32>
    %112 = arith.divf %110, %111 : vector<16x128xf32>
    %113 = arith.mulf %104, %79 : vector<16x128xf32>
    %114 = arith.mulf %98, %106 : vector<16x128xf32>
    %115 = arith.addf %113, %114 : vector<16x128xf32>
    %116 = math.tanh %115 : vector<16x128xf32>
    %117 = arith.mulf %112, %116 : vector<16x128xf32>
    %118 = arith.truncf %117 : vector<16x128xf32> to vector<16x128xbf16>
    %119 = arith.index_cast %c2_i32 : i32 to index
    %c0_39 = arith.constant 0 : index
    %c0_40 = arith.constant 0 : index
    %120 = vector.load %arg6[%119, %c0_39, %c0_40] : memref<16x16x128xbf16, #tpu.memory_space<vmem>>, vector<1x16x128xbf16>
    %121 = vector.shape_cast %120 : vector<1x16x128xbf16> to vector<16x128xbf16>
    %122 = vector.shape_cast %118 : vector<16x128xbf16> to vector<1x16x128xbf16>
    tpu.vector_store %arg6[%119, %c0_39, %c0_40], %122 {strides = array<i32>} : memref<16x16x128xbf16, #tpu.memory_space<vmem>>, vector<1x16x128xbf16>,
    %c3_i32 = arith.constant 3 : i32
    %123 = arith.index_cast %c3_i32 : i32 to index
    %c0_41 = arith.constant 0 : index
    %c0_42 = arith.constant 0 : index
    %124 = vector.load %arg9[%123, %c0_41, %c0_42] : memref<16x16x512xf32, #tpu.memory_space<vmem>>, vector<1x16x512xf32>
    %125 = vector.shape_cast %124 : vector<1x16x512xf32> to vector<16x512xf32>
    %126 = arith.truncf %117 : vector<16x128xf32> to vector<16x128xbf16>
    %cst_43 = arith.constant dense<0.000000e+00> : vector<16x512xf32>
    %127 = tpu.matmul %126, %12, %cst_43 {dimension_numbers = #tpu.dot_dimension_numbers<[1], [0], [0], [1], [0, 0, 1, 1], [], []>} : vector<16x128xbf16>, vector<128x512xbf16>, vector<16x512xf32> -> vector<16x512xf32>
    %128 = arith.addf %125, %127 : vector<16x512xf32>
    %129 = vector.extract_strided_slice %128 {offsets = [0, 0], sizes = [16, 128], strides = [1, 1]} : vector<16x512xf32> to vector<16x128xf32>
    %130 = arith.negf %129 : vector<16x128xf32>
    %131 = math.exp %130 : vector<16x128xf32>
    %cst_44 = arith.constant 1.000000e+00 : f32
    %132 = vector.broadcast %cst_44 : f32 to vector<16x128xf32>
    %133 = arith.addf %132, %131 : vector<16x128xf32>
    %134 = arith.divf %132, %133 : vector<16x128xf32>
    %135 = vector.extract_strided_slice %128 {offsets = [0, 128], sizes = [16, 128], strides = [1, 1]} : vector<16x512xf32> to vector<16x128xf32>
    %136 = arith.negf %135 : vector<16x128xf32>
    %137 = math.exp %136 : vector<16x128xf32>
    %cst_45 = arith.constant 1.000000e+00 : f32
    %138 = vector.broadcast %cst_45 : f32 to vector<16x128xf32>
    %139 = arith.addf %138, %137 : vector<16x128xf32>
    %140 = arith.divf %138, %139 : vector<16x128xf32>
    %141 = vector.extract_strided_slice %128 {offsets = [0, 256], sizes = [16, 128], strides = [1, 1]} : vector<16x512xf32> to vector<16x128xf32>
    %142 = math.tanh %141 : vector<16x128xf32>
    %143 = vector.extract_strided_slice %128 {offsets = [0, 384], sizes = [16, 128], strides = [1, 1]} : vector<16x512xf32> to vector<16x128xf32>
    %144 = arith.negf %143 : vector<16x128xf32>
    %145 = math.exp %144 : vector<16x128xf32>
    %cst_46 = arith.constant 1.000000e+00 : f32
    %146 = vector.broadcast %cst_46 : f32 to vector<16x128xf32>
    %147 = arith.addf %146, %145 : vector<16x128xf32>
    %148 = arith.divf %146, %147 : vector<16x128xf32>
    %149 = arith.mulf %140, %115 : vector<16x128xf32>
    %150 = arith.mulf %134, %142 : vector<16x128xf32>
    %151 = arith.addf %149, %150 : vector<16x128xf32>
    %152 = math.tanh %151 : vector<16x128xf32>
    %153 = arith.mulf %148, %152 : vector<16x128xf32>
    %154 = arith.truncf %153 : vector<16x128xf32> to vector<16x128xbf16>
    %155 = arith.index_cast %c3_i32 : i32 to index
    %c0_47 = arith.constant 0 : index
    %c0_48 = arith.constant 0 : index
    %156 = vector.load %arg6[%155, %c0_47, %c0_48] : memref<16x16x128xbf16, #tpu.memory_space<vmem>>, vector<1x16x128xbf16>
    %157 = vector.shape_cast %156 : vector<1x16x128xbf16> to vector<16x128xbf16>
    %158 = vector.shape_cast %154 : vector<16x128xbf16> to vector<1x16x128xbf16>
    tpu.vector_store %arg6[%155, %c0_47, %c0_48], %158 {strides = array<i32>} : memref<16x16x128xbf16, #tpu.memory_space<vmem>>, vector<1x16x128xbf16>,
    %c4_i32 = arith.constant 4 : i32
    %159 = arith.index_cast %c4_i32 : i32 to index
    %c0_49 = arith.constant 0 : index
    %c0_50 = arith.constant 0 : index
    %160 = vector.load %arg9[%159, %c0_49, %c0_50] : memref<16x16x512xf32, #tpu.memory_space<vmem>>, vector<1x16x512xf32>
    %161 = vector.shape_cast %160 : vector<1x16x512xf32> to vector<16x512xf32>
    %162 = arith.truncf %153 : vector<16x128xf32> to vector<16x128xbf16>
    %cst_51 = arith.constant dense<0.000000e+00> : vector<16x512xf32>
    %163 = tpu.matmul %162, %12, %cst_51 {dimension_numbers = #tpu.dot_dimension_numbers<[1], [0], [0], [1], [0, 0, 1, 1], [], []>} : vector<16x128xbf16>, vector<128x512xbf16>, vector<16x512xf32> -> vector<16x512xf32>
    %164 = arith.addf %161, %163 : vector<16x512xf32>
    %165 = vector.extract_strided_slice %164 {offsets = [0, 0], sizes = [16, 128], strides = [1, 1]} : vector<16x512xf32> to vector<16x128xf32>
    %166 = arith.negf %165 : vector<16x128xf32>
    %167 = math.exp %166 : vector<16x128xf32>
    %cst_52 = arith.constant 1.000000e+00 : f32
    %168 = vector.broadcast %cst_52 : f32 to vector<16x128xf32>
    %169 = arith.addf %168, %167 : vector<16x128xf32>
    %170 = arith.divf %168, %169 : vector<16x128xf32>
    %171 = vector.extract_strided_slice %164 {offsets = [0, 128], sizes = [16, 128], strides = [1, 1]} : vector<16x512xf32> to vector<16x128xf32>
    %172 = arith.negf %171 : vector<16x128xf32>
    %173 = math.exp %172 : vector<16x128xf32>
    %cst_53 = arith.constant 1.000000e+00 : f32
    %174 = vector.broadcast %cst_53 : f32 to vector<16x128xf32>
    %175 = arith.addf %174, %173 : vector<16x128xf32>
    %176 = arith.divf %174, %175 : vector<16x128xf32>
    %177 = vector.extract_strided_slice %164 {offsets = [0, 256], sizes = [16, 128], strides = [1, 1]} : vector<16x512xf32> to vector<16x128xf32>
    %178 = math.tanh %177 : vector<16x128xf32>
    %179 = vector.extract_strided_slice %164 {offsets = [0, 384], sizes = [16, 128], strides = [1, 1]} : vector<16x512xf32> to vector<16x128xf32>
    %180 = arith.negf %179 : vector<16x128xf32>
    %181 = math.exp %180 : vector<16x128xf32>
    %cst_54 = arith.constant 1.000000e+00 : f32
    %182 = vector.broadcast %cst_54 : f32 to vector<16x128xf32>
    %183 = arith.addf %182, %181 : vector<16x128xf32>
    %184 = arith.divf %182, %183 : vector<16x128xf32>
    %185 = arith.mulf %176, %151 : vector<16x128xf32>
    %186 = arith.mulf %170, %178 : vector<16x128xf32>
    %187 = arith.addf %185, %186 : vector<16x128xf32>
    %188 = math.tanh %187 : vector<16x128xf32>
    %189 = arith.mulf %184, %188 : vector<16x128xf32>
    %190 = arith.truncf %189 : vector<16x128xf32> to vector<16x128xbf16>
    %191 = arith.index_cast %c4_i32 : i32 to index
    %c0_55 = arith.constant 0 : index
    %c0_56 = arith.constant 0 : index
    %192 = vector.load %arg6[%191, %c0_55, %c0_56] : memref<16x16x128xbf16, #tpu.memory_space<vmem>>, vector<1x16x128xbf16>
    %193 = vector.shape_cast %192 : vector<1x16x128xbf16> to vector<16x128xbf16>
    %194 = vector.shape_cast %190 : vector<16x128xbf16> to vector<1x16x128xbf16>
    tpu.vector_store %arg6[%191, %c0_55, %c0_56], %194 {strides = array<i32>} : memref<16x16x128xbf16, #tpu.memory_space<vmem>>, vector<1x16x128xbf16>,
    %c5_i32 = arith.constant 5 : i32
    %195 = arith.index_cast %c5_i32 : i32 to index
    %c0_57 = arith.constant 0 : index
    %c0_58 = arith.constant 0 : index
    %196 = vector.load %arg9[%195, %c0_57, %c0_58] : memref<16x16x512xf32, #tpu.memory_space<vmem>>, vector<1x16x512xf32>
    %197 = vector.shape_cast %196 : vector<1x16x512xf32> to vector<16x512xf32>
    %198 = arith.truncf %189 : vector<16x128xf32> to vector<16x128xbf16>
    %cst_59 = arith.constant dense<0.000000e+00> : vector<16x512xf32>
    %199 = tpu.matmul %198, %12, %cst_59 {dimension_numbers = #tpu.dot_dimension_numbers<[1], [0], [0], [1], [0, 0, 1, 1], [], []>} : vector<16x128xbf16>, vector<128x512xbf16>, vector<16x512xf32> -> vector<16x512xf32>
    %200 = arith.addf %197, %199 : vector<16x512xf32>
    %201 = vector.extract_strided_slice %200 {offsets = [0, 0], sizes = [16, 128], strides = [1, 1]} : vector<16x512xf32> to vector<16x128xf32>
    %202 = arith.negf %201 : vector<16x128xf32>
    %203 = math.exp %202 : vector<16x128xf32>
    %cst_60 = arith.constant 1.000000e+00 : f32
    %204 = vector.broadcast %cst_60 : f32 to vector<16x128xf32>
    %205 = arith.addf %204, %203 : vector<16x128xf32>
    %206 = arith.divf %204, %205 : vector<16x128xf32>
    %207 = vector.extract_strided_slice %200 {offsets = [0, 128], sizes = [16, 128], strides = [1, 1]} : vector<16x512xf32> to vector<16x128xf32>
    %208 = arith.negf %207 : vector<16x128xf32>
    %209 = math.exp %208 : vector<16x128xf32>
    %cst_61 = arith.constant 1.000000e+00 : f32
    %210 = vector.broadcast %cst_61 : f32 to vector<16x128xf32>
    %211 = arith.addf %210, %209 : vector<16x128xf32>
    %212 = arith.divf %210, %211 : vector<16x128xf32>
    %213 = vector.extract_strided_slice %200 {offsets = [0, 256], sizes = [16, 128], strides = [1, 1]} : vector<16x512xf32> to vector<16x128xf32>
    %214 = math.tanh %213 : vector<16x128xf32>
    %215 = vector.extract_strided_slice %200 {offsets = [0, 384], sizes = [16, 128], strides = [1, 1]} : vector<16x512xf32> to vector<16x128xf32>
    %216 = arith.negf %215 : vector<16x128xf32>
    %217 = math.exp %216 : vector<16x128xf32>
    %cst_62 = arith.constant 1.000000e+00 : f32
    %218 = vector.broadcast %cst_62 : f32 to vector<16x128xf32>
    %219 = arith.addf %218, %217 : vector<16x128xf32>
    %220 = arith.divf %218, %219 : vector<16x128xf32>
    %221 = arith.mulf %212, %187 : vector<16x128xf32>
    %222 = arith.mulf %206, %214 : vector<16x128xf32>
    %223 = arith.addf %221, %222 : vector<16x128xf32>
    %224 = math.tanh %223 : vector<16x128xf32>
    %225 = arith.mulf %220, %224 : vector<16x128xf32>
    %226 = arith.truncf %225 : vector<16x128xf32> to vector<16x128xbf16>
    %227 = arith.index_cast %c5_i32 : i32 to index
    %c0_63 = arith.constant 0 : index
    %c0_64 = arith.constant 0 : index
    %228 = vector.load %arg6[%227, %c0_63, %c0_64] : memref<16x16x128xbf16, #tpu.memory_space<vmem>>, vector<1x16x128xbf16>
    %229 = vector.shape_cast %228 : vector<1x16x128xbf16> to vector<16x128xbf16>
    %230 = vector.shape_cast %226 : vector<16x128xbf16> to vector<1x16x128xbf16>
    tpu.vector_store %arg6[%227, %c0_63, %c0_64], %230 {strides = array<i32>} : memref<16x16x128xbf16, #tpu.memory_space<vmem>>, vector<1x16x128xbf16>,
    %c6_i32 = arith.constant 6 : i32
    %231 = arith.index_cast %c6_i32 : i32 to index
    %c0_65 = arith.constant 0 : index
    %c0_66 = arith.constant 0 : index
    %232 = vector.load %arg9[%231, %c0_65, %c0_66] : memref<16x16x512xf32, #tpu.memory_space<vmem>>, vector<1x16x512xf32>
    %233 = vector.shape_cast %232 : vector<1x16x512xf32> to vector<16x512xf32>
    %234 = arith.truncf %225 : vector<16x128xf32> to vector<16x128xbf16>
    %cst_67 = arith.constant dense<0.000000e+00> : vector<16x512xf32>
    %235 = tpu.matmul %234, %12, %cst_67 {dimension_numbers = #tpu.dot_dimension_numbers<[1], [0], [0], [1], [0, 0, 1, 1], [], []>} : vector<16x128xbf16>, vector<128x512xbf16>, vector<16x512xf32> -> vector<16x512xf32>
    %236 = arith.addf %233, %235 : vector<16x512xf32>
    %237 = vector.extract_strided_slice %236 {offsets = [0, 0], sizes = [16, 128], strides = [1, 1]} : vector<16x512xf32> to vector<16x128xf32>
    %238 = arith.negf %237 : vector<16x128xf32>
    %239 = math.exp %238 : vector<16x128xf32>
    %cst_68 = arith.constant 1.000000e+00 : f32
    %240 = vector.broadcast %cst_68 : f32 to vector<16x128xf32>
    %241 = arith.addf %240, %239 : vector<16x128xf32>
    %242 = arith.divf %240, %241 : vector<16x128xf32>
    %243 = vector.extract_strided_slice %236 {offsets = [0, 128], sizes = [16, 128], strides = [1, 1]} : vector<16x512xf32> to vector<16x128xf32>
    %244 = arith.negf %243 : vector<16x128xf32>
    %245 = math.exp %244 : vector<16x128xf32>
    %cst_69 = arith.constant 1.000000e+00 : f32
    %246 = vector.broadcast %cst_69 : f32 to vector<16x128xf32>
    %247 = arith.addf %246, %245 : vector<16x128xf32>
    %248 = arith.divf %246, %247 : vector<16x128xf32>
    %249 = vector.extract_strided_slice %236 {offsets = [0, 256], sizes = [16, 128], strides = [1, 1]} : vector<16x512xf32> to vector<16x128xf32>
    %250 = math.tanh %249 : vector<16x128xf32>
    %251 = vector.extract_strided_slice %236 {offsets = [0, 384], sizes = [16, 128], strides = [1, 1]} : vector<16x512xf32> to vector<16x128xf32>
    %252 = arith.negf %251 : vector<16x128xf32>
    %253 = math.exp %252 : vector<16x128xf32>
    %cst_70 = arith.constant 1.000000e+00 : f32
    %254 = vector.broadcast %cst_70 : f32 to vector<16x128xf32>
    %255 = arith.addf %254, %253 : vector<16x128xf32>
    %256 = arith.divf %254, %255 : vector<16x128xf32>
    %257 = arith.mulf %248, %223 : vector<16x128xf32>
    %258 = arith.mulf %242, %250 : vector<16x128xf32>
    %259 = arith.addf %257, %258 : vector<16x128xf32>
    %260 = math.tanh %259 : vector<16x128xf32>
    %261 = arith.mulf %256, %260 : vector<16x128xf32>
    %262 = arith.truncf %261 : vector<16x128xf32> to vector<16x128xbf16>
    %263 = arith.index_cast %c6_i32 : i32 to index
    %c0_71 = arith.constant 0 : index
    %c0_72 = arith.constant 0 : index
    %264 = vector.load %arg6[%263, %c0_71, %c0_72] : memref<16x16x128xbf16, #tpu.memory_space<vmem>>, vector<1x16x128xbf16>
    %265 = vector.shape_cast %264 : vector<1x16x128xbf16> to vector<16x128xbf16>
    %266 = vector.shape_cast %262 : vector<16x128xbf16> to vector<1x16x128xbf16>
    tpu.vector_store %arg6[%263, %c0_71, %c0_72], %266 {strides = array<i32>} : memref<16x16x128xbf16, #tpu.memory_space<vmem>>, vector<1x16x128xbf16>,
    %c7_i32 = arith.constant 7 : i32
    %267 = arith.index_cast %c7_i32 : i32 to index
    %c0_73 = arith.constant 0 : index
    %c0_74 = arith.constant 0 : index
    %268 = vector.load %arg9[%267, %c0_73, %c0_74] : memref<16x16x512xf32, #tpu.memory_space<vmem>>, vector<1x16x512xf32>
    %269 = vector.shape_cast %268 : vector<1x16x512xf32> to vector<16x512xf32>
    %270 = arith.truncf %261 : vector<16x128xf32> to vector<16x128xbf16>
    %cst_75 = arith.constant dense<0.000000e+00> : vector<16x512xf32>
    %271 = tpu.matmul %270, %12, %cst_75 {dimension_numbers = #tpu.dot_dimension_numbers<[1], [0], [0], [1], [0, 0, 1, 1], [], []>} : vector<16x128xbf16>, vector<128x512xbf16>, vector<16x512xf32> -> vector<16x512xf32>
    %272 = arith.addf %269, %271 : vector<16x512xf32>
    %273 = vector.extract_strided_slice %272 {offsets = [0, 0], sizes = [16, 128], strides = [1, 1]} : vector<16x512xf32> to vector<16x128xf32>
    %274 = arith.negf %273 : vector<16x128xf32>
    %275 = math.exp %274 : vector<16x128xf32>
    %cst_76 = arith.constant 1.000000e+00 : f32
    %276 = vector.broadcast %cst_76 : f32 to vector<16x128xf32>
    %277 = arith.addf %276, %275 : vector<16x128xf32>
    %278 = arith.divf %276, %277 : vector<16x128xf32>
    %279 = vector.extract_strided_slice %272 {offsets = [0, 128], sizes = [16, 128], strides = [1, 1]} : vector<16x512xf32> to vector<16x128xf32>
    %280 = arith.negf %279 : vector<16x128xf32>
    %281 = math.exp %280 : vector<16x128xf32>
    %cst_77 = arith.constant 1.000000e+00 : f32
    %282 = vector.broadcast %cst_77 : f32 to vector<16x128xf32>
    %283 = arith.addf %282, %281 : vector<16x128xf32>
    %284 = arith.divf %282, %283 : vector<16x128xf32>
    %285 = vector.extract_strided_slice %272 {offsets = [0, 256], sizes = [16, 128], strides = [1, 1]} : vector<16x512xf32> to vector<16x128xf32>
    %286 = math.tanh %285 : vector<16x128xf32>
    %287 = vector.extract_strided_slice %272 {offsets = [0, 384], sizes = [16, 128], strides = [1, 1]} : vector<16x512xf32> to vector<16x128xf32>
    %288 = arith.negf %287 : vector<16x128xf32>
    %289 = math.exp %288 : vector<16x128xf32>
    %cst_78 = arith.constant 1.000000e+00 : f32
    %290 = vector.broadcast %cst_78 : f32 to vector<16x128xf32>
    %291 = arith.addf %290, %289 : vector<16x128xf32>
    %292 = arith.divf %290, %291 : vector<16x128xf32>
    %293 = arith.mulf %284, %259 : vector<16x128xf32>
    %294 = arith.mulf %278, %286 : vector<16x128xf32>
    %295 = arith.addf %293, %294 : vector<16x128xf32>
    %296 = math.tanh %295 : vector<16x128xf32>
    %297 = arith.mulf %292, %296 : vector<16x128xf32>
    %298 = arith.truncf %297 : vector<16x128xf32> to vector<16x128xbf16>
    %299 = arith.index_cast %c7_i32 : i32 to index
    %c0_79 = arith.constant 0 : index
    %c0_80 = arith.constant 0 : index
    %300 = vector.load %arg6[%299, %c0_79, %c0_80] : memref<16x16x128xbf16, #tpu.memory_space<vmem>>, vector<1x16x128xbf16>
    %301 = vector.shape_cast %300 : vector<1x16x128xbf16> to vector<16x128xbf16>
    %302 = vector.shape_cast %298 : vector<16x128xbf16> to vector<1x16x128xbf16>
    tpu.vector_store %arg6[%299, %c0_79, %c0_80], %302 {strides = array<i32>} : memref<16x16x128xbf16, #tpu.memory_space<vmem>>, vector<1x16x128xbf16>,
    %c8_i32 = arith.constant 8 : i32
    %303 = arith.index_cast %c8_i32 : i32 to index
    %c0_81 = arith.constant 0 : index
    %c0_82 = arith.constant 0 : index
    %304 = vector.load %arg9[%303, %c0_81, %c0_82] : memref<16x16x512xf32, #tpu.memory_space<vmem>>, vector<1x16x512xf32>
    %305 = vector.shape_cast %304 : vector<1x16x512xf32> to vector<16x512xf32>
    %306 = arith.truncf %297 : vector<16x128xf32> to vector<16x128xbf16>
    %cst_83 = arith.constant dense<0.000000e+00> : vector<16x512xf32>
    %307 = tpu.matmul %306, %12, %cst_83 {dimension_numbers = #tpu.dot_dimension_numbers<[1], [0], [0], [1], [0, 0, 1, 1], [], []>} : vector<16x128xbf16>, vector<128x512xbf16>, vector<16x512xf32> -> vector<16x512xf32>
    %308 = arith.addf %305, %307 : vector<16x512xf32>
    %309 = vector.extract_strided_slice %308 {offsets = [0, 0], sizes = [16, 128], strides = [1, 1]} : vector<16x512xf32> to vector<16x128xf32>
    %310 = arith.negf %309 : vector<16x128xf32>
    %311 = math.exp %310 : vector<16x128xf32>
    %cst_84 = arith.constant 1.000000e+00 : f32
    %312 = vector.broadcast %cst_84 : f32 to vector<16x128xf32>
    %313 = arith.addf %312, %311 : vector<16x128xf32>
    %314 = arith.divf %312, %313 : vector<16x128xf32>
    %315 = vector.extract_strided_slice %308 {offsets = [0, 128], sizes = [16, 128], strides = [1, 1]} : vector<16x512xf32> to vector<16x128xf32>
    %316 = arith.negf %315 : vector<16x128xf32>
    %317 = math.exp %316 : vector<16x128xf32>
    %cst_85 = arith.constant 1.000000e+00 : f32
    %318 = vector.broadcast %cst_85 : f32 to vector<16x128xf32>
    %319 = arith.addf %318, %317 : vector<16x128xf32>
    %320 = arith.divf %318, %319 : vector<16x128xf32>
    %321 = vector.extract_strided_slice %308 {offsets = [0, 256], sizes = [16, 128], strides = [1, 1]} : vector<16x512xf32> to vector<16x128xf32>
    %322 = math.tanh %321 : vector<16x128xf32>
    %323 = vector.extract_strided_slice %308 {offsets = [0, 384], sizes = [16, 128], strides = [1, 1]} : vector<16x512xf32> to vector<16x128xf32>
    %324 = arith.negf %323 : vector<16x128xf32>
    %325 = math.exp %324 : vector<16x128xf32>
    %cst_86 = arith.constant 1.000000e+00 : f32
    %326 = vector.broadcast %cst_86 : f32 to vector<16x128xf32>
    %327 = arith.addf %326, %325 : vector<16x128xf32>
    %328 = arith.divf %326, %327 : vector<16x128xf32>
    %329 = arith.mulf %320, %295 : vector<16x128xf32>
    %330 = arith.mulf %314, %322 : vector<16x128xf32>
    %331 = arith.addf %329, %330 : vector<16x128xf32>
    %332 = math.tanh %331 : vector<16x128xf32>
    %333 = arith.mulf %328, %332 : vector<16x128xf32>
    %334 = arith.truncf %333 : vector<16x128xf32> to vector<16x128xbf16>
    %335 = arith.index_cast %c8_i32 : i32 to index
    %c0_87 = arith.constant 0 : index
    %c0_88 = arith.constant 0 : index
    %336 = vector.load %arg6[%335, %c0_87, %c0_88] : memref<16x16x128xbf16, #tpu.memory_space<vmem>>, vector<1x16x128xbf16>
    %337 = vector.shape_cast %336 : vector<1x16x128xbf16> to vector<16x128xbf16>
    %338 = vector.shape_cast %334 : vector<16x128xbf16> to vector<1x16x128xbf16>
    tpu.vector_store %arg6[%335, %c0_87, %c0_88], %338 {strides = array<i32>} : memref<16x16x128xbf16, #tpu.memory_space<vmem>>, vector<1x16x128xbf16>,
    %c9_i32 = arith.constant 9 : i32
    %339 = arith.index_cast %c9_i32 : i32 to index
    %c0_89 = arith.constant 0 : index
    %c0_90 = arith.constant 0 : index
    %340 = vector.load %arg9[%339, %c0_89, %c0_90] : memref<16x16x512xf32, #tpu.memory_space<vmem>>, vector<1x16x512xf32>
    %341 = vector.shape_cast %340 : vector<1x16x512xf32> to vector<16x512xf32>
    %342 = arith.truncf %333 : vector<16x128xf32> to vector<16x128xbf16>
    %cst_91 = arith.constant dense<0.000000e+00> : vector<16x512xf32>
    %343 = tpu.matmul %342, %12, %cst_91 {dimension_numbers = #tpu.dot_dimension_numbers<[1], [0], [0], [1], [0, 0, 1, 1], [], []>} : vector<16x128xbf16>, vector<128x512xbf16>, vector<16x512xf32> -> vector<16x512xf32>
    %344 = arith.addf %341, %343 : vector<16x512xf32>
    %345 = vector.extract_strided_slice %344 {offsets = [0, 0], sizes = [16, 128], strides = [1, 1]} : vector<16x512xf32> to vector<16x128xf32>
    %346 = arith.negf %345 : vector<16x128xf32>
    %347 = math.exp %346 : vector<16x128xf32>
    %cst_92 = arith.constant 1.000000e+00 : f32
    %348 = vector.broadcast %cst_92 : f32 to vector<16x128xf32>
    %349 = arith.addf %348, %347 : vector<16x128xf32>
    %350 = arith.divf %348, %349 : vector<16x128xf32>
    %351 = vector.extract_strided_slice %344 {offsets = [0, 128], sizes = [16, 128], strides = [1, 1]} : vector<16x512xf32> to vector<16x128xf32>
    %352 = arith.negf %351 : vector<16x128xf32>
    %353 = math.exp %352 : vector<16x128xf32>
    %cst_93 = arith.constant 1.000000e+00 : f32
    %354 = vector.broadcast %cst_93 : f32 to vector<16x128xf32>
    %355 = arith.addf %354, %353 : vector<16x128xf32>
    %356 = arith.divf %354, %355 : vector<16x128xf32>
    %357 = vector.extract_strided_slice %344 {offsets = [0, 256], sizes = [16, 128], strides = [1, 1]} : vector<16x512xf32> to vector<16x128xf32>
    %358 = math.tanh %357 : vector<16x128xf32>
    %359 = vector.extract_strided_slice %344 {offsets = [0, 384], sizes = [16, 128], strides = [1, 1]} : vector<16x512xf32> to vector<16x128xf32>
    %360 = arith.negf %359 : vector<16x128xf32>
    %361 = math.exp %360 : vector<16x128xf32>
    %cst_94 = arith.constant 1.000000e+00 : f32
    %362 = vector.broadcast %cst_94 : f32 to vector<16x128xf32>
    %363 = arith.addf %362, %361 : vector<16x128xf32>
    %364 = arith.divf %362, %363 : vector<16x128xf32>
    %365 = arith.mulf %356, %331 : vector<16x128xf32>
    %366 = arith.mulf %350, %358 : vector<16x128xf32>
    %367 = arith.addf %365, %366 : vector<16x128xf32>
    %368 = math.tanh %367 : vector<16x128xf32>
    %369 = arith.mulf %364, %368 : vector<16x128xf32>
    %370 = arith.truncf %369 : vector<16x128xf32> to vector<16x128xbf16>
    %371 = arith.index_cast %c9_i32 : i32 to index
    %c0_95 = arith.constant 0 : index
    %c0_96 = arith.constant 0 : index
    %372 = vector.load %arg6[%371, %c0_95, %c0_96] : memref<16x16x128xbf16, #tpu.memory_space<vmem>>, vector<1x16x128xbf16>
    %373 = vector.shape_cast %372 : vector<1x16x128xbf16> to vector<16x128xbf16>
    %374 = vector.shape_cast %370 : vector<16x128xbf16> to vector<1x16x128xbf16>
    tpu.vector_store %arg6[%371, %c0_95, %c0_96], %374 {strides = array<i32>} : memref<16x16x128xbf16, #tpu.memory_space<vmem>>, vector<1x16x128xbf16>,
    %c10_i32 = arith.constant 10 : i32
    %375 = arith.index_cast %c10_i32 : i32 to index
    %c0_97 = arith.constant 0 : index
    %c0_98 = arith.constant 0 : index
    %376 = vector.load %arg9[%375, %c0_97, %c0_98] : memref<16x16x512xf32, #tpu.memory_space<vmem>>, vector<1x16x512xf32>
    %377 = vector.shape_cast %376 : vector<1x16x512xf32> to vector<16x512xf32>
    %378 = arith.truncf %369 : vector<16x128xf32> to vector<16x128xbf16>
    %cst_99 = arith.constant dense<0.000000e+00> : vector<16x512xf32>
    %379 = tpu.matmul %378, %12, %cst_99 {dimension_numbers = #tpu.dot_dimension_numbers<[1], [0], [0], [1], [0, 0, 1, 1], [], []>} : vector<16x128xbf16>, vector<128x512xbf16>, vector<16x512xf32> -> vector<16x512xf32>
    %380 = arith.addf %377, %379 : vector<16x512xf32>
    %381 = vector.extract_strided_slice %380 {offsets = [0, 0], sizes = [16, 128], strides = [1, 1]} : vector<16x512xf32> to vector<16x128xf32>
    %382 = arith.negf %381 : vector<16x128xf32>
    %383 = math.exp %382 : vector<16x128xf32>
    %cst_100 = arith.constant 1.000000e+00 : f32
    %384 = vector.broadcast %cst_100 : f32 to vector<16x128xf32>
    %385 = arith.addf %384, %383 : vector<16x128xf32>
    %386 = arith.divf %384, %385 : vector<16x128xf32>
    %387 = vector.extract_strided_slice %380 {offsets = [0, 128], sizes = [16, 128], strides = [1, 1]} : vector<16x512xf32> to vector<16x128xf32>
    %388 = arith.negf %387 : vector<16x128xf32>
    %389 = math.exp %388 : vector<16x128xf32>
    %cst_101 = arith.constant 1.000000e+00 : f32
    %390 = vector.broadcast %cst_101 : f32 to vector<16x128xf32>
    %391 = arith.addf %390, %389 : vector<16x128xf32>
    %392 = arith.divf %390, %391 : vector<16x128xf32>
    %393 = vector.extract_strided_slice %380 {offsets = [0, 256], sizes = [16, 128], strides = [1, 1]} : vector<16x512xf32> to vector<16x128xf32>
    %394 = math.tanh %393 : vector<16x128xf32>
    %395 = vector.extract_strided_slice %380 {offsets = [0, 384], sizes = [16, 128], strides = [1, 1]} : vector<16x512xf32> to vector<16x128xf32>
    %396 = arith.negf %395 : vector<16x128xf32>
    %397 = math.exp %396 : vector<16x128xf32>
    %cst_102 = arith.constant 1.000000e+00 : f32
    %398 = vector.broadcast %cst_102 : f32 to vector<16x128xf32>
    %399 = arith.addf %398, %397 : vector<16x128xf32>
    %400 = arith.divf %398, %399 : vector<16x128xf32>
    %401 = arith.mulf %392, %367 : vector<16x128xf32>
    %402 = arith.mulf %386, %394 : vector<16x128xf32>
    %403 = arith.addf %401, %402 : vector<16x128xf32>
    %404 = math.tanh %403 : vector<16x128xf32>
    %405 = arith.mulf %400, %404 : vector<16x128xf32>
    %406 = arith.truncf %405 : vector<16x128xf32> to vector<16x128xbf16>
    %407 = arith.index_cast %c10_i32 : i32 to index
    %c0_103 = arith.constant 0 : index
    %c0_104 = arith.constant 0 : index
    %408 = vector.load %arg6[%407, %c0_103, %c0_104] : memref<16x16x128xbf16, #tpu.memory_space<vmem>>, vector<1x16x128xbf16>
    %409 = vector.shape_cast %408 : vector<1x16x128xbf16> to vector<16x128xbf16>
    %410 = vector.shape_cast %406 : vector<16x128xbf16> to vector<1x16x128xbf16>
    tpu.vector_store %arg6[%407, %c0_103, %c0_104], %410 {strides = array<i32>} : memref<16x16x128xbf16, #tpu.memory_space<vmem>>, vector<1x16x128xbf16>,
    %c11_i32 = arith.constant 11 : i32
    %411 = arith.index_cast %c11_i32 : i32 to index
    %c0_105 = arith.constant 0 : index
    %c0_106 = arith.constant 0 : index
    %412 = vector.load %arg9[%411, %c0_105, %c0_106] : memref<16x16x512xf32, #tpu.memory_space<vmem>>, vector<1x16x512xf32>
    %413 = vector.shape_cast %412 : vector<1x16x512xf32> to vector<16x512xf32>
    %414 = arith.truncf %405 : vector<16x128xf32> to vector<16x128xbf16>
    %cst_107 = arith.constant dense<0.000000e+00> : vector<16x512xf32>
    %415 = tpu.matmul %414, %12, %cst_107 {dimension_numbers = #tpu.dot_dimension_numbers<[1], [0], [0], [1], [0, 0, 1, 1], [], []>} : vector<16x128xbf16>, vector<128x512xbf16>, vector<16x512xf32> -> vector<16x512xf32>
    %416 = arith.addf %413, %415 : vector<16x512xf32>
    %417 = vector.extract_strided_slice %416 {offsets = [0, 0], sizes = [16, 128], strides = [1, 1]} : vector<16x512xf32> to vector<16x128xf32>
    %418 = arith.negf %417 : vector<16x128xf32>
    %419 = math.exp %418 : vector<16x128xf32>
    %cst_108 = arith.constant 1.000000e+00 : f32
    %420 = vector.broadcast %cst_108 : f32 to vector<16x128xf32>
    %421 = arith.addf %420, %419 : vector<16x128xf32>
    %422 = arith.divf %420, %421 : vector<16x128xf32>
    %423 = vector.extract_strided_slice %416 {offsets = [0, 128], sizes = [16, 128], strides = [1, 1]} : vector<16x512xf32> to vector<16x128xf32>
    %424 = arith.negf %423 : vector<16x128xf32>
    %425 = math.exp %424 : vector<16x128xf32>
    %cst_109 = arith.constant 1.000000e+00 : f32
    %426 = vector.broadcast %cst_109 : f32 to vector<16x128xf32>
    %427 = arith.addf %426, %425 : vector<16x128xf32>
    %428 = arith.divf %426, %427 : vector<16x128xf32>
    %429 = vector.extract_strided_slice %416 {offsets = [0, 256], sizes = [16, 128], strides = [1, 1]} : vector<16x512xf32> to vector<16x128xf32>
    %430 = math.tanh %429 : vector<16x128xf32>
    %431 = vector.extract_strided_slice %416 {offsets = [0, 384], sizes = [16, 128], strides = [1, 1]} : vector<16x512xf32> to vector<16x128xf32>
    %432 = arith.negf %431 : vector<16x128xf32>
    %433 = math.exp %432 : vector<16x128xf32>
    %cst_110 = arith.constant 1.000000e+00 : f32
    %434 = vector.broadcast %cst_110 : f32 to vector<16x128xf32>
    %435 = arith.addf %434, %433 : vector<16x128xf32>
    %436 = arith.divf %434, %435 : vector<16x128xf32>
    %437 = arith.mulf %428, %403 : vector<16x128xf32>
    %438 = arith.mulf %422, %430 : vector<16x128xf32>
    %439 = arith.addf %437, %438 : vector<16x128xf32>
    %440 = math.tanh %439 : vector<16x128xf32>
    %441 = arith.mulf %436, %440 : vector<16x128xf32>
    %442 = arith.truncf %441 : vector<16x128xf32> to vector<16x128xbf16>
    %443 = arith.index_cast %c11_i32 : i32 to index
    %c0_111 = arith.constant 0 : index
    %c0_112 = arith.constant 0 : index
    %444 = vector.load %arg6[%443, %c0_111, %c0_112] : memref<16x16x128xbf16, #tpu.memory_space<vmem>>, vector<1x16x128xbf16>
    %445 = vector.shape_cast %444 : vector<1x16x128xbf16> to vector<16x128xbf16>
    %446 = vector.shape_cast %442 : vector<16x128xbf16> to vector<1x16x128xbf16>
    tpu.vector_store %arg6[%443, %c0_111, %c0_112], %446 {strides = array<i32>} : memref<16x16x128xbf16, #tpu.memory_space<vmem>>, vector<1x16x128xbf16>,
    %c12_i32 = arith.constant 12 : i32
    %447 = arith.index_cast %c12_i32 : i32 to index
    %c0_113 = arith.constant 0 : index
    %c0_114 = arith.constant 0 : index
    %448 = vector.load %arg9[%447, %c0_113, %c0_114] : memref<16x16x512xf32, #tpu.memory_space<vmem>>, vector<1x16x512xf32>
    %449 = vector.shape_cast %448 : vector<1x16x512xf32> to vector<16x512xf32>
    %450 = arith.truncf %441 : vector<16x128xf32> to vector<16x128xbf16>
    %cst_115 = arith.constant dense<0.000000e+00> : vector<16x512xf32>
    %451 = tpu.matmul %450, %12, %cst_115 {dimension_numbers = #tpu.dot_dimension_numbers<[1], [0], [0], [1], [0, 0, 1, 1], [], []>} : vector<16x128xbf16>, vector<128x512xbf16>, vector<16x512xf32> -> vector<16x512xf32>
    %452 = arith.addf %449, %451 : vector<16x512xf32>
    %453 = vector.extract_strided_slice %452 {offsets = [0, 0], sizes = [16, 128], strides = [1, 1]} : vector<16x512xf32> to vector<16x128xf32>
    %454 = arith.negf %453 : vector<16x128xf32>
    %455 = math.exp %454 : vector<16x128xf32>
    %cst_116 = arith.constant 1.000000e+00 : f32
    %456 = vector.broadcast %cst_116 : f32 to vector<16x128xf32>
    %457 = arith.addf %456, %455 : vector<16x128xf32>
    %458 = arith.divf %456, %457 : vector<16x128xf32>
    %459 = vector.extract_strided_slice %452 {offsets = [0, 128], sizes = [16, 128], strides = [1, 1]} : vector<16x512xf32> to vector<16x128xf32>
    %460 = arith.negf %459 : vector<16x128xf32>
    %461 = math.exp %460 : vector<16x128xf32>
    %cst_117 = arith.constant 1.000000e+00 : f32
    %462 = vector.broadcast %cst_117 : f32 to vector<16x128xf32>
    %463 = arith.addf %462, %461 : vector<16x128xf32>
    %464 = arith.divf %462, %463 : vector<16x128xf32>
    %465 = vector.extract_strided_slice %452 {offsets = [0, 256], sizes = [16, 128], strides = [1, 1]} : vector<16x512xf32> to vector<16x128xf32>
    %466 = math.tanh %465 : vector<16x128xf32>
    %467 = vector.extract_strided_slice %452 {offsets = [0, 384], sizes = [16, 128], strides = [1, 1]} : vector<16x512xf32> to vector<16x128xf32>
    %468 = arith.negf %467 : vector<16x128xf32>
    %469 = math.exp %468 : vector<16x128xf32>
    %cst_118 = arith.constant 1.000000e+00 : f32
    %470 = vector.broadcast %cst_118 : f32 to vector<16x128xf32>
    %471 = arith.addf %470, %469 : vector<16x128xf32>
    %472 = arith.divf %470, %471 : vector<16x128xf32>
    %473 = arith.mulf %464, %439 : vector<16x128xf32>
    %474 = arith.mulf %458, %466 : vector<16x128xf32>
    %475 = arith.addf %473, %474 : vector<16x128xf32>
    %476 = math.tanh %475 : vector<16x128xf32>
    %477 = arith.mulf %472, %476 : vector<16x128xf32>
    %478 = arith.truncf %477 : vector<16x128xf32> to vector<16x128xbf16>
    %479 = arith.index_cast %c12_i32 : i32 to index
    %c0_119 = arith.constant 0 : index
    %c0_120 = arith.constant 0 : index
    %480 = vector.load %arg6[%479, %c0_119, %c0_120] : memref<16x16x128xbf16, #tpu.memory_space<vmem>>, vector<1x16x128xbf16>
    %481 = vector.shape_cast %480 : vector<1x16x128xbf16> to vector<16x128xbf16>
    %482 = vector.shape_cast %478 : vector<16x128xbf16> to vector<1x16x128xbf16>
    tpu.vector_store %arg6[%479, %c0_119, %c0_120], %482 {strides = array<i32>} : memref<16x16x128xbf16, #tpu.memory_space<vmem>>, vector<1x16x128xbf16>,
    %c13_i32 = arith.constant 13 : i32
    %483 = arith.index_cast %c13_i32 : i32 to index
    %c0_121 = arith.constant 0 : index
    %c0_122 = arith.constant 0 : index
    %484 = vector.load %arg9[%483, %c0_121, %c0_122] : memref<16x16x512xf32, #tpu.memory_space<vmem>>, vector<1x16x512xf32>
    %485 = vector.shape_cast %484 : vector<1x16x512xf32> to vector<16x512xf32>
    %486 = arith.truncf %477 : vector<16x128xf32> to vector<16x128xbf16>
    %cst_123 = arith.constant dense<0.000000e+00> : vector<16x512xf32>
    %487 = tpu.matmul %486, %12, %cst_123 {dimension_numbers = #tpu.dot_dimension_numbers<[1], [0], [0], [1], [0, 0, 1, 1], [], []>} : vector<16x128xbf16>, vector<128x512xbf16>, vector<16x512xf32> -> vector<16x512xf32>
    %488 = arith.addf %485, %487 : vector<16x512xf32>
    %489 = vector.extract_strided_slice %488 {offsets = [0, 0], sizes = [16, 128], strides = [1, 1]} : vector<16x512xf32> to vector<16x128xf32>
    %490 = arith.negf %489 : vector<16x128xf32>
    %491 = math.exp %490 : vector<16x128xf32>
    %cst_124 = arith.constant 1.000000e+00 : f32
    %492 = vector.broadcast %cst_124 : f32 to vector<16x128xf32>
    %493 = arith.addf %492, %491 : vector<16x128xf32>
    %494 = arith.divf %492, %493 : vector<16x128xf32>
    %495 = vector.extract_strided_slice %488 {offsets = [0, 128], sizes = [16, 128], strides = [1, 1]} : vector<16x512xf32> to vector<16x128xf32>
    %496 = arith.negf %495 : vector<16x128xf32>
    %497 = math.exp %496 : vector<16x128xf32>
    %cst_125 = arith.constant 1.000000e+00 : f32
    %498 = vector.broadcast %cst_125 : f32 to vector<16x128xf32>
    %499 = arith.addf %498, %497 : vector<16x128xf32>
    %500 = arith.divf %498, %499 : vector<16x128xf32>
    %501 = vector.extract_strided_slice %488 {offsets = [0, 256], sizes = [16, 128], strides = [1, 1]} : vector<16x512xf32> to vector<16x128xf32>
    %502 = math.tanh %501 : vector<16x128xf32>
    %503 = vector.extract_strided_slice %488 {offsets = [0, 384], sizes = [16, 128], strides = [1, 1]} : vector<16x512xf32> to vector<16x128xf32>
    %504 = arith.negf %503 : vector<16x128xf32>
    %505 = math.exp %504 : vector<16x128xf32>
    %cst_126 = arith.constant 1.000000e+00 : f32
    %506 = vector.broadcast %cst_126 : f32 to vector<16x128xf32>
    %507 = arith.addf %506, %505 : vector<16x128xf32>
    %508 = arith.divf %506, %507 : vector<16x128xf32>
    %509 = arith.mulf %500, %475 : vector<16x128xf32>
    %510 = arith.mulf %494, %502 : vector<16x128xf32>
    %511 = arith.addf %509, %510 : vector<16x128xf32>
    %512 = math.tanh %511 : vector<16x128xf32>
    %513 = arith.mulf %508, %512 : vector<16x128xf32>
    %514 = arith.truncf %513 : vector<16x128xf32> to vector<16x128xbf16>
    %515 = arith.index_cast %c13_i32 : i32 to index
    %c0_127 = arith.constant 0 : index
    %c0_128 = arith.constant 0 : index
    %516 = vector.load %arg6[%515, %c0_127, %c0_128] : memref<16x16x128xbf16, #tpu.memory_space<vmem>>, vector<1x16x128xbf16>
    %517 = vector.shape_cast %516 : vector<1x16x128xbf16> to vector<16x128xbf16>
    %518 = vector.shape_cast %514 : vector<16x128xbf16> to vector<1x16x128xbf16>
    tpu.vector_store %arg6[%515, %c0_127, %c0_128], %518 {strides = array<i32>} : memref<16x16x128xbf16, #tpu.memory_space<vmem>>, vector<1x16x128xbf16>,
    %c14_i32 = arith.constant 14 : i32
    %519 = arith.index_cast %c14_i32 : i32 to index
    %c0_129 = arith.constant 0 : index
    %c0_130 = arith.constant 0 : index
    %520 = vector.load %arg9[%519, %c0_129, %c0_130] : memref<16x16x512xf32, #tpu.memory_space<vmem>>, vector<1x16x512xf32>
    %521 = vector.shape_cast %520 : vector<1x16x512xf32> to vector<16x512xf32>
    %522 = arith.truncf %513 : vector<16x128xf32> to vector<16x128xbf16>
    %cst_131 = arith.constant dense<0.000000e+00> : vector<16x512xf32>
    %523 = tpu.matmul %522, %12, %cst_131 {dimension_numbers = #tpu.dot_dimension_numbers<[1], [0], [0], [1], [0, 0, 1, 1], [], []>} : vector<16x128xbf16>, vector<128x512xbf16>, vector<16x512xf32> -> vector<16x512xf32>
    %524 = arith.addf %521, %523 : vector<16x512xf32>
    %525 = vector.extract_strided_slice %524 {offsets = [0, 0], sizes = [16, 128], strides = [1, 1]} : vector<16x512xf32> to vector<16x128xf32>
    %526 = arith.negf %525 : vector<16x128xf32>
    %527 = math.exp %526 : vector<16x128xf32>
    %cst_132 = arith.constant 1.000000e+00 : f32
    %528 = vector.broadcast %cst_132 : f32 to vector<16x128xf32>
    %529 = arith.addf %528, %527 : vector<16x128xf32>
    %530 = arith.divf %528, %529 : vector<16x128xf32>
    %531 = vector.extract_strided_slice %524 {offsets = [0, 128], sizes = [16, 128], strides = [1, 1]} : vector<16x512xf32> to vector<16x128xf32>
    %532 = arith.negf %531 : vector<16x128xf32>
    %533 = math.exp %532 : vector<16x128xf32>
    %cst_133 = arith.constant 1.000000e+00 : f32
    %534 = vector.broadcast %cst_133 : f32 to vector<16x128xf32>
    %535 = arith.addf %534, %533 : vector<16x128xf32>
    %536 = arith.divf %534, %535 : vector<16x128xf32>
    %537 = vector.extract_strided_slice %524 {offsets = [0, 256], sizes = [16, 128], strides = [1, 1]} : vector<16x512xf32> to vector<16x128xf32>
    %538 = math.tanh %537 : vector<16x128xf32>
    %539 = vector.extract_strided_slice %524 {offsets = [0, 384], sizes = [16, 128], strides = [1, 1]} : vector<16x512xf32> to vector<16x128xf32>
    %540 = arith.negf %539 : vector<16x128xf32>
    %541 = math.exp %540 : vector<16x128xf32>
    %cst_134 = arith.constant 1.000000e+00 : f32
    %542 = vector.broadcast %cst_134 : f32 to vector<16x128xf32>
    %543 = arith.addf %542, %541 : vector<16x128xf32>
    %544 = arith.divf %542, %543 : vector<16x128xf32>
    %545 = arith.mulf %536, %511 : vector<16x128xf32>
    %546 = arith.mulf %530, %538 : vector<16x128xf32>
    %547 = arith.addf %545, %546 : vector<16x128xf32>
    %548 = math.tanh %547 : vector<16x128xf32>
    %549 = arith.mulf %544, %548 : vector<16x128xf32>
    %550 = arith.truncf %549 : vector<16x128xf32> to vector<16x128xbf16>
    %551 = arith.index_cast %c14_i32 : i32 to index
    %c0_135 = arith.constant 0 : index
    %c0_136 = arith.constant 0 : index
    %552 = vector.load %arg6[%551, %c0_135, %c0_136] : memref<16x16x128xbf16, #tpu.memory_space<vmem>>, vector<1x16x128xbf16>
    %553 = vector.shape_cast %552 : vector<1x16x128xbf16> to vector<16x128xbf16>
    %554 = vector.shape_cast %550 : vector<16x128xbf16> to vector<1x16x128xbf16>
    tpu.vector_store %arg6[%551, %c0_135, %c0_136], %554 {strides = array<i32>} : memref<16x16x128xbf16, #tpu.memory_space<vmem>>, vector<1x16x128xbf16>,
    %c15_i32 = arith.constant 15 : i32
    %555 = arith.index_cast %c15_i32 : i32 to index
    %c0_137 = arith.constant 0 : index
    %c0_138 = arith.constant 0 : index
    %556 = vector.load %arg9[%555, %c0_137, %c0_138] : memref<16x16x512xf32, #tpu.memory_space<vmem>>, vector<1x16x512xf32>
    %557 = vector.shape_cast %556 : vector<1x16x512xf32> to vector<16x512xf32>
    %558 = arith.truncf %549 : vector<16x128xf32> to vector<16x128xbf16>
    %cst_139 = arith.constant dense<0.000000e+00> : vector<16x512xf32>
    %559 = tpu.matmul %558, %12, %cst_139 {dimension_numbers = #tpu.dot_dimension_numbers<[1], [0], [0], [1], [0, 0, 1, 1], [], []>} : vector<16x128xbf16>, vector<128x512xbf16>, vector<16x512xf32> -> vector<16x512xf32>
    %560 = arith.addf %557, %559 : vector<16x512xf32>
    %561 = vector.extract_strided_slice %560 {offsets = [0, 0], sizes = [16, 128], strides = [1, 1]} : vector<16x512xf32> to vector<16x128xf32>
    %562 = arith.negf %561 : vector<16x128xf32>
    %563 = math.exp %562 : vector<16x128xf32>
    %cst_140 = arith.constant 1.000000e+00 : f32
    %564 = vector.broadcast %cst_140 : f32 to vector<16x128xf32>
    %565 = arith.addf %564, %563 : vector<16x128xf32>
    %566 = arith.divf %564, %565 : vector<16x128xf32>
    %567 = vector.extract_strided_slice %560 {offsets = [0, 128], sizes = [16, 128], strides = [1, 1]} : vector<16x512xf32> to vector<16x128xf32>
    %568 = arith.negf %567 : vector<16x128xf32>
    %569 = math.exp %568 : vector<16x128xf32>
    %cst_141 = arith.constant 1.000000e+00 : f32
    %570 = vector.broadcast %cst_141 : f32 to vector<16x128xf32>
    %571 = arith.addf %570, %569 : vector<16x128xf32>
    %572 = arith.divf %570, %571 : vector<16x128xf32>
    %573 = vector.extract_strided_slice %560 {offsets = [0, 256], sizes = [16, 128], strides = [1, 1]} : vector<16x512xf32> to vector<16x128xf32>
    %574 = math.tanh %573 : vector<16x128xf32>
    %575 = vector.extract_strided_slice %560 {offsets = [0, 384], sizes = [16, 128], strides = [1, 1]} : vector<16x512xf32> to vector<16x128xf32>
    %576 = arith.negf %575 : vector<16x128xf32>
    %577 = math.exp %576 : vector<16x128xf32>
    %cst_142 = arith.constant 1.000000e+00 : f32
    %578 = vector.broadcast %cst_142 : f32 to vector<16x128xf32>
    %579 = arith.addf %578, %577 : vector<16x128xf32>
    %580 = arith.divf %578, %579 : vector<16x128xf32>
    %581 = arith.mulf %572, %547 : vector<16x128xf32>
    %582 = arith.mulf %566, %574 : vector<16x128xf32>
    %583 = arith.addf %581, %582 : vector<16x128xf32>
    %584 = math.tanh %583 : vector<16x128xf32>
    %585 = arith.mulf %580, %584 : vector<16x128xf32>
    %586 = arith.truncf %585 : vector<16x128xf32> to vector<16x128xbf16>
    %587 = arith.index_cast %c15_i32 : i32 to index
    %c0_143 = arith.constant 0 : index
    %c0_144 = arith.constant 0 : index
    %588 = vector.load %arg6[%587, %c0_143, %c0_144] : memref<16x16x128xbf16, #tpu.memory_space<vmem>>, vector<1x16x128xbf16>
    %589 = vector.shape_cast %588 : vector<1x16x128xbf16> to vector<16x128xbf16>
    %590 = vector.shape_cast %586 : vector<16x128xbf16> to vector<1x16x128xbf16>
    tpu.vector_store %arg6[%587, %c0_143, %c0_144], %590 {strides = array<i32>} : memref<16x16x128xbf16, #tpu.memory_space<vmem>>, vector<1x16x128xbf16>,
    %c16_i32 = arith.constant 16 : i32
    %c0_145 = arith.constant 0 : index
    %c0_146 = arith.constant 0 : index
    %591 = vector.load %arg7[%c0_145, %c0_146] : memref<16x128xf32, #tpu.memory_space<vmem>>, vector<16x128xf32>
    tpu.vector_store %arg7[%c0_145, %c0_146], %585 {strides = array<i32>} : memref<16x128xf32, #tpu.memory_space<vmem>>, vector<16x128xf32>,
    %c0_147 = arith.constant 0 : index
    %c0_148 = arith.constant 0 : index
    %592 = vector.load %arg8[%c0_147, %c0_148] : memref<16x128xf32, #tpu.memory_space<vmem>>, vector<16x128xf32>
    tpu.vector_store %arg8[%c0_147, %c0_148], %583 {strides = array<i32>} : memref<16x128xf32, #tpu.memory_space<vmem>>, vector<16x128xf32>,
    return
  }
  func.func @transform_0(%arg0: i32, %arg1: i32) -> (i32, i32, i32) {
    %c0_i32 = arith.constant 0 : i32
    %c0_i32_0 = arith.constant 0 : i32
    return %arg1, %arg0, %c0_i32 : i32, i32, i32
  }
  func.func @transform_1(%arg0: i32, %arg1: i32) -> (i32, i32) {
    %c0_i32 = arith.constant 0 : i32
    %c0_i32_0 = arith.constant 0 : i32
    %c0_i32_1 = arith.constant 0 : i32
    return %c0_i32, %c0_i32_0 : i32, i32
  }
  func.func @transform_2(%arg0: i32, %arg1: i32) -> (i32, i32) {
    %c0_i32 = arith.constant 0 : i32
    %c0_i32_0 = arith.constant 0 : i32
    %c0_i32_1 = arith.constant 0 : i32
    return %c0_i32, %c0_i32_0 : i32, i32
  }
  func.func @transform_3(%arg0: i32, %arg1: i32) -> (i32, i32) {
    %c0_i32 = arith.constant 0 : i32
    %c0_i32_0 = arith.constant 0 : i32
    %c0_i32_1 = arith.constant 0 : i32
    return %c0_i32, %c0_i32_0 : i32, i32
  }
  func.func @transform_4(%arg0: i32, %arg1: i32) -> (i32, i32, i32) {
    %c0_i32 = arith.constant 0 : i32
    %c0_i32_0 = arith.constant 0 : i32
    return %arg1, %arg0, %c0_i32 : i32, i32, i32
  }
}

</mosaic_0001>

<llo_original>
// kernel: lm_lstm_forward.3
$region0: #{lm_lstm_forward.3}
  #allocation0 [shape = 'u32[]', space=smem, size = 0x4, offset = 0x4, fixed_abs, tag = 'smem constant byte address 0x4 - core index']
  #allocation1 [shape = 'u32[144,128]{1,0:T(1,128)}', space=vmem, size = 0x12000, scoped, tag = 'internal scratch']
  %s0 = inlined_call_operand.vmem [shape: bf16[16,16,128], index: 0, kind: input, shape index: {}]
  %s1 = inlined_call_operand.vmem [shape: bf16[128,128], index: 1, kind: input, shape index: {}]
  %s2 = inlined_call_operand.vmem [shape: f32[1,128], index: 2, kind: input, shape index: {}]
  %s3 = inlined_call_operand.vmem [shape: f32[16,16,128], index: 3, kind: output, shape index: {}]
  %s4 = sld [smem:[#allocation0]]
  $region22: #{lm_lstm_forward.3} parent=0
    _
  %s6 = ssub.s32 1, %s4
  %s7 = scalar_select 0, %s6, %s4
  // Predicated region
  $region2: #{lm_lstm_forward.3} parent=0 // pred_check
    _
  $region3: #{lm_lstm_forward.3} parent=0 // pred_check_branch
    %9 = sbr.rel (0) target = $region5
  $region4: #{lm_lstm_forward.3} parent=0 // pred_region
    _
  $region5: #{lm_lstm_forward.3} parent=0 // pred_fallthru
    _
  // Predicated region
  $region6: #{lm_lstm_forward.3} parent=0 // pred_check
    _
  $region7: #{lm_lstm_forward.3} parent=0 // pred_check_branch
    %11 = sbr.rel (0) target = $region9
  $region8: #{lm_lstm_forward.3} parent=0 // pred_region
    _
  $region9: #{lm_lstm_forward.3} parent=0 // pred_fallthru
    _
  // Predicated region
  $region10: #{lm_lstm_forward.3} parent=0 // pred_check
    _
  $region11: #{lm_lstm_forward.3} parent=0 // pred_check_branch
    %13 = sbr.rel (0) target = $region13
  $region12: #{lm_lstm_forward.3} parent=0 // pred_region
    _
  $region13: #{lm_lstm_forward.3} parent=0 // pred_fallthru
    _
  %v15 = vld [vmem:[%s0] sm:$0xf]
  %v16 = vld [vmem:[%s0 + $0x4] sm:$0xf]
  %v17 = vld [vmem:[%s0 + $0x8] sm:$0xf]
  %v18 = vld [vmem:[%s0 + $0xc] sm:$0xf]
  %v19 = vld [vmem:[%s0 + $0x10] sm:$0xf]
  %v20 = vld [vmem:[%s0 + $0x14] sm:$0xf]
  %v21 = vld [vmem:[%s0 + $0x18] sm:$0xf]
  %v22 = vld [vmem:[%s0 + $0x1c] sm:$0xf]
  %v23 = vld [vmem:[%s0 + $0x20] sm:$0xf]
  %v24 = vld [vmem:[%s0 + $0x24] sm:$0xf]
  %v25 = vld [vmem:[%s0 + $0x28] sm:$0xf]
  %v26 = vld [vmem:[%s0 + $0x2c] sm:$0xf]
  %v27 = vld [vmem:[%s0 + $0x30] sm:$0xf]
  %v28 = vld [vmem:[%s0 + $0x34] sm:$0xf]
  %v29 = vld [vmem:[%s0 + $0x38] sm:$0xf]
  %v30 = vld [vmem:[%s0 + $0x3c] sm:$0xf]
  %v31 = vld [vmem:[%s0 + $0x40] sm:$0xf]
  %v32 = vld [vmem:[%s0 + $0x44] sm:$0xf]
  %v33 = vld [vmem:[%s0 + $0x48] sm:$0xf]
  %v34 = vld [vmem:[%s0 + $0x4c] sm:$0xf]
  %v35 = vld [vmem:[%s0 + $0x50] sm:$0xf]
  %v36 = vld [vmem:[%s0 + $0x54] sm:$0xf]
  %v37 = vld [vmem:[%s0 + $0x58] sm:$0xf]
  %v38 = vld [vmem:[%s0 + $0x5c] sm:$0xf]
  %v39 = vld [vmem:[%s0 + $0x60] sm:$0xf]
  %v40 = vld [vmem:[%s0 + $0x64] sm:$0xf]
  %v41 = vld [vmem:[%s0 + $0x68] sm:$0xf]
  %v42 = vld [vmem:[%s0 + $0x6c] sm:$0xf]
  %v43 = vld [vmem:[%s0 + $0x70] sm:$0xf]
  %v44 = vld [vmem:[%s0 + $0x74] sm:$0xf]
  %v45 = vld [vmem:[%s0 + $0x78] sm:$0xf]
  %v46 = vld [vmem:[%s0 + $0x7c] sm:$0xf]
  %v47 = vld [vmem:[%s1] sm:$0xf]
  %v48 = vld [vmem:[%s1 + $0x4] sm:$0xf]
  %v49 = vld [vmem:[%s1 + $0x8] sm:$0xf]
  %v50 = vld [vmem:[%s1 + $0xc] sm:$0xf]
  %v51 = vld [vmem:[%s1 + $0x10] sm:$0xf]
  %v52 = vld [vmem:[%s1 + $0x14] sm:$0xf]
  %v53 = vld [vmem:[%s1 + $0x18] sm:$0xf]
  %v54 = vld [vmem:[%s1 + $0x1c] sm:$0xf]
  %v55 = vld [vmem:[%s1 + $0x20] sm:$0xf]
  %v56 = vld [vmem:[%s1 + $0x24] sm:$0xf]
  %v57 = vld [vmem:[%s1 + $0x28] sm:$0xf]
  %v58 = vld [vmem:[%s1 + $0x2c] sm:$0xf]
  %v59 = vld [vmem:[%s1 + $0x30] sm:$0xf]
  %v60 = vld [vmem:[%s1 + $0x34] sm:$0xf]
  %v61 = vld [vmem:[%s1 + $0x38] sm:$0xf]
  %v62 = vld [vmem:[%s1 + $0x3c] sm:$0xf]
  %v63 = vld [vmem:[%s2] sm:$0x1]
  %v65 = vlaneseq
  %v66 = vshrl.u32 %v65, 7
  %v67 = vsub.s32 0, %v66
  %v68 = vrot.slane %v63, %v67
  %v102 = vunpack.c.l.b16 %v15
  %v103 = vunpack.c.l.b16 %v16
  %v104 = vunpack.c.l.b16 %v17
  %v105 = vunpack.c.l.b16 %v18
  %v106 = vunpack.c.l.b16 %v19
  %v107 = vunpack.c.l.b16 %v20
  %v108 = vunpack.c.l.b16 %v21
  %v109 = vunpack.c.l.b16 %v22
  %v110 = vunpack.c.l.b16 %v23
  %v111 = vunpack.c.l.b16 %v24
  %v112 = vunpack.c.l.b16 %v25
  %v113 = vunpack.c.l.b16 %v26
  %v114 = vunpack.c.l.b16 %v27
  %v115 = vunpack.c.l.b16 %v28
  %v116 = vunpack.c.l.b16 %v29
  %v117 = vunpack.c.l.b16 %v30
  %v118 = vunpack.c.l.b16 %v31
  %v119 = vunpack.c.l.b16 %v32
  %v120 = vunpack.c.l.b16 %v33
  %v121 = vunpack.c.l.b16 %v34
  %v122 = vunpack.c.l.b16 %v35
  %v123 = vunpack.c.l.b16 %v36
  %v124 = vunpack.c.l.b16 %v37
  %v125 = vunpack.c.l.b16 %v38
  %v126 = vunpack.c.l.b16 %v39
  %v127 = vunpack.c.l.b16 %v40
  %v128 = vunpack.c.l.b16 %v41
  %v129 = vunpack.c.l.b16 %v42
  %v130 = vunpack.c.l.b16 %v43
  %v131 = vunpack.c.l.b16 %v44
  %v132 = vunpack.c.l.b16 %v45
  %v133 = vunpack.c.l.b16 %v46
  %v134 = vpack.c.b16 %v103, %v102
  %v135 = vpack.c.b16 %v105, %v104
  %v136 = vpack.c.b16 %v107, %v106
  %v137 = vpack.c.b16 %v109, %v108
  %v138 = vpack.c.b16 %v111, %v110
  %v139 = vpack.c.b16 %v113, %v112
  %v140 = vpack.c.b16 %v115, %v114
  %v141 = vpack.c.b16 %v117, %v116
  %v142 = vpack.c.b16 %v119, %v118
  %v143 = vpack.c.b16 %v121, %v120
  %v144 = vpack.c.b16 %v123, %v122
  %v145 = vpack.c.b16 %v125, %v124
  %v146 = vpack.c.b16 %v127, %v126
  %v147 = vpack.c.b16 %v129, %v128
  %v148 = vpack.c.b16 %v131, %v130
  %v149 = vpack.c.b16 %v133, %v132
  %v182 = vunpack.c.l.b16 %v47
  %v183 = vunpack.c.l.b16 %v48
  %v184 = vunpack.c.l.b16 %v49
  %v185 = vunpack.c.l.b16 %v50
  %v186 = vunpack.c.l.b16 %v51
  %v187 = vunpack.c.l.b16 %v52
  %v188 = vunpack.c.l.b16 %v53
  %v189 = vunpack.c.l.b16 %v54
  %v190 = vunpack.c.l.b16 %v55
  %v191 = vunpack.c.l.b16 %v56
  %v192 = vunpack.c.l.b16 %v57
  %v193 = vunpack.c.l.b16 %v58
  %v194 = vunpack.c.l.b16 %v59
  %v195 = vunpack.c.l.b16 %v60
  %v196 = vunpack.c.l.b16 %v61
  %v197 = vunpack.c.l.b16 %v62
  %v198 = vpack.c.b16 %v183, %v182
  %v199 = vpack.c.b16 %v185, %v184
  %v200 = vpack.c.b16 %v187, %v186
  %v201 = vpack.c.b16 %v189, %v188
  %v202 = vpack.c.b16 %v191, %v190
  %v203 = vpack.c.b16 %v193, %v192
  %v204 = vpack.c.b16 %v195, %v194
  %v205 = vpack.c.b16 %v197, %v196
  %214 = vmatprep.subr.bf16.mxu0 0
  %215 = vmatpush1.bf16.msra.mxu0 %v205
  %216 = vmatprep.subr.bf16.mxu0 0
  %217 = vmatpush1.bf16.msra.mxu0 %v204
  %218 = vmatprep.subr.bf16.mxu0 0
  %219 = vmatpush1.bf16.msra.mxu0 %v203
  %220 = vmatprep.subr.bf16.mxu0 0
  %221 = vmatpush1.bf16.msra.mxu0 %v202
  %222 = vmatprep.subr.bf16.mxu0 0
  %223 = vmatpush1.bf16.msra.mxu0 %v201
  %224 = vmatprep.subr.bf16.mxu0 0
  %225 = vmatpush1.bf16.msra.mxu0 %v200
  %226 = vmatprep.subr.bf16.mxu0 0
  %227 = vmatpush1.bf16.msra.mxu0 %v199
  %228 = vmatprep.subr.bf16.mxu0 0
  %229 = vmatpush1.bf16.msra.mxu0 %v198
  %230 = vmatprep.subr.bf16.mxu0 0
  %231 = vmatpush2.bf16.msra.mxu0 0
  %232 = vmatprep.subr.bf16.mxu0 0
  %233 = vmatpush2.bf16.msra.mxu0 0
  %234 = vmatprep.subr.bf16.mxu0 0
  %235 = vmatpush2.bf16.msra.mxu0 0
  %236 = vmatprep.subr.bf16.mxu0 0
  %237 = vmatpush2.bf16.msra.mxu0 0
  %238 = vmatprep.subr.bf16.mxu0 0
  %239 = vmatpush2.bf16.msra.mxu0 0
  %240 = vmatprep.subr.bf16.mxu0 0
  %241 = vmatpush2.bf16.msra.mxu0 0
  %242 = vmatprep.subr.bf16.mxu0 0
  %243 = vmatpush2.bf16.msra.mxu0 0
  %244 = vmatprep.subr.bf16.mxu0 0
  %245 = vmatpush2.bf16.msra.mxu0 0
  %246 = vmatprep.mubr.bf16.mxu0 0
  %247 = vmatmul.mubr.bf16.gmra.mxu0 %v134
  %v248 = vpop.f32.mrf.mxu0
  %v249 = vadd.f32 %v68, %v248
  %v250 = vpop.f32.mrf.mxu0
  %v251 = vpop.f32.mrf.mxu0
  %v252 = vadd.f32 %v68, %v251
  %v253 = vpop.f32.mrf.mxu0
  %254 = vmatprep.mubr.bf16.mxu0 0
  %255 = vmatmul.mubr.bf16.gmra.mxu0 %v135
  %v256 = vpop.f32.mrf.mxu0
  %v257 = vadd.f32 %v68, %v256
  %v258 = vpop.f32.mrf.mxu0
  %v259 = vpop.f32.mrf.mxu0
  %v260 = vadd.f32 %v68, %v259
  %v261 = vpop.f32.mrf.mxu0
  %262 = vmatprep.mubr.bf16.mxu0 0
  %263 = vmatmul.mubr.bf16.gmra.mxu0 %v136
  %v264 = vpop.f32.mrf.mxu0
  %v265 = vadd.f32 %v68, %v264
  %v266 = vpop.f32.mrf.mxu0
  %v267 = vpop.f32.mrf.mxu0
  %v268 = vadd.f32 %v68, %v267
  %v269 = vpop.f32.mrf.mxu0
  %270 = vmatprep.mubr.bf16.mxu0 0
  %271 = vmatmul.mubr.bf16.gmra.mxu0 %v137
  %v272 = vpop.f32.mrf.mxu0
  %v273 = vadd.f32 %v68, %v272
  %v274 = vpop.f32.mrf.mxu0
  %v275 = vpop.f32.mrf.mxu0
  %v276 = vadd.f32 %v68, %v275
  %v277 = vpop.f32.mrf.mxu0
  %278 = vmatprep.mubr.bf16.mxu0 0
  %279 = vmatmul.mubr.bf16.gmra.mxu0 %v138
  %v280 = vpop.f32.mrf.mxu0
  %v281 = vadd.f32 %v68, %v280
  %v282 = vpop.f32.mrf.mxu0
  %v283 = vpop.f32.mrf.mxu0
  %v284 = vadd.f32 %v68, %v283
  %v285 = vpop.f32.mrf.mxu0
  %286 = vmatprep.mubr.bf16.mxu0 0
  %287 = vmatmul.mubr.bf16.gmra.mxu0 %v139
  %v288 = vpop.f32.mrf.mxu0
  %v289 = vadd.f32 %v68, %v288
  %v290 = vpop.f32.mrf.mxu0
  %v291 = vpop.f32.mrf.mxu0
  %v292 = vadd.f32 %v68, %v291
  %v293 = vpop.f32.mrf.mxu0
  %294 = vmatprep.mubr.bf16.mxu0 0
  %295 = vmatmul.mubr.bf16.gmra.mxu0 %v140
  %v296 = vpop.f32.mrf.mxu0
  %v297 = vadd.f32 %v68, %v296
  %v298 = vpop.f32.mrf.mxu0
  %v299 = vpop.f32.mrf.mxu0
  %v300 = vadd.f32 %v68, %v299
  %v301 = vpop.f32.mrf.mxu0
  %302 = vmatprep.mubr.bf16.mxu0 0
  %303 = vmatmul.mubr.bf16.gmra.mxu0 %v141
  %v304 = vpop.f32.mrf.mxu0
  %v305 = vadd.f32 %v68, %v304
  %v306 = vpop.f32.mrf.mxu0
  %v307 = vpop.f32.mrf.mxu0
  %v308 = vadd.f32 %v68, %v307
  %v309 = vpop.f32.mrf.mxu0
  %310 = vmatprep.mubr.bf16.mxu0 0
  %311 = vmatmul.mubr.bf16.gmra.mxu0 %v142
  %v312 = vpop.f32.mrf.mxu0
  %v313 = vadd.f32 %v68, %v312
  %v314 = vpop.f32.mrf.mxu0
  %v315 = vpop.f32.mrf.mxu0
  %v316 = vadd.f32 %v68, %v315
  %v317 = vpop.f32.mrf.mxu0
  %318 = vmatprep.mubr.bf16.mxu0 0
  %319 = vmatmul.mubr.bf16.gmra.mxu0 %v143
  %v320 = vpop.f32.mrf.mxu0
  %v321 = vadd.f32 %v68, %v320
  %v322 = vpop.f32.mrf.mxu0
  %v323 = vpop.f32.mrf.mxu0
  %v324 = vadd.f32 %v68, %v323
  %v325 = vpop.f32.mrf.mxu0
  %326 = vmatprep.mubr.bf16.mxu0 0
  %327 = vmatmul.mubr.bf16.gmra.mxu0 %v144
  %v328 = vpop.f32.mrf.mxu0
  %v329 = vadd.f32 %v68, %v328
  %v330 = vpop.f32.mrf.mxu0
  %v331 = vpop.f32.mrf.mxu0
  %v332 = vadd.f32 %v68, %v331
  %v333 = vpop.f32.mrf.mxu0
  %334 = vmatprep.mubr.bf16.mxu0 0
  %335 = vmatmul.mubr.bf16.gmra.mxu0 %v145
  %v336 = vpop.f32.mrf.mxu0
  %v337 = vadd.f32 %v68, %v336
  %v338 = vpop.f32.mrf.mxu0
  %v339 = vpop.f32.mrf.mxu0
  %v340 = vadd.f32 %v68, %v339
  %v341 = vpop.f32.mrf.mxu0
  %342 = vmatprep.mubr.bf16.mxu0 0
  %343 = vmatmul.mubr.bf16.gmra.mxu0 %v146
  %v344 = vpop.f32.mrf.mxu0
  %v345 = vadd.f32 %v68, %v344
  %v346 = vpop.f32.mrf.mxu0
  %v347 = vpop.f32.mrf.mxu0
  %v348 = vadd.f32 %v68, %v347
  %v349 = vpop.f32.mrf.mxu0
  %350 = vmatprep.mubr.bf16.mxu0 0
  %351 = vmatmul.mubr.bf16.gmra.mxu0 %v147
  %v352 = vpop.f32.mrf.mxu0
  %v353 = vadd.f32 %v68, %v352
  %v354 = vpop.f32.mrf.mxu0
  %v355 = vpop.f32.mrf.mxu0
  %v356 = vadd.f32 %v68, %v355
  %v357 = vpop.f32.mrf.mxu0
  %358 = vmatprep.mubr.bf16.mxu0 0
  %359 = vmatmul.mubr.bf16.gmra.mxu0 %v148
  %v360 = vpop.f32.mrf.mxu0
  %v361 = vadd.f32 %v68, %v360
  %v362 = vpop.f32.mrf.mxu0
  %v363 = vpop.f32.mrf.mxu0
  %v364 = vadd.f32 %v68, %v363
  %v365 = vpop.f32.mrf.mxu0
  %366 = vmatprep.mubr.bf16.mxu0 0
  %367 = vmatmul.mubr.bf16.gmra.mxu0 %v149
  %v368 = vpop.f32.mrf.mxu0
  %v369 = vadd.f32 %v68, %v368
  %v370 = vpop.f32.mrf.mxu0
  %v371 = vpop.f32.mrf.mxu0
  %v372 = vadd.f32 %v68, %v371
  %v373 = vpop.f32.mrf.mxu0
  %374 = vdwg.mxu0
  %375 = vst [vmem:[%s3] sm:$0xff] %v249
  %376 = vst [vmem:[%s3 + $0x8] sm:$0xff] %v252
  %377 = vst [vmem:[%s3 + $0x10] sm:$0xff] %v257
  %378 = vst [vmem:[%s3 + $0x18] sm:$0xff] %v260
  %379 = vst [vmem:[%s3 + $0x20] sm:$0xff] %v265
  %380 = vst [vmem:[%s3 + $0x28] sm:$0xff] %v268
  %381 = vst [vmem:[%s3 + $0x30] sm:$0xff] %v273
  %382 = vst [vmem:[%s3 + $0x38] sm:$0xff] %v276
  %383 = vst [vmem:[%s3 + $0x40] sm:$0xff] %v281
  %384 = vst [vmem:[%s3 + $0x48] sm:$0xff] %v284
  %385 = vst [vmem:[%s3 + $0x50] sm:$0xff] %v289
  %386 = vst [vmem:[%s3 + $0x58] sm:$0xff] %v292
  %387 = vst [vmem:[%s3 + $0x60] sm:$0xff] %v297
  %388 = vst [vmem:[%s3 + $0x68] sm:$0xff] %v300
  %389 = vst [vmem:[%s3 + $0x70] sm:$0xff] %v305
  %390 = vst [vmem:[%s3 + $0x78] sm:$0xff] %v308
  %391 = vst [vmem:[%s3 + $0x80] sm:$0xff] %v313
  %392 = vst [vmem:[%s3 + $0x88] sm:$0xff] %v316
  %393 = vst [vmem:[%s3 + $0x90] sm:$0xff] %v321
  %394 = vst [vmem:[%s3 + $0x98] sm:$0xff] %v324
  %395 = vst [vmem:[%s3 + $0xa0] sm:$0xff] %v329
  %396 = vst [vmem:[%s3 + $0xa8] sm:$0xff] %v332
  %397 = vst [vmem:[%s3 + $0xb0] sm:$0xff] %v337
  %398 = vst [vmem:[%s3 + $0xb8] sm:$0xff] %v340
  %399 = vst [vmem:[%s3 + $0xc0] sm:$0xff] %v345
  %400 = vst [vmem:[%s3 + $0xc8] sm:$0xff] %v348
  %401 = vst [vmem:[%s3 + $0xd0] sm:$0xff] %v353
  %402 = vst [vmem:[%s3 + $0xd8] sm:$0xff] %v356
  %403 = vst [vmem:[%s3 + $0xe0] sm:$0xff] %v361
  %404 = vst [vmem:[%s3 + $0xe8] sm:$0xff] %v364
  %405 = vst [vmem:[%s3 + $0xf0] sm:$0xff] %v369
  %406 = vst [vmem:[%s3 + $0xf8] sm:$0xff] %v372
  // Predicated region
  $region14: #{lm_lstm_forward.3} parent=0 // pred_check
    _
  $region15: #{lm_lstm_forward.3} parent=0 // pred_check_branch
    %408 = sbr.rel (0) target = $region17
  $region16: #{lm_lstm_forward.3} parent=0 // pred_region
    _
  $region17: #{lm_lstm_forward.3} parent=0 // pred_fallthru
    _
  // Predicated region
  $region18: #{lm_lstm_forward.3} parent=0 // pred_check
    _
  $region19: #{lm_lstm_forward.3} parent=0 // pred_check_branch
    %410 = sbr.rel (0) target = $region21
  $region20: #{lm_lstm_forward.3} parent=0 // pred_region
    _
  $region21: #{lm_lstm_forward.3} parent=0 // pred_fallthru
    _

// kernel: lm_lstm_forward.2
$region0: #{lm_lstm_forward.2}
  #allocation0 [shape = 'u32[]', space=smem, size = 0x4, offset = 0x4, fixed_abs, tag = 'smem constant byte address 0x4 - core index']
  #allocation1 [shape = 'u32[144,128]{1,0:T(1,128)}', space=vmem, size = 0x12000, scoped, tag = 'internal scratch']
  #allocation2 [shape = 'f32[16,128]{1,0:T(8,128)}', space=vmem, size = 0x2000, scoped, tag = 'scratch operand']
  #allocation3 [shape = 'f32[16,128]{1,0:T(8,128)}', space=vmem, size = 0x2000, scoped, tag = 'scratch operand']
  #allocation4 [shape = 'f32[16,16,512]{2,1,0:T(8,128)}', space=vmem, size = 0x80000, scoped, tag = 'scratch operand']
  %s0 = inlined_call_operand.vmem [shape: bf16[16,16,128], index: 0, kind: input, shape index: {}]
  %s1 = inlined_call_operand.vmem [shape: bf16[128,512], index: 1, kind: input, shape index: {}]
  %s2 = inlined_call_operand.vmem [shape: bf16[128,512], index: 2, kind: input, shape index: {}]
  %s3 = inlined_call_operand.vmem [shape: f32[1,512], index: 3, kind: input, shape index: {}]
  %s4 = inlined_call_operand.vmem [shape: bf16[16,16,128], index: 4, kind: output, shape index: {}]
  %s5 = sld [smem:[#allocation0]]
  $region30: #{lm_lstm_forward.2} parent=0
    _
  %s7 = ssub.s32 1, %s5
  %s8 = scalar_select 0, %s7, %s5
  // Predicated region
  $region2: #{lm_lstm_forward.2} parent=0 // pred_check
    _
  $region3: #{lm_lstm_forward.2} parent=0 // pred_check_branch
    %10 = sbr.rel (0) target = $region5
  $region4: #{lm_lstm_forward.2} parent=0 // pred_region
    _
  $region5: #{lm_lstm_forward.2} parent=0 // pred_fallthru
    _
  // Predicated region
  $region6: #{lm_lstm_forward.2} parent=0 // pred_check
    _
  $region7: #{lm_lstm_forward.2} parent=0 // pred_check_branch
    %12 = sbr.rel (0) target = $region9
  $region8: #{lm_lstm_forward.2} parent=0 // pred_region
    _
  $region9: #{lm_lstm_forward.2} parent=0 // pred_fallthru
    _
  // Predicated region
  $region10: #{lm_lstm_forward.2} parent=0 // pred_check
    _
  $region11: #{lm_lstm_forward.2} parent=0 // pred_check_branch
    %14 = sbr.rel (0) target = $region13
  $region12: #{lm_lstm_forward.2} parent=0 // pred_region
    _
  $region13: #{lm_lstm_forward.2} parent=0 // pred_fallthru
    _
  // Predicated region
  $region14: #{lm_lstm_forward.2} parent=0 // pred_check
    _
  $region15: #{lm_lstm_forward.2} parent=0 // pred_check_branch
    %16 = sbr.rel (0) target = $region17
  $region16: #{lm_lstm_forward.2} parent=0 // pred_region
    _
  $region17: #{lm_lstm_forward.2} parent=0 // pred_fallthru
    _
  %p18 = scmp.eq.s32.totalorder 0, 0
  // Predicated region
  $region18: #{lm_lstm_forward.2} parent=0 // pred_check
    %p19 = pneg %p18
  $region19: #{lm_lstm_forward.2} parent=0 // pred_check_branch
    %21 = sbr.rel (%p19) target = $region21
  $region20: #{lm_lstm_forward.2} parent=0 // pred_region
    %22 = vst [vmem:[#allocation2] sm:$0xff] 0.0
    %23 = vst [vmem:[#allocation2 + $0x8] sm:$0xff] 0.0
    %24 = vst [vmem:[#allocation3] sm:$0xff] 0.0
    %25 = vst [vmem:[#allocation3 + $0x8] sm:$0xff] 0.0
  $region21: #{lm_lstm_forward.2} parent=0 // pred_fallthru
    _
  %v26 = vld [vmem:[%s0] sm:$0xf]
  %v27 = vld [vmem:[%s0 + $0x4] sm:$0xf]
  %v28 = vld [vmem:[%s0 + $0x8] sm:$0xf]
  %v29 = vld [vmem:[%s0 + $0xc] sm:$0xf]
  %v30 = vld [vmem:[%s0 + $0x10] sm:$0xf]
  %v31 = vld [vmem:[%s0 + $0x14] sm:$0xf]
  %v32 = vld [vmem:[%s0 + $0x18] sm:$0xf]
  %v33 = vld [vmem:[%s0 + $0x1c] sm:$0xf]
  %v34 = vld [vmem:[%s0 + $0x20] sm:$0xf]
  %v35 = vld [vmem:[%s0 + $0x24] sm:$0xf]
  %v36 = vld [vmem:[%s0 + $0x28] sm:$0xf]
  %v37 = vld [vmem:[%s0 + $0x2c] sm:$0xf]
  %v38 = vld [vmem:[%s0 + $0x30] sm:$0xf]
  %v39 = vld [vmem:[%s0 + $0x34] sm:$0xf]
  %v40 = vld [vmem:[%s0 + $0x38] sm:$0xf]
  %v41 = vld [vmem:[%s0 + $0x3c] sm:$0xf]
  %v42 = vld [vmem:[%s0 + $0x40] sm:$0xf]
  %v43 = vld [vmem:[%s0 + $0x44] sm:$0xf]
  %v44 = vld [vmem:[%s0 + $0x48] sm:$0xf]
  %v45 = vld [vmem:[%s0 + $0x4c] sm:$0xf]
  %v46 = vld [vmem:[%s0 + $0x50] sm:$0xf]
  %v47 = vld [vmem:[%s0 + $0x54] sm:$0xf]
  %v48 = vld [vmem:[%s0 + $0x58] sm:$0xf]
  %v49 = vld [vmem:[%s0 + $0x5c] sm:$0xf]
  %v50 = vld [vmem:[%s0 + $0x60] sm:$0xf]
  %v51 = vld [vmem:[%s0 + $0x64] sm:$0xf]
  %v52 = vld [vmem:[%s0 + $0x68] sm:$0xf]
  %v53 = vld [vmem:[%s0 + $0x6c] sm:$0xf]
  %v54 = vld [vmem:[%s0 + $0x70] sm:$0xf]
  %v55 = vld [vmem:[%s0 + $0x74] sm:$0xf]
  %v56 = vld [vmem:[%s0 + $0x78] sm:$0xf]
  %v57 = vld [vmem:[%s0 + $0x7c] sm:$0xf]
  %v58 = vld [vmem:[%s1] sm:$0xff]
  %v59 = vld [vmem:[%s1 + $0x8] sm:$0xff]
  %v60 = vld [vmem:[%s1 + $0x10] sm:$0xff]
  %v61 = vld [vmem:[%s1 + $0x18] sm:$0xff]
  %v62 = vld [vmem:[%s1 + $0x20] sm:$0xff]
  %v63 = vld [vmem:[%s1 + $0x28] sm:$0xff]
  %v64 = vld [vmem:[%s1 + $0x30] sm:$0xff]
  %v65 = vld [vmem:[%s1 + $0x38] sm:$0xff]
  %v66 = vld [vmem:[%s1 + $0x40] sm:$0xff]
  %v67 = vld [vmem:[%s1 + $0x48] sm:$0xff]
  %v68 = vld [vmem:[%s1 + $0x50] sm:$0xff]
  %v69 = vld [vmem:[%s1 + $0x58] sm:$0xff]
  %v70 = vld [vmem:[%s1 + $0x60] sm:$0xff]
  %v71 = vld [vmem:[%s1 + $0x68] sm:$0xff]
  %v72 = vld [vmem:[%s1 + $0x70] sm:$0xff]
  %v73 = vld [vmem:[%s1 + $0x78] sm:$0xff]
  %v74 = vld [vmem:[%s1 + $0x80] sm:$0xff]
  %v75 = vld [vmem:[%s1 + $0x88] sm:$0xff]
  %v76 = vld [vmem:[%s1 + $0x90] sm:$0xff]
  %v77 = vld [vmem:[%s1 + $0x98] sm:$0xff]
  %v78 = vld [vmem:[%s1 + $0xa0] sm:$0xff]
  %v79 = vld [vmem:[%s1 + $0xa8] sm:$0xff]
  %v80 = vld [vmem:[%s1 + $0xb0] sm:$0xff]
  %v81 = vld [vmem:[%s1 + $0xb8] sm:$0xff]
  %v82 = vld [vmem:[%s1 + $0xc0] sm:$0xff]
  %v83 = vld [vmem:[%s1 + $0xc8] sm:$0xff]
  %v84 = vld [vmem:[%s1 + $0xd0] sm:$0xff]
  %v85 = vld [vmem:[%s1 + $0xd8] sm:$0xff]
  %v86 = vld [vmem:[%s1 + $0xe0] sm:$0xff]
  %v87 = vld [vmem:[%s1 + $0xe8] sm:$0xff]
  %v88 = vld [vmem:[%s1 + $0xf0] sm:$0xff]
  %v89 = vld [vmem:[%s1 + $0xf8] sm:$0xff]
  %v90 = vld [vmem:[%s3] sm:$0xf]
  %v92 = vlaneseq
  %v93 = vshrl.u32 %v92, 7
  %v94 = vsub.s32 0, %v93
  %v95 = vrot.slane %v90, %v94
  %v96 = vlaneseq
  %v97 = vshrl.u32 %v96, 7
  %v98 = vsub.s32 1, %v97
  %v99 = vrot.slane %v90, %v98
  %v100 = vlaneseq
  %v101 = vshrl.u32 %v100, 7
  %v102 = vsub.s32 2, %v101
  %v103 = vrot.slane %v90, %v102
  %v104 = vlaneseq
  %v105 = vshrl.u32 %v104, 7
  %v106 = vsub.s32 3, %v105
  %v107 = vrot.slane %v90, %v106
  %v144 = vunpack.c.l.b16 %v26
  %v145 = vunpack.c.l.b16 %v27
  %v146 = vunpack.c.l.b16 %v28
  %v147 = vunpack.c.l.b16 %v29
  %v148 = vunpack.c.l.b16 %v30
  %v149 = vunpack.c.l.b16 %v31
  %v150 = vunpack.c.l.b16 %v32
  %v151 = vunpack.c.l.b16 %v33
  %v152 = vunpack.c.l.b16 %v34
  %v153 = vunpack.c.l.b16 %v35
  %v154 = vunpack.c.l.b16 %v36
  %v155 = vunpack.c.l.b16 %v37
  %v156 = vunpack.c.l.b16 %v38
  %v157 = vunpack.c.l.b16 %v39
  %v158 = vunpack.c.l.b16 %v40
  %v159 = vunpack.c.l.b16 %v41
  %v160 = vunpack.c.l.b16 %v42
  %v161 = vunpack.c.l.b16 %v43
  %v162 = vunpack.c.l.b16 %v44
  %v163 = vunpack.c.l.b16 %v45
  %v164 = vunpack.c.l.b16 %v46
  %v165 = vunpack.c.l.b16 %v47
  %v166 = vunpack.c.l.b16 %v48
  %v167 = vunpack.c.l.b16 %v49
  %v168 = vunpack.c.l.b16 %v50
  %v169 = vunpack.c.l.b16 %v51
  %v170 = vunpack.c.l.b16 %v52
  %v171 = vunpack.c.l.b16 %v53
  %v172 = vunpack.c.l.b16 %v54
  %v173 = vunpack.c.l.b16 %v55
  %v174 = vunpack.c.l.b16 %v56
  %v175 = vunpack.c.l.b16 %v57
  %v176 = vpack.c.b16 %v145, %v144
  %v177 = vpack.c.b16 %v147, %v146
  %v178 = vpack.c.b16 %v149, %v148
  %v179 = vpack.c.b16 %v151, %v150
  %v180 = vpack.c.b16 %v153, %v152
  %v181 = vpack.c.b16 %v155, %v154
  %v182 = vpack.c.b16 %v157, %v156
  %v183 = vpack.c.b16 %v159, %v158
  %v184 = vpack.c.b16 %v161, %v160
  %v185 = vpack.c.b16 %v163, %v162
  %v186 = vpack.c.b16 %v165, %v164
  %v187 = vpack.c.b16 %v167, %v166
  %v188 = vpack.c.b16 %v169, %v168
  %v189 = vpack.c.b16 %v171, %v170
  %v190 = vpack.c.b16 %v173, %v172
  %v191 = vpack.c.b16 %v175, %v174
  %v240 = vunpack.c.l.b16 %v58
  %v241 = vunpack.c.h.b16 %v58
  %v242 = vunpack.c.l.b16 %v59
  %v243 = vunpack.c.h.b16 %v59
  %v244 = vunpack.c.l.b16 %v60
  %v245 = vunpack.c.h.b16 %v60
  %v246 = vunpack.c.l.b16 %v61
  %v247 = vunpack.c.h.b16 %v61
  %v248 = vunpack.c.l.b16 %v62
  %v249 = vunpack.c.h.b16 %v62
  %v250 = vunpack.c.l.b16 %v63
  %v251 = vunpack.c.h.b16 %v63
  %v252 = vunpack.c.l.b16 %v64
  %v253 = vunpack.c.h.b16 %v64
  %v254 = vunpack.c.l.b16 %v65
  %v255 = vunpack.c.h.b16 %v65
  %v256 = vunpack.c.l.b16 %v66
  %v257 = vunpack.c.h.b16 %v66
  %v258 = vunpack.c.l.b16 %v67
  %v259 = vunpack.c.h.b16 %v67
  %v260 = vunpack.c.l.b16 %v68
  %v261 = vunpack.c.h.b16 %v68
  %v262 = vunpack.c.l.b16 %v69
  %v263 = vunpack.c.h.b16 %v69
  %v264 = vunpack.c.l.b16 %v70
  %v265 = vunpack.c.h.b16 %v70
  %v266 = vunpack.c.l.b16 %v71
  %v267 = vunpack.c.h.b16 %v71
  %v268 = vunpack.c.l.b16 %v72
  %v269 = vunpack.c.h.b16 %v72
  %v270 = vunpack.c.l.b16 %v73
  %v271 = vunpack.c.h.b16 %v73
  %v272 = vunpack.c.l.b16 %v74
  %v273 = vunpack.c.h.b16 %v74
  %v274 = vunpack.c.l.b16 %v75
  %v275 = vunpack.c.h.b16 %v75
  %v276 = vunpack.c.l.b16 %v76
  %v277 = vunpack.c.h.b16 %v76
  %v278 = vunpack.c.l.b16 %v77
  %v279 = vunpack.c.h.b16 %v77
  %v280 = vunpack.c.l.b16 %v78
  %v281 = vunpack.c.h.b16 %v78
  %v282 = vunpack.c.l.b16 %v79
  %v283 = vunpack.c.h.b16 %v79
  %v284 = vunpack.c.l.b16 %v80
  %v285 = vunpack.c.h.b16 %v80
  %v286 = vunpack.c.l.b16 %v81
  %v287 = vunpack.c.h.b16 %v81
  %v288 = vunpack.c.l.b16 %v82
  %v289 = vunpack.c.h.b16 %v82
  %v290 = vunpack.c.l.b16 %v83
  %v291 = vunpack.c.h.b16 %v83
  %v292 = vunpack.c.l.b16 %v84
  %v293 = vunpack.c.h.b16 %v84
  %v294 = vunpack.c.l.b16 %v85
  %v295 = vunpack.c.h.b16 %v85
  %v296 = vunpack.c.l.b16 %v86
  %v297 = vunpack.c.h.b16 %v86
  %v298 = vunpack.c.l.b16 %v87
  %v299 = vunpack.c.h.b16 %v87
  %v300 = vunpack.c.l.b16 %v88
  %v301 = vunpack.c.h.b16 %v88
  %v302 = vunpack.c.l.b16 %v89
  %v303 = vunpack.c.h.b16 %v89
  %v304 = vpack.c.b16 %v244, %v240
  %v305 = vpack.c.b16 %v245, %v241
  %v306 = vpack.c.b16 %v246, %v242
  %v307 = vpack.c.b16 %v247, %v243
  %v308 = vpack.c.b16 %v252, %v248
  %v309 = vpack.c.b16 %v253, %v249
  %v310 = vpack.c.b16 %v254, %v250
  %v311 = vpack.c.b16 %v255, %v251
  %v312 = vpack.c.b16 %v260, %v256
  %v313 = vpack.c.b16 %v261, %v257
  %v314 = vpack.c.b16 %v262, %v258
  %v315 = vpack.c.b16 %v263, %v259
  %v316 = vpack.c.b16 %v268, %v264
  %v317 = vpack.c.b16 %v269, %v265
  %v318 = vpack.c.b16 %v270, %v266
  %v319 = vpack.c.b16 %v271, %v267
  %v320 = vpack.c.b16 %v276, %v272
  %v321 = vpack.c.b16 %v277, %v273
  %v322 = vpack.c.b16 %v278, %v274
  %v323 = vpack.c.b16 %v279, %v275
  %v324 = vpack.c.b16 %v284, %v280
  %v325 = vpack.c.b16 %v285, %v281
  %v326 = vpack.c.b16 %v286, %v282
  %v327 = vpack.c.b16 %v287, %v283
  %v328 = vpack.c.b16 %v292, %v288
  %v329 = vpack.c.b16 %v293, %v289
  %v330 = vpack.c.b16 %v294, %v290
  %v331 = vpack.c.b16 %v295, %v291
  %v332 = vpack.c.b16 %v300, %v296
  %v333 = vpack.c.b16 %v301, %v297
  %v334 = vpack.c.b16 %v302, %v298
  %v335 = vpack.c.b16 %v303, %v299
  %368 = vmatprep.subr.bf16.mxu0 %v333
  %369 = vmatpush1.bf16.msra.mxu0 %v332
  %370 = vmatprep.subr.bf16.mxu0 %v329
  %371 = vmatpush1.bf16.msra.mxu0 %v328
  %372 = vmatprep.subr.bf16.mxu0 %v325
  %373 = vmatpush1.bf16.msra.mxu0 %v324
  %374 = vmatprep.subr.bf16.mxu0 %v321
  %375 = vmatpush1.bf16.msra.mxu0 %v320
  %376 = vmatprep.subr.bf16.mxu0 %v317
  %377 = vmatpush1.bf16.msra.mxu0 %v316
  %378 = vmatprep.subr.bf16.mxu0 %v313
  %379 = vmatpush1.bf16.msra.mxu0 %v312
  %380 = vmatprep.subr.bf16.mxu0 %v309
  %381 = vmatpush1.bf16.msra.mxu0 %v308
  %382 = vmatprep.subr.bf16.mxu0 %v305
  %383 = vmatpush1.bf16.msra.mxu0 %v304
  %384 = vmatprep.subr.bf16.mxu0 0
  %385 = vmatpush2.bf16.msra.mxu0 0
  %386 = vmatprep.subr.bf16.mxu0 0
  %387 = vmatpush2.bf16.msra.mxu0 0
  %388 = vmatprep.subr.bf16.mxu0 0
  %389 = vmatpush2.bf16.msra.mxu0 0
  %390 = vmatprep.subr.bf16.mxu0 0
  %391 = vmatpush2.bf16.msra.mxu0 0
  %392 = vmatprep.subr.bf16.mxu0 0
  %393 = vmatpush2.bf16.msra.mxu0 0
  %394 = vmatprep.subr.bf16.mxu0 0
  %395 = vmatpush2.bf16.msra.mxu0 0
  %396 = vmatprep.subr.bf16.mxu0 0
  %397 = vmatpush2.bf16.msra.mxu0 0
  %398 = vmatprep.subr.bf16.mxu0 0
  %399 = vmatpush2.bf16.msra.mxu0 0
  %400 = vmatprep.mubr.bf16.mxu0 0
  %401 = vmatmul.mubr.bf16.gmra.mxu0 %v176
  %v402 = vpop.f32.mrf.mxu0
  %v403 = vadd.f32 %v95, %v402
  %v404 = vpop.f32.mrf.mxu0
  %v405 = vadd.f32 %v99, %v404
  %v406 = vpop.f32.mrf.mxu0
  %v407 = vadd.f32 %v95, %v406
  %v408 = vpop.f32.mrf.mxu0
  %v409 = vadd.f32 %v99, %v408
  %410 = vmatprep.mubr.bf16.mxu0 0
  %411 = vmatmul.mubr.bf16.gmra.mxu0 %v177
  %v412 = vpop.f32.mrf.mxu0
  %v413 = vadd.f32 %v95, %v412
  %v414 = vpop.f32.mrf.mxu0
  %v415 = vadd.f32 %v99, %v414
  %v416 = vpop.f32.mrf.mxu0
  %v417 = vadd.f32 %v95, %v416
  %v418 = vpop.f32.mrf.mxu0
  %v419 = vadd.f32 %v99, %v418
  %420 = vmatprep.mubr.bf16.mxu0 0
  %421 = vmatmul.mubr.bf16.gmra.mxu0 %v178
  %v422 = vpop.f32.mrf.mxu0
  %v423 = vadd.f32 %v95, %v422
  %v424 = vpop.f32.mrf.mxu0
  %v425 = vadd.f32 %v99, %v424
  %v426 = vpop.f32.mrf.mxu0
  %v427 = vadd.f32 %v95, %v426
  %v428 = vpop.f32.mrf.mxu0
  %v429 = vadd.f32 %v99, %v428
  %430 = vmatprep.mubr.bf16.mxu0 0
  %431 = vmatmul.mubr.bf16.gmra.mxu0 %v179
  %v432 = vpop.f32.mrf.mxu0
  %v433 = vadd.f32 %v95, %v432
  %v434 = vpop.f32.mrf.mxu0
  %v435 = vadd.f32 %v99, %v434
  %v436 = vpop.f32.mrf.mxu0
  %v437 = vadd.f32 %v95, %v436
  %v438 = vpop.f32.mrf.mxu0
  %v439 = vadd.f32 %v99, %v438
  %440 = vmatprep.mubr.bf16.mxu0 0
  %441 = vmatmul.mubr.bf16.gmra.mxu0 %v180
  %v442 = vpop.f32.mrf.mxu0
  %v443 = vadd.f32 %v95, %v442
  %v444 = vpop.f32.mrf.mxu0
  %v445 = vadd.f32 %v99, %v444
  %v446 = vpop.f32.mrf.mxu0
  %v447 = vadd.f32 %v95, %v446
  %v448 = vpop.f32.mrf.mxu0
  %v449 = vadd.f32 %v99, %v448
  %450 = vmatprep.mubr.bf16.mxu0 0
  %451 = vmatmul.mubr.bf16.gmra.mxu0 %v181
  %v452 = vpop.f32.mrf.mxu0
  %v453 = vadd.f32 %v95, %v452
  %v454 = vpop.f32.mrf.mxu0
  %v455 = vadd.f32 %v99, %v454
  %v456 = vpop.f32.mrf.mxu0
  %v457 = vadd.f32 %v95, %v456
  %v458 = vpop.f32.mrf.mxu0
  %v459 = vadd.f32 %v99, %v458
  %460 = vmatprep.mubr.bf16.mxu0 0
  %461 = vmatmul.mubr.bf16.gmra.mxu0 %v182
  %v462 = vpop.f32.mrf.mxu0
  %v463 = vadd.f32 %v95, %v462
  %v464 = vpop.f32.mrf.mxu0
  %v465 = vadd.f32 %v99, %v464
  %v466 = vpop.f32.mrf.mxu0
  %v467 = vadd.f32 %v95, %v466
  %v468 = vpop.f32.mrf.mxu0
  %v469 = vadd.f32 %v99, %v468
  %470 = vmatprep.mubr.bf16.mxu0 0
  %471 = vmatmul.mubr.bf16.gmra.mxu0 %v183
  %v472 = vpop.f32.mrf.mxu0
  %v473 = vadd.f32 %v95, %v472
  %v474 = vpop.f32.mrf.mxu0
  %v475 = vadd.f32 %v99, %v474
  %v476 = vpop.f32.mrf.mxu0
  %v477 = vadd.f32 %v95, %v476
  %v478 = vpop.f32.mrf.mxu0
  %v479 = vadd.f32 %v99, %v478
  %480 = vmatprep.mubr.bf16.mxu0 0
  %481 = vmatmul.mubr.bf16.gmra.mxu0 %v184
  %v482 = vpop.f32.mrf.mxu0
  %v483 = vadd.f32 %v95, %v482
  %v484 = vpop.f32.mrf.mxu0
  %v485 = vadd.f32 %v99, %v484
  %v486 = vpop.f32.mrf.mxu0
  %v487 = vadd.f32 %v95, %v486
  %v488 = vpop.f32.mrf.mxu0
  %v489 = vadd.f32 %v99, %v488
  %490 = vmatprep.mubr.bf16.mxu0 0
  %491 = vmatmul.mubr.bf16.gmra.mxu0 %v185
  %v492 = vpop.f32.mrf.mxu0
  %v493 = vadd.f32 %v95, %v492
  %v494 = vpop.f32.mrf.mxu0
  %v495 = vadd.f32 %v99, %v494
  %v496 = vpop.f32.mrf.mxu0
  %v497 = vadd.f32 %v95, %v496
  %v498 = vpop.f32.mrf.mxu0
  %v499 = vadd.f32 %v99, %v498
  %500 = vmatprep.mubr.bf16.mxu0 0
  %501 = vmatmul.mubr.bf16.gmra.mxu0 %v186
  %v502 = vpop.f32.mrf.mxu0
  %v503 = vadd.f32 %v95, %v502
  %v504 = vpop.f32.mrf.mxu0
  %v505 = vadd.f32 %v99, %v504
  %v506 = vpop.f32.mrf.mxu0
  %v507 = vadd.f32 %v95, %v506
  %v508 = vpop.f32.mrf.mxu0
  %v509 = vadd.f32 %v99, %v508
  %510 = vmatprep.mubr.bf16.mxu0 0
  %511 = vmatmul.mubr.bf16.gmra.mxu0 %v187
  %v512 = vpop.f32.mrf.mxu0
  %v513 = vadd.f32 %v95, %v512
  %v514 = vpop.f32.mrf.mxu0
  %v515 = vadd.f32 %v99, %v514
  %v516 = vpop.f32.mrf.mxu0
  %v517 = vadd.f32 %v95, %v516
  %v518 = vpop.f32.mrf.mxu0
  %v519 = vadd.f32 %v99, %v518
  %520 = vmatprep.mubr.bf16.mxu0 0
  %521 = vmatmul.mubr.bf16.gmra.mxu0 %v188
  %v522 = vpop.f32.mrf.mxu0
  %v523 = vadd.f32 %v95, %v522
  %v524 = vpop.f32.mrf.mxu0
  %v525 = vadd.f32 %v99, %v524
  %v526 = vpop.f32.mrf.mxu0
  %v527 = vadd.f32 %v95, %v526
  %v528 = vpop.f32.mrf.mxu0
  %v529 = vadd.f32 %v99, %v528
  %530 = vmatprep.mubr.bf16.mxu0 0
  %531 = vmatmul.mubr.bf16.gmra.mxu0 %v189
  %v532 = vpop.f32.mrf.mxu0
  %v533 = vadd.f32 %v95, %v532
  %v534 = vpop.f32.mrf.mxu0
  %v535 = vadd.f32 %v99, %v534
  %v536 = vpop.f32.mrf.mxu0
  %v537 = vadd.f32 %v95, %v536
  %v538 = vpop.f32.mrf.mxu0
  %v539 = vadd.f32 %v99, %v538
  %540 = vmatprep.mubr.bf16.mxu0 0
  %541 = vmatmul.mubr.bf16.gmra.mxu0 %v190
  %v542 = vpop.f32.mrf.mxu0
  %v543 = vadd.f32 %v95, %v542
  %v544 = vpop.f32.mrf.mxu0
  %v545 = vadd.f32 %v99, %v544
  %v546 = vpop.f32.mrf.mxu0
  %v547 = vadd.f32 %v95, %v546
  %v548 = vpop.f32.mrf.mxu0
  %v549 = vadd.f32 %v99, %v548
  %550 = vmatprep.mubr.bf16.mxu0 0
  %551 = vmatmul.mubr.bf16.gmra.mxu0 %v191
  %v552 = vpop.f32.mrf.mxu0
  %v553 = vadd.f32 %v95, %v552
  %v554 = vpop.f32.mrf.mxu0
  %v555 = vadd.f32 %v99, %v554
  %v556 = vpop.f32.mrf.mxu0
  %v557 = vadd.f32 %v95, %v556
  %v558 = vpop.f32.mrf.mxu0
  %v559 = vadd.f32 %v99, %v558
  %560 = vdwg.mxu0
  %561 = vmatprep.subr.bf16.mxu0 %v335
  %562 = vmatpush1.bf16.msra.mxu0 %v334
  %563 = vmatprep.subr.bf16.mxu0 %v331
  %564 = vmatpush1.bf16.msra.mxu0 %v330
  %565 = vmatprep.subr.bf16.mxu0 %v327
  %566 = vmatpush1.bf16.msra.mxu0 %v326
  %567 = vmatprep.subr.bf16.mxu0 %v323
  %568 = vmatpush1.bf16.msra.mxu0 %v322
  %569 = vmatprep.subr.bf16.mxu0 %v319
  %570 = vmatpush1.bf16.msra.mxu0 %v318
  %571 = vmatprep.subr.bf16.mxu0 %v315
  %572 = vmatpush1.bf16.msra.mxu0 %v314
  %573 = vmatprep.subr.bf16.mxu0 %v311
  %574 = vmatpush1.bf16.msra.mxu0 %v310
  %575 = vmatprep.subr.bf16.mxu0 %v307
  %576 = vmatpush1.bf16.msra.mxu0 %v306
  %577 = vmatprep.subr.bf16.mxu0 0
  %578 = vmatpush2.bf16.msra.mxu0 0
  %579 = vmatprep.subr.bf16.mxu0 0
  %580 = vmatpush2.bf16.msra.mxu0 0
  %581 = vmatprep.subr.bf16.mxu0 0
  %582 = vmatpush2.bf16.msra.mxu0 0
  %583 = vmatprep.subr.bf16.mxu0 0
  %584 = vmatpush2.bf16.msra.mxu0 0
  %585 = vmatprep.subr.bf16.mxu0 0
  %586 = vmatpush2.bf16.msra.mxu0 0
  %587 = vmatprep.subr.bf16.mxu0 0
  %588 = vmatpush2.bf16.msra.mxu0 0
  %589 = vmatprep.subr.bf16.mxu0 0
  %590 = vmatpush2.bf16.msra.mxu0 0
  %591 = vmatprep.subr.bf16.mxu0 0
  %592 = vmatpush2.bf16.msra.mxu0 0
  %593 = vmatprep.mubr.bf16.mxu0 0
  %594 = vmatmul.mubr.bf16.gmra.mxu0 %v176
  %v595 = vpop.f32.mrf.mxu0
  %v596 = vadd.f32 %v103, %v595
  %v597 = vpop.f32.mrf.mxu0
  %v598 = vadd.f32 %v107, %v597
  %v599 = vpop.f32.mrf.mxu0
  %v600 = vadd.f32 %v103, %v599
  %v601 = vpop.f32.mrf.mxu0
  %v602 = vadd.f32 %v107, %v601
  %603 = vmatprep.mubr.bf16.mxu0 0
  %604 = vmatmul.mubr.bf16.gmra.mxu0 %v177
  %v605 = vpop.f32.mrf.mxu0
  %v606 = vadd.f32 %v103, %v605
  %v607 = vpop.f32.mrf.mxu0
  %v608 = vadd.f32 %v107, %v607
  %v609 = vpop.f32.mrf.mxu0
  %v610 = vadd.f32 %v103, %v609
  %v611 = vpop.f32.mrf.mxu0
  %v612 = vadd.f32 %v107, %v611
  %613 = vmatprep.mubr.bf16.mxu0 0
  %614 = vmatmul.mubr.bf16.gmra.mxu0 %v178
  %v615 = vpop.f32.mrf.mxu0
  %v616 = vadd.f32 %v103, %v615
  %v617 = vpop.f32.mrf.mxu0
  %v618 = vadd.f32 %v107, %v617
  %v619 = vpop.f32.mrf.mxu0
  %v620 = vadd.f32 %v103, %v619
  %v621 = vpop.f32.mrf.mxu0
  %v622 = vadd.f32 %v107, %v621
  %623 = vmatprep.mubr.bf16.mxu0 0
  %624 = vmatmul.mubr.bf16.gmra.mxu0 %v179
  %v625 = vpop.f32.mrf.mxu0
  %v626 = vadd.f32 %v103, %v625
  %v627 = vpop.f32.mrf.mxu0
  %v628 = vadd.f32 %v107, %v627
  %v629 = vpop.f32.mrf.mxu0
  %v630 = vadd.f32 %v103, %v629
  %v631 = vpop.f32.mrf.mxu0
  %v632 = vadd.f32 %v107, %v631
  %633 = vmatprep.mubr.bf16.mxu0 0
  %634 = vmatmul.mubr.bf16.gmra.mxu0 %v180
  %v635 = vpop.f32.mrf.mxu0
  %v636 = vadd.f32 %v103, %v635
  %v637 = vpop.f32.mrf.mxu0
  %v638 = vadd.f32 %v107, %v637
  %v639 = vpop.f32.mrf.mxu0
  %v640 = vadd.f32 %v103, %v639
  %v641 = vpop.f32.mrf.mxu0
  %v642 = vadd.f32 %v107, %v641
  %643 = vmatprep.mubr.bf16.mxu0 0
  %644 = vmatmul.mubr.bf16.gmra.mxu0 %v181
  %v645 = vpop.f32.mrf.mxu0
  %v646 = vadd.f32 %v103, %v645
  %v647 = vpop.f32.mrf.mxu0
  %v648 = vadd.f32 %v107, %v647
  %v649 = vpop.f32.mrf.mxu0
  %v650 = vadd.f32 %v103, %v649
  %v651 = vpop.f32.mrf.mxu0
  %v652 = vadd.f32 %v107, %v651
  %653 = vmatprep.mubr.bf16.mxu0 0
  %654 = vmatmul.mubr.bf16.gmra.mxu0 %v182
  %v655 = vpop.f32.mrf.mxu0
  %v656 = vadd.f32 %v103, %v655
  %v657 = vpop.f32.mrf.mxu0
  %v658 = vadd.f32 %v107, %v657
  %v659 = vpop.f32.mrf.mxu0
  %v660 = vadd.f32 %v103, %v659
  %v661 = vpop.f32.mrf.mxu0
  %v662 = vadd.f32 %v107, %v661
  %663 = vmatprep.mubr.bf16.mxu0 0
  %664 = vmatmul.mubr.bf16.gmra.mxu0 %v183
  %v665 = vpop.f32.mrf.mxu0
  %v666 = vadd.f32 %v103, %v665
  %v667 = vpop.f32.mrf.mxu0
  %v668 = vadd.f32 %v107, %v667
  %v669 = vpop.f32.mrf.mxu0
  %v670 = vadd.f32 %v103, %v669
  %v671 = vpop.f32.mrf.mxu0
  %v672 = vadd.f32 %v107, %v671
  %673 = vmatprep.mubr.bf16.mxu0 0
  %674 = vmatmul.mubr.bf16.gmra.mxu0 %v184
  %v675 = vpop.f32.mrf.mxu0
  %v676 = vadd.f32 %v103, %v675
  %v677 = vpop.f32.mrf.mxu0
  %v678 = vadd.f32 %v107, %v677
  %v679 = vpop.f32.mrf.mxu0
  %v680 = vadd.f32 %v103, %v679
  %v681 = vpop.f32.mrf.mxu0
  %v682 = vadd.f32 %v107, %v681
  %683 = vmatprep.mubr.bf16.mxu0 0
  %684 = vmatmul.mubr.bf16.gmra.mxu0 %v185
  %v685 = vpop.f32.mrf.mxu0
  %v686 = vadd.f32 %v103, %v685
  %v687 = vpop.f32.mrf.mxu0
  %v688 = vadd.f32 %v107, %v687
  %v689 = vpop.f32.mrf.mxu0
  %v690 = vadd.f32 %v103, %v689
  %v691 = vpop.f32.mrf.mxu0
  %v692 = vadd.f32 %v107, %v691
  %693 = vmatprep.mubr.bf16.mxu0 0
  %694 = vmatmul.mubr.bf16.gmra.mxu0 %v186
  %v695 = vpop.f32.mrf.mxu0
  %v696 = vadd.f32 %v103, %v695
  %v697 = vpop.f32.mrf.mxu0
  %v698 = vadd.f32 %v107, %v697
  %v699 = vpop.f32.mrf.mxu0
  %v700 = vadd.f32 %v103, %v699
  %v701 = vpop.f32.mrf.mxu0
  %v702 = vadd.f32 %v107, %v701
  %703 = vmatprep.mubr.bf16.mxu0 0
  %704 = vmatmul.mubr.bf16.gmra.mxu0 %v187
  %v705 = vpop.f32.mrf.mxu0
  %v706 = vadd.f32 %v103, %v705
  %v707 = vpop.f32.mrf.mxu0
  %v708 = vadd.f32 %v107, %v707
  %v709 = vpop.f32.mrf.mxu0
  %v710 = vadd.f32 %v103, %v709
  %v711 = vpop.f32.mrf.mxu0
  %v712 = vadd.f32 %v107, %v711
  %713 = vmatprep.mubr.bf16.mxu0 0
  %714 = vmatmul.mubr.bf16.gmra.mxu0 %v188
  %v715 = vpop.f32.mrf.mxu0
  %v716 = vadd.f32 %v103, %v715
  %v717 = vpop.f32.mrf.mxu0
  %v718 = vadd.f32 %v107, %v717
  %v719 = vpop.f32.mrf.mxu0
  %v720 = vadd.f32 %v103, %v719
  %v721 = vpop.f32.mrf.mxu0
  %v722 = vadd.f32 %v107, %v721
  %723 = vmatprep.mubr.bf16.mxu0 0
  %724 = vmatmul.mubr.bf16.gmra.mxu0 %v189
  %v725 = vpop.f32.mrf.mxu0
  %v726 = vadd.f32 %v103, %v725
  %v727 = vpop.f32.mrf.mxu0
  %v728 = vadd.f32 %v107, %v727
  %v729 = vpop.f32.mrf.mxu0
  %v730 = vadd.f32 %v103, %v729
  %v731 = vpop.f32.mrf.mxu0
  %v732 = vadd.f32 %v107, %v731
  %733 = vmatprep.mubr.bf16.mxu0 0
  %734 = vmatmul.mubr.bf16.gmra.mxu0 %v190
  %v735 = vpop.f32.mrf.mxu0
  %v736 = vadd.f32 %v103, %v735
  %v737 = vpop.f32.mrf.mxu0
  %v738 = vadd.f32 %v107, %v737
  %v739 = vpop.f32.mrf.mxu0
  %v740 = vadd.f32 %v103, %v739
  %v741 = vpop.f32.mrf.mxu0
  %v742 = vadd.f32 %v107, %v741
  %743 = vmatprep.mubr.bf16.mxu0 0
  %744 = vmatmul.mubr.bf16.gmra.mxu0 %v191
  %v745 = vpop.f32.mrf.mxu0
  %v746 = vadd.f32 %v103, %v745
  %v747 = vpop.f32.mrf.mxu0
  %v748 = vadd.f32 %v107, %v747
  %v749 = vpop.f32.mrf.mxu0
  %v750 = vadd.f32 %v103, %v749
  %v751 = vpop.f32.mrf.mxu0
  %v752 = vadd.f32 %v107, %v751
  %753 = vdwg.mxu0
  %754 = vst [vmem:[#allocation4] sm:$0xff] %v403
  %755 = vst [vmem:[#allocation4 + $0x8] sm:$0xff] %v405
  %756 = vst [vmem:[#allocation4 + $0x10] sm:$0xff] %v596
  %757 = vst [vmem:[#allocation4 + $0x18] sm:$0xff] %v598
  %758 = vst [vmem:[#allocation4 + $0x20] sm:$0xff] %v407
  %759 = vst [vmem:[#allocation4 + $0x28] sm:$0xff] %v409
  %760 = vst [vmem:[#allocation4 + $0x30] sm:$0xff] %v600
  %761 = vst [vmem:[#allocation4 + $0x38] sm:$0xff] %v602
  %762 = vst [vmem:[#allocation4 + $0x40] sm:$0xff] %v413
  %763 = vst [vmem:[#allocation4 + $0x48] sm:$0xff] %v415
  %764 = vst [vmem:[#allocation4 + $0x50] sm:$0xff] %v606
  %765 = vst [vmem:[#allocation4 + $0x58] sm:$0xff] %v608
  %766 = vst [vmem:[#allocation4 + $0x60] sm:$0xff] %v417
  %767 = vst [vmem:[#allocation4 + $0x68] sm:$0xff] %v419
  %768 = vst [vmem:[#allocation4 + $0x70] sm:$0xff] %v610
  %769 = vst [vmem:[#allocation4 + $0x78] sm:$0xff] %v612
  %770 = vst [vmem:[#allocation4 + $0x80] sm:$0xff] %v423
  %771 = vst [vmem:[#allocation4 + $0x88] sm:$0xff] %v425
  %772 = vst [vmem:[#allocation4 + $0x90] sm:$0xff] %v616
  %773 = vst [vmem:[#allocation4 + $0x98] sm:$0xff] %v618
  %774 = vst [vmem:[#allocation4 + $0xa0] sm:$0xff] %v427
  %775 = vst [vmem:[#allocation4 + $0xa8] sm:$0xff] %v429
  %776 = vst [vmem:[#allocation4 + $0xb0] sm:$0xff] %v620
  %777 = vst [vmem:[#allocation4 + $0xb8] sm:$0xff] %v622
  %778 = vst [vmem:[#allocation4 + $0xc0] sm:$0xff] %v433
  %779 = vst [vmem:[#allocation4 + $0xc8] sm:$0xff] %v435
  %780 = vst [vmem:[#allocation4 + $0xd0] sm:$0xff] %v626
  %781 = vst [vmem:[#allocation4 + $0xd8] sm:$0xff] %v628
  %782 = vst [vmem:[#allocation4 + $0xe0] sm:$0xff] %v437
  %783 = vst [vmem:[#allocation4 + $0xe8] sm:$0xff] %v439
  %784 = vst [vmem:[#allocation4 + $0xf0] sm:$0xff] %v630
  %785 = vst [vmem:[#allocation4 + $0xf8] sm:$0xff] %v632
  %786 = vst [vmem:[#allocation4 + $0x100] sm:$0xff] %v443
  %787 = vst [vmem:[#allocation4 + $0x108] sm:$0xff] %v445
  %788 = vst [vmem:[#allocation4 + $0x110] sm:$0xff] %v636
  %789 = vst [vmem:[#allocation4 + $0x118] sm:$0xff] %v638
  %790 = vst [vmem:[#allocation4 + $0x120] sm:$0xff] %v447
  %791 = vst [vmem:[#allocation4 + $0x128] sm:$0xff] %v449
  %792 = vst [vmem:[#allocation4 + $0x130] sm:$0xff] %v640
  %793 = vst [vmem:[#allocation4 + $0x138] sm:$0xff] %v642
  %794 = vst [vmem:[#allocation4 + $0x140] sm:$0xff] %v453
  %795 = vst [vmem:[#allocation4 + $0x148] sm:$0xff] %v455
  %796 = vst [vmem:[#allocation4 + $0x150] sm:$0xff] %v646
  %797 = vst [vmem:[#allocation4 + $0x158] sm:$0xff] %v648
  %798 = vst [vmem:[#allocation4 + $0x160] sm:$0xff] %v457
  %799 = vst [vmem:[#allocation4 + $0x168] sm:$0xff] %v459
  %800 = vst [vmem:[#allocation4 + $0x170] sm:$0xff] %v650
  %801 = vst [vmem:[#allocation4 + $0x178] sm:$0xff] %v652
  %802 = vst [vmem:[#allocation4 + $0x180] sm:$0xff] %v463
  %803 = vst [vmem:[#allocation4 + $0x188] sm:$0xff] %v465
  %804 = vst [vmem:[#allocation4 + $0x190] sm:$0xff] %v656
  %805 = vst [vmem:[#allocation4 + $0x198] sm:$0xff] %v658
  %806 = vst [vmem:[#allocation4 + $0x1a0] sm:$0xff] %v467
  %807 = vst [vmem:[#allocation4 + $0x1a8] sm:$0xff] %v469
  %808 = vst [vmem:[#allocation4 + $0x1b0] sm:$0xff] %v660
  %809 = vst [vmem:[#allocation4 + $0x1b8] sm:$0xff] %v662
  %810 = vst [vmem:[#allocation4 + $0x1c0] sm:$0xff] %v473
  %811 = vst [vmem:[#allocation4 + $0x1c8] sm:$0xff] %v475
  %812 = vst [vmem:[#allocation4 + $0x1d0] sm:$0xff] %v666
  %813 = vst [vmem:[#allocation4 + $0x1d8] sm:$0xff] %v668
  %814 = vst [vmem:[#allocation4 + $0x1e0] sm:$0xff] %v477
  %815 = vst [vmem:[#allocation4 + $0x1e8] sm:$0xff] %v479
  %816 = vst [vmem:[#allocation4 + $0x1f0] sm:$0xff] %v670
  %817 = vst [vmem:[#allocation4 + $0x1f8] sm:$0xff] %v672
  %818 = vst [vmem:[#allocation4 + $0x200] sm:$0xff] %v483
  %819 = vst [vmem:[#allocation4 + $0x208] sm:$0xff] %v485
  %820 = vst [vmem:[#allocation4 + $0x210] sm:$0xff] %v676
  %821 = vst [vmem:[#allocation4 + $0x218] sm:$0xff] %v678
  %822 = vst [vmem:[#allocation4 + $0x220] sm:$0xff] %v487
  %823 = vst [vmem:[#allocation4 + $0x228] sm:$0xff] %v489
  %824 = vst [vmem:[#allocation4 + $0x230] sm:$0xff] %v680
  %825 = vst [vmem:[#allocation4 + $0x238] sm:$0xff] %v682
  %826 = vst [vmem:[#allocation4 + $0x240] sm:$0xff] %v493
  %827 = vst [vmem:[#allocation4 + $0x248] sm:$0xff] %v495
  %828 = vst [vmem:[#allocation4 + $0x250] sm:$0xff] %v686
  %829 = vst [vmem:[#allocation4 + $0x258] sm:$0xff] %v688
  %830 = vst [vmem:[#allocation4 + $0x260] sm:$0xff] %v497
  %831 = vst [vmem:[#allocation4 + $0x268] sm:$0xff] %v499
  %832 = vst [vmem:[#allocation4 + $0x270] sm:$0xff] %v690
  %833 = vst [vmem:[#allocation4 + $0x278] sm:$0xff] %v692
  %834 = vst [vmem:[#allocation4 + $0x280] sm:$0xff] %v503
  %835 = vst [vmem:[#allocation4 + $0x288] sm:$0xff] %v505
  %836 = vst [vmem:[#allocation4 + $0x290] sm:$0xff] %v696
  %837 = vst [vmem:[#allocation4 + $0x298] sm:$0xff] %v698
  %838 = vst [vmem:[#allocation4 + $0x2a0] sm:$0xff] %v507
  %839 = vst [vmem:[#allocation4 + $0x2a8] sm:$0xff] %v509
  %840 = vst [vmem:[#allocation4 + $0x2b0] sm:$0xff] %v700
  %841 = vst [vmem:[#allocation4 + $0x2b8] sm:$0xff] %v702
  %842 = vst [vmem:[#allocation4 + $0x2c0] sm:$0xff] %v513
  %843 = vst [vmem:[#allocation4 + $0x2c8] sm:$0xff] %v515
  %844 = vst [vmem:[#allocation4 + $0x2d0] sm:$0xff] %v706
  %845 = vst [vmem:[#allocation4 + $0x2d8] sm:$0xff] %v708
  %846 = vst [vmem:[#allocation4 + $0x2e0] sm:$0xff] %v517
  %847 = vst [vmem:[#allocation4 + $0x2e8] sm:$0xff] %v519
  %848 = vst [vmem:[#allocation4 + $0x2f0] sm:$0xff] %v710
  %849 = vst [vmem:[#allocation4 + $0x2f8] sm:$0xff] %v712
  %850 = vst [vmem:[#allocation4 + $0x300] sm:$0xff] %v523
  %851 = vst [vmem:[#allocation4 + $0x308] sm:$0xff] %v525
  %852 = vst [vmem:[#allocation4 + $0x310] sm:$0xff] %v716
  %853 = vst [vmem:[#allocation4 + $0x318] sm:$0xff] %v718
  %854 = vst [vmem:[#allocation4 + $0x320] sm:$0xff] %v527
  %855 = vst [vmem:[#allocation4 + $0x328] sm:$0xff] %v529
  %856 = vst [vmem:[#allocation4 + $0x330] sm:$0xff] %v720
  %857 = vst [vmem:[#allocation4 + $0x338] sm:$0xff] %v722
  %858 = vst [vmem:[#allocation4 + $0x340] sm:$0xff] %v533
  %859 = vst [vmem:[#allocation4 + $0x348] sm:$0xff] %v535
  %860 = vst [vmem:[#allocation4 + $0x350] sm:$0xff] %v726
  %861 = vst [vmem:[#allocation4 + $0x358] sm:$0xff] %v728
  %862 = vst [vmem:[#allocation4 + $0x360] sm:$0xff] %v537
  %863 = vst [vmem:[#allocation4 + $0x368] sm:$0xff] %v539
  %864 = vst [vmem:[#allocation4 + $0x370] sm:$0xff] %v730
  %865 = vst [vmem:[#allocation4 + $0x378] sm:$0xff] %v732
  %866 = vst [vmem:[#allocation4 + $0x380] sm:$0xff] %v543
  %867 = vst [vmem:[#allocation4 + $0x388] sm:$0xff] %v545
  %868 = vst [vmem:[#allocation4 + $0x390] sm:$0xff] %v736
  %869 = vst [vmem:[#allocation4 + $0x398] sm:$0xff] %v738
  %870 = vst [vmem:[#allocation4 + $0x3a0] sm:$0xff] %v547
  %871 = vst [vmem:[#allocation4 + $0x3a8] sm:$0xff] %v549
  %872 = vst [vmem:[#allocation4 + $0x3b0] sm:$0xff] %v740
  %873 = vst [vmem:[#allocation4 + $0x3b8] sm:$0xff] %v742
  %874 = vst [vmem:[#allocation4 + $0x3c0] sm:$0xff] %v553
  %875 = vst [vmem:[#allocation4 + $0x3c8] sm:$0xff] %v555
  %876 = vst [vmem:[#allocation4 + $0x3d0] sm:$0xff] %v746
  %877 = vst [vmem:[#allocation4 + $0x3d8] sm:$0xff] %v748
  %878 = vst [vmem:[#allocation4 + $0x3e0] sm:$0xff] %v557
  %879 = vst [vmem:[#allocation4 + $0x3e8] sm:$0xff] %v559
  %880 = vst [vmem:[#allocation4 + $0x3f0] sm:$0xff] %v750
  %881 = vst [vmem:[#allocation4 + $0x3f8] sm:$0xff] %v752
  %v882 = vld [vmem:[%s2] sm:$0xff]
  %v883 = vld [vmem:[%s2 + $0x8] sm:$0xff]
  %v884 = vld [vmem:[%s2 + $0x10] sm:$0xff]
  %v885 = vld [vmem:[%s2 + $0x18] sm:$0xff]
  %v886 = vld [vmem:[%s2 + $0x20] sm:$0xff]
  %v887 = vld [vmem:[%s2 + $0x28] sm:$0xff]
  %v888 = vld [vmem:[%s2 + $0x30] sm:$0xff]
  %v889 = vld [vmem:[%s2 + $0x38] sm:$0xff]
  %v890 = vld [vmem:[%s2 + $0x40] sm:$0xff]
  %v891 = vld [vmem:[%s2 + $0x48] sm:$0xff]
  %v892 = vld [vmem:[%s2 + $0x50] sm:$0xff]
  %v893 = vld [vmem:[%s2 + $0x58] sm:$0xff]
  %v894 = vld [vmem:[%s2 + $0x60] sm:$0xff]
  %v895 = vld [vmem:[%s2 + $0x68] sm:$0xff]
  %v896 = vld [vmem:[%s2 + $0x70] sm:$0xff]
  %v897 = vld [vmem:[%s2 + $0x78] sm:$0xff]
  %v898 = vld [vmem:[%s2 + $0x80] sm:$0xff]
  %v899 = vld [vmem:[%s2 + $0x88] sm:$0xff]
  %v900 = vld [vmem:[%s2 + $0x90] sm:$0xff]
  %v901 = vld [vmem:[%s2 + $0x98] sm:$0xff]
  %v902 = vld [vmem:[%s2 + $0xa0] sm:$0xff]
  %v903 = vld [vmem:[%s2 + $0xa8] sm:$0xff]
  %v904 = vld [vmem:[%s2 + $0xb0] sm:$0xff]
  %v905 = vld [vmem:[%s2 + $0xb8] sm:$0xff]
  %v906 = vld [vmem:[%s2 + $0xc0] sm:$0xff]
  %v907 = vld [vmem:[%s2 + $0xc8] sm:$0xff]
  %v908 = vld [vmem:[%s2 + $0xd0] sm:$0xff]
  %v909 = vld [vmem:[%s2 + $0xd8] sm:$0xff]
  %v910 = vld [vmem:[%s2 + $0xe0] sm:$0xff]
  %v911 = vld [vmem:[%s2 + $0xe8] sm:$0xff]
  %v912 = vld [vmem:[%s2 + $0xf0] sm:$0xff]
  %v913 = vld [vmem:[%s2 + $0xf8] sm:$0xff]
  %v914 = vld [vmem:[#allocation2] sm:$0xff]
  %v915 = vld [vmem:[#allocation2 + $0x8] sm:$0xff]
  %v916 = vld [vmem:[#allocation3] sm:$0xff]
  %v917 = vld [vmem:[#allocation3 + $0x8] sm:$0xff]
  %v918 = vld [vmem:[#allocation4] sm:$0xff]
  %v919 = vld [vmem:[#allocation4 + $0x8] sm:$0xff]
  %v920 = vld [vmem:[#allocation4 + $0x10] sm:$0xff]
  %v921 = vld [vmem:[#allocation4 + $0x18] sm:$0xff]
  %v922 = vld [vmem:[#allocation4 + $0x20] sm:$0xff]
  %v923 = vld [vmem:[#allocation4 + $0x28] sm:$0xff]
  %v924 = vld [vmem:[#allocation4 + $0x30] sm:$0xff]
  %v925 = vld [vmem:[#allocation4 + $0x38] sm:$0xff]
  %v926 = vpack.c.bf16 %v915, %v914
  %v959 = vunpack.c.l.b16 %v882
  %v960 = vunpack.c.h.b16 %v882
  %v961 = vunpack.c.l.b16 %v883
  %v962 = vunpack.c.h.b16 %v883
  %v963 = vunpack.c.l.b16 %v884
  %v964 = vunpack.c.h.b16 %v884
  %v965 = vunpack.c.l.b16 %v885
  %v966 = vunpack.c.h.b16 %v885
  %v967 = vunpack.c.l.b16 %v886
  %v968 = vunpack.c.h.b16 %v886
  %v969 = vunpack.c.l.b16 %v887
  %v970 = vunpack.c.h.b16 %v887
  %v971 = vunpack.c.l.b16 %v888
  %v972 = vunpack.c.h.b16 %v888
  %v973 = vunpack.c.l.b16 %v889
  %v974 = vunpack.c.h.b16 %v889
  %v975 = vunpack.c.l.b16 %v890
  %v976 = vunpack.c.h.b16 %v890
  %v977 = vunpack.c.l.b16 %v891
  %v978 = vunpack.c.h.b16 %v891
  %v979 = vunpack.c.l.b16 %v892
  %v980 = vunpack.c.h.b16 %v892
  %v981 = vunpack.c.l.b16 %v893
  %v982 = vunpack.c.h.b16 %v893
  %v983 = vunpack.c.l.b16 %v894
  %v984 = vunpack.c.h.b16 %v894
  %v985 = vunpack.c.l.b16 %v895
  %v986 = vunpack.c.h.b16 %v895
  %v987 = vunpack.c.l.b16 %v896
  %v988 = vunpack.c.h.b16 %v896
  %v989 = vunpack.c.l.b16 %v897
  %v990 = vunpack.c.h.b16 %v897
  %v991 = vunpack.c.l.b16 %v898
  %v992 = vunpack.c.h.b16 %v898
  %v993 = vunpack.c.l.b16 %v899
  %v994 = vunpack.c.h.b16 %v899
  %v995 = vunpack.c.l.b16 %v900
  %v996 = vunpack.c.h.b16 %v900
  %v997 = vunpack.c.l.b16 %v901
  %v998 = vunpack.c.h.b16 %v901
  %v999 = vunpack.c.l.b16 %v902
  %v1000 = vunpack.c.h.b16 %v902
  %v1001 = vunpack.c.l.b16 %v903
  %v1002 = vunpack.c.h.b16 %v903
  %v1003 = vunpack.c.l.b16 %v904
  %v1004 = vunpack.c.h.b16 %v904
  %v1005 = vunpack.c.l.b16 %v905
  %v1006 = vunpack.c.h.b16 %v905
  %v1007 = vunpack.c.l.b16 %v906
  %v1008 = vunpack.c.h.b16 %v906
  %v1009 = vunpack.c.l.b16 %v907
  %v1010 = vunpack.c.h.b16 %v907
  %v1011 = vunpack.c.l.b16 %v908
  %v1012 = vunpack.c.h.b16 %v908
  %v1013 = vunpack.c.l.b16 %v909
  %v1014 = vunpack.c.h.b16 %v909
  %v1015 = vunpack.c.l.b16 %v910
  %v1016 = vunpack.c.h.b16 %v910
  %v1017 = vunpack.c.l.b16 %v911
  %v1018 = vunpack.c.h.b16 %v911
  %v1019 = vunpack.c.l.b16 %v912
  %v1020 = vunpack.c.h.b16 %v912
  %v1021 = vunpack.c.l.b16 %v913
  %v1022 = vunpack.c.h.b16 %v913
  %v1023 = vpack.c.b16 %v963, %v959
  %v1024 = vpack.c.b16 %v964, %v960
  %v1025 = vpack.c.b16 %v965, %v961
  %v1026 = vpack.c.b16 %v966, %v962
  %v1027 = vpack.c.b16 %v971, %v967
  %v1028 = vpack.c.b16 %v972, %v968
  %v1029 = vpack.c.b16 %v973, %v969
  %v1030 = vpack.c.b16 %v974, %v970
  %v1031 = vpack.c.b16 %v979, %v975
  %v1032 = vpack.c.b16 %v980, %v976
  %v1033 = vpack.c.b16 %v981, %v977
  %v1034 = vpack.c.b16 %v982, %v978
  %v1035 = vpack.c.b16 %v987, %v983
  %v1036 = vpack.c.b16 %v988, %v984
  %v1037 = vpack.c.b16 %v989, %v985
  %v1038 = vpack.c.b16 %v990, %v986
  %v1039 = vpack.c.b16 %v995, %v991
  %v1040 = vpack.c.b16 %v996, %v992
  %v1041 = vpack.c.b16 %v997, %v993
  %v1042 = vpack.c.b16 %v998, %v994
  %v1043 = vpack.c.b16 %v1003, %v999
  %v1044 = vpack.c.b16 %v1004, %v1000
  %v1045 = vpack.c.b16 %v1005, %v1001
  %v1046 = vpack.c.b16 %v1006, %v1002
  %v1047 = vpack.c.b16 %v1011, %v1007
  %v1048 = vpack.c.b16 %v1012, %v1008
  %v1049 = vpack.c.b16 %v1013, %v1009
  %v1050 = vpack.c.b16 %v1014, %v1010
  %v1051 = vpack.c.b16 %v1019, %v1015
  %v1052 = vpack.c.b16 %v1020, %v1016
  %v1053 = vpack.c.b16 %v1021, %v1017
  %v1054 = vpack.c.b16 %v1022, %v1018
  %1087 = vmatprep.subr.bf16.mxu0 %v1052
  %1088 = vmatpush1.bf16.msra.mxu0 %v1051
  %1089 = vmatprep.subr.bf16.mxu0 %v1048
  %1090 = vmatpush1.bf16.msra.mxu0 %v1047
  %1091 = vmatprep.subr.bf16.mxu0 %v1044
  %1092 = vmatpush1.bf16.msra.mxu0 %v1043
  %1093 = vmatprep.subr.bf16.mxu0 %v1040
  %1094 = vmatpush1.bf16.msra.mxu0 %v1039
  %1095 = vmatprep.subr.bf16.mxu0 %v1036
  %1096 = vmatpush1.bf16.msra.mxu0 %v1035
  %1097 = vmatprep.subr.bf16.mxu0 %v1032
  %1098 = vmatpush1.bf16.msra.mxu0 %v1031
  %1099 = vmatprep.subr.bf16.mxu0 %v1028
  %1100 = vmatpush1.bf16.msra.mxu0 %v1027
  %1101 = vmatprep.subr.bf16.mxu0 %v1024
  %1102 = vmatpush1.bf16.msra.mxu0 %v1023
  %1103 = vmatprep.subr.bf16.mxu0 0
  %1104 = vmatpush2.bf16.msra.mxu0 0
  %1105 = vmatprep.subr.bf16.mxu0 0
  %1106 = vmatpush2.bf16.msra.mxu0 0
  %1107 = vmatprep.subr.bf16.mxu0 0
  %1108 = vmatpush2.bf16.msra.mxu0 0
  %1109 = vmatprep.subr.bf16.mxu0 0
  %1110 = vmatpush2.bf16.msra.mxu0 0
  %1111 = vmatprep.subr.bf16.mxu0 0
  %1112 = vmatpush2.bf16.msra.mxu0 0
  %1113 = vmatprep.subr.bf16.mxu0 0
  %1114 = vmatpush2.bf16.msra.mxu0 0
  %1115 = vmatprep.subr.bf16.mxu0 0
  %1116 = vmatpush2.bf16.msra.mxu0 0
  %1117 = vmatprep.subr.bf16.mxu0 0
  %1118 = vmatpush2.bf16.msra.mxu0 0
  %1119 = vmatprep.mubr.bf16.mxu0 0
  %1120 = vmatmul.mubr.bf16.gmra.mxu0 %v926
  %v1121 = vpop.f32.mrf.mxu0
  %v1122 = vadd.f32 0.0, %v1121
  %v1123 = vpop.f32.mrf.mxu0
  %v1124 = vadd.f32 0.0, %v1123
  %v1125 = vpop.f32.mrf.mxu0
  %v1126 = vadd.f32 0.0, %v1125
  %v1127 = vpop.f32.mrf.mxu0
  %v1128 = vadd.f32 0.0, %v1127
  %1129 = vdwg.mxu0
  %1130 = vmatprep.subr.bf16.mxu0 %v1054
  %1131 = vmatpush1.bf16.msra.mxu0 %v1053
  %1132 = vmatprep.subr.bf16.mxu0 %v1050
  %1133 = vmatpush1.bf16.msra.mxu0 %v1049
  %1134 = vmatprep.subr.bf16.mxu0 %v1046
  %1135 = vmatpush1.bf16.msra.mxu0 %v1045
  %1136 = vmatprep.subr.bf16.mxu0 %v1042
  %1137 = vmatpush1.bf16.msra.mxu0 %v1041
  %1138 = vmatprep.subr.bf16.mxu0 %v1038
  %1139 = vmatpush1.bf16.msra.mxu0 %v1037
  %1140 = vmatprep.subr.bf16.mxu0 %v1034
  %1141 = vmatpush1.bf16.msra.mxu0 %v1033
  %1142 = vmatprep.subr.bf16.mxu0 %v1030
  %1143 = vmatpush1.bf16.msra.mxu0 %v1029
  %1144 = vmatprep.subr.bf16.mxu0 %v1026
  %1145 = vmatpush1.bf16.msra.mxu0 %v1025
  %1146 = vmatprep.subr.bf16.mxu0 0
  %1147 = vmatpush2.bf16.msra.mxu0 0
  %1148 = vmatprep.subr.bf16.mxu0 0
  %1149 = vmatpush2.bf16.msra.mxu0 0
  %1150 = vmatprep.subr.bf16.mxu0 0
  %1151 = vmatpush2.bf16.msra.mxu0 0
  %1152 = vmatprep.subr.bf16.mxu0 0
  %1153 = vmatpush2.bf16.msra.mxu0 0
  %1154 = vmatprep.subr.bf16.mxu0 0
  %1155 = vmatpush2.bf16.msra.mxu0 0
  %1156 = vmatprep.subr.bf16.mxu0 0
  %1157 = vmatpush2.bf16.msra.mxu0 0
  %1158 = vmatprep.subr.bf16.mxu0 0
  %1159 = vmatpush2.bf16.msra.mxu0 0
  %1160 = vmatprep.subr.bf16.mxu0 0
  %1161 = vmatpush2.bf16.msra.mxu0 0
  %1162 = vmatprep.mubr.bf16.mxu0 0
  %1163 = vmatmul.mubr.bf16.gmra.mxu0 %v926
  %v1164 = vpop.f32.mrf.mxu0
  %v1165 = vadd.f32 0.0, %v1164
  %v1166 = vpop.f32.mrf.mxu0
  %v1167 = vadd.f32 0.0, %v1166
  %v1168 = vpop.f32.mrf.mxu0
  %v1169 = vadd.f32 0.0, %v1168
  %v1170 = vpop.f32.mrf.mxu0
  %v1171 = vadd.f32 0.0, %v1170
  %1172 = vdwg.mxu0
  %v1173 = vadd.f32 %v918, %v1122
  %v1174 = vadd.f32 %v919, %v1124
  %v1175 = vadd.f32 %v920, %v1165
  %v1176 = vadd.f32 %v921, %v1167
  %v1177 = vadd.f32 %v922, %v1126
  %v1178 = vadd.f32 %v923, %v1128
  %v1179 = vadd.f32 %v924, %v1169
  %v1180 = vadd.f32 %v925, %v1171
  %v1181 = vxor.u32 %v1173, 2147483648
  %v1182 = vxor.u32 %v1177, 2147483648
  %v1183 = vmul.f32 %v1181, 1.442695
  %v1184 = vpow.pop %v1183
  %v1185 = vmul.f32 %v1182, 1.442695
  %v1186 = vpow.pop %v1185
  %v1187 = vadd.f32 %v1184, 1.0
  %v1188 = vadd.f32 %v1186, 1.0
  %v1189 = vrcp.pop %v1187
  %v1190 = vmul.f32 1.0, %v1189
  %v1191 = vrcp.pop %v1188
  %v1192 = vmul.f32 1.0, %v1191
  %v1193 = vxor.u32 %v1174, 2147483648
  %v1194 = vxor.u32 %v1178, 2147483648
  %v1195 = vmul.f32 %v1193, 1.442695
  %v1196 = vpow.pop %v1195
  %v1197 = vmul.f32 %v1194, 1.442695
  %v1198 = vpow.pop %v1197
  %v1199 = vadd.f32 %v1196, 1.0
  %v1200 = vadd.f32 %v1198, 1.0
  %v1201 = vrcp.pop %v1199
  %v1202 = vmul.f32 1.0, %v1201
  %v1203 = vrcp.pop %v1200
  %v1204 = vmul.f32 1.0, %v1203
  %v1205 = vtanh.pop %v1175
  %v1206 = vtanh.pop %v1179
  %v1207 = vxor.u32 %v1176, 2147483648
  %v1208 = vxor.u32 %v1180, 2147483648
  %v1209 = vmul.f32 %v1207, 1.442695
  %v1210 = vpow.pop %v1209
  %v1211 = vmul.f32 %v1208, 1.442695
  %v1212 = vpow.pop %v1211
  %v1213 = vadd.f32 %v1210, 1.0
  %v1214 = vadd.f32 %v1212, 1.0
  %v1215 = vrcp.pop %v1213
  %v1216 = vmul.f32 1.0, %v1215
  %v1217 = vrcp.pop %v1214
  %v1218 = vmul.f32 1.0, %v1217
  %v1219 = vmul.f32 %v1202, %v916
  %v1220 = vmul.f32 %v1204, %v917
  %v1221 = vmul.f32 %v1190, %v1205
  %v1222 = vmul.f32 %v1192, %v1206
  %v1223 = vadd.f32 %v1219, %v1221
  %v1224 = vadd.f32 %v1220, %v1222
  %v1225 = vtanh.pop %v1223
  %v1226 = vtanh.pop %v1224
  %v1227 = vmul.f32 %v1216, %v1225
  %v1228 = vmul.f32 %v1218, %v1226
  %v1229 = vpack.c.bf16 %v1228, %v1227
  %v1231 = vunpack.c.l.b16 %v1229
  %v1232 = vunpack.c.h.b16 %v1229
  %v1233 = vpack.c.b16 %v1231, %v1231
  %v1234 = vpack.c.b16 %v1232, %v1232
  %1237 = vst [vmem:[%s4] sm:$0xf] %v1233
  %1238 = vst [vmem:[%s4 + $0x4] sm:$0xf] %v1234
  %s1239 = scalar_lea.vmem [#allocation4], 64
  %v1240 = vld [vmem:[%s1239] sm:$0xff]
  %v1241 = vld [vmem:[%s1239 + $0x8] sm:$0xff]
  %v1242 = vld [vmem:[%s1239 + $0x10] sm:$0xff]
  %v1243 = vld [vmem:[%s1239 + $0x18] sm:$0xff]
  %v1244 = vld [vmem:[%s1239 + $0x20] sm:$0xff]
  %v1245 = vld [vmem:[%s1239 + $0x28] sm:$0xff]
  %v1246 = vld [vmem:[%s1239 + $0x30] sm:$0xff]
  %v1247 = vld [vmem:[%s1239 + $0x38] sm:$0xff]
  %1248 = vmatprep.subr.bf16.mxu0 %v1052
  %1249 = vmatpush1.bf16.msra.mxu0 %v1051
  %1250 = vmatprep.subr.bf16.mxu0 %v1048
  %1251 = vmatpush1.bf16.msra.mxu0 %v1047
  %1252 = vmatprep.subr.bf16.mxu0 %v1044
  %1253 = vmatpush1.bf16.msra.mxu0 %v1043
  %1254 = vmatprep.subr.bf16.mxu0 %v1040
  %1255 = vmatpush1.bf16.msra.mxu0 %v1039
  %1256 = vmatprep.subr.bf16.mxu0 %v1036
  %1257 = vmatpush1.bf16.msra.mxu0 %v1035
  %1258 = vmatprep.subr.bf16.mxu0 %v1032
  %1259 = vmatpush1.bf16.msra.mxu0 %v1031
  %1260 = vmatprep.subr.bf16.mxu0 %v1028
  %1261 = vmatpush1.bf16.msra.mxu0 %v1027
  %1262 = vmatprep.subr.bf16.mxu0 %v1024
  %1263 = vmatpush1.bf16.msra.mxu0 %v1023
  %1264 = vmatprep.subr.bf16.mxu0 0
  %1265 = vmatpush2.bf16.msra.mxu0 0
  %1266 = vmatprep.subr.bf16.mxu0 0
  %1267 = vmatpush2.bf16.msra.mxu0 0
  %1268 = vmatprep.subr.bf16.mxu0 0
  %1269 = vmatpush2.bf16.msra.mxu0 0
  %1270 = vmatprep.subr.bf16.mxu0 0
  %1271 = vmatpush2.bf16.msra.mxu0 0
  %1272 = vmatprep.subr.bf16.mxu0 0
  %1273 = vmatpush2.bf16.msra.mxu0 0
  %1274 = vmatprep.subr.bf16.mxu0 0
  %1275 = vmatpush2.bf16.msra.mxu0 0
  %1276 = vmatprep.subr.bf16.mxu0 0
  %1277 = vmatpush2.bf16.msra.mxu0 0
  %1278 = vmatprep.subr.bf16.mxu0 0
  %1279 = vmatpush2.bf16.msra.mxu0 0
  %1280 = vmatprep.mubr.bf16.mxu0 0
  %1281 = vmatmul.mubr.bf16.gmra.mxu0 %v1229
  %v1282 = vpop.f32.mrf.mxu0
  %v1283 = vadd.f32 0.0, %v1282
  %v1284 = vpop.f32.mrf.mxu0
  %v1285 = vadd.f32 0.0, %v1284
  %v1286 = vpop.f32.mrf.mxu0
  %v1287 = vadd.f32 0.0, %v1286
  %v1288 = vpop.f32.mrf.mxu0
  %v1289 = vadd.f32 0.0, %v1288
  %1290 = vdwg.mxu0
  %1291 = vmatprep.subr.bf16.mxu0 %v1054
  %1292 = vmatpush1.bf16.msra.mxu0 %v1053
  %1293 = vmatprep.subr.bf16.mxu0 %v1050
  %1294 = vmatpush1.bf16.msra.mxu0 %v1049
  %1295 = vmatprep.subr.bf16.mxu0 %v1046
  %1296 = vmatpush1.bf16.msra.mxu0 %v1045
  %1297 = vmatprep.subr.bf16.mxu0 %v1042
  %1298 = vmatpush1.bf16.msra.mxu0 %v1041
  %1299 = vmatprep.subr.bf16.mxu0 %v1038
  %1300 = vmatpush1.bf16.msra.mxu0 %v1037
  %1301 = vmatprep.subr.bf16.mxu0 %v1034
  %1302 = vmatpush1.bf16.msra.mxu0 %v1033
  %1303 = vmatprep.subr.bf16.mxu0 %v1030
  %1304 = vmatpush1.bf16.msra.mxu0 %v1029
  %1305 = vmatprep.subr.bf16.mxu0 %v1026
  %1306 = vmatpush1.bf16.msra.mxu0 %v1025
  %1307 = vmatprep.subr.bf16.mxu0 0
  %1308 = vmatpush2.bf16.msra.mxu0 0
  %1309 = vmatprep.subr.bf16.mxu0 0
  %1310 = vmatpush2.bf16.msra.mxu0 0
  %1311 = vmatprep.subr.bf16.mxu0 0
  %1312 = vmatpush2.bf16.msra.mxu0 0
  %1313 = vmatprep.subr.bf16.mxu0 0
  %1314 = vmatpush2.bf16.msra.mxu0 0
  %1315 = vmatprep.subr.bf16.mxu0 0
  %1316 = vmatpush2.bf16.msra.mxu0 0
  %1317 = vmatprep.subr.bf16.mxu0 0
  %1318 = vmatpush2.bf16.msra.mxu0 0
  %1319 = vmatprep.subr.bf16.mxu0 0
  %1320 = vmatpush2.bf16.msra.mxu0 0
  %1321 = vmatprep.subr.bf16.mxu0 0
  %1322 = vmatpush2.bf16.msra.mxu0 0
  %1323 = vmatprep.mubr.bf16.mxu0 0
  %1324 = vmatmul.mubr.bf16.gmra.mxu0 %v1229
  %v1325 = vpop.f32.mrf.mxu0
  %v1326 = vadd.f32 0.0, %v1325
  %v1327 = vpop.f32.mrf.mxu0
  %v1328 = vadd.f32 0.0, %v1327
  %v1329 = vpop.f32.mrf.mxu0
  %v1330 = vadd.f32 0.0, %v1329
  %v1331 = vpop.f32.mrf.mxu0
  %v1332 = vadd.f32 0.0, %v1331
  %1333 = vdwg.mxu0
  %v1334 = vadd.f32 %v1240, %v1283
  %v1335 = vadd.f32 %v1241, %v1285
  %v1336 = vadd.f32 %v1242, %v1326
  %v1337 = vadd.f32 %v1243, %v1328
  %v1338 = vadd.f32 %v1244, %v1287
  %v1339 = vadd.f32 %v1245, %v1289
  %v1340 = vadd.f32 %v1246, %v1330
  %v1341 = vadd.f32 %v1247, %v1332
  %v1342 = vxor.u32 %v1334, 2147483648
  %v1343 = vxor.u32 %v1338, 2147483648
  %v1344 = vmul.f32 %v1342, 1.442695
  %v1345 = vpow.pop %v1344
  %v1346 = vmul.f32 %v1343, 1.442695
  %v1347 = vpow.pop %v1346
  %v1348 = vadd.f32 %v1345, 1.0
  %v1349 = vadd.f32 %v1347, 1.0
  %v1350 = vrcp.pop %v1348
  %v1351 = vmul.f32 1.0, %v1350
  %v1352 = vrcp.pop %v1349
  %v1353 = vmul.f32 1.0, %v1352
  %v1354 = vxor.u32 %v1335, 2147483648
  %v1355 = vxor.u32 %v1339, 2147483648
  %v1356 = vmul.f32 %v1354, 1.442695
  %v1357 = vpow.pop %v1356
  %v1358 = vmul.f32 %v1355, 1.442695
  %v1359 = vpow.pop %v1358
  %v1360 = vadd.f32 %v1357, 1.0
  %v1361 = vadd.f32 %v1359, 1.0
  %v1362 = vrcp.pop %v1360
  %v1363 = vmul.f32 1.0, %v1362
  %v1364 = vrcp.pop %v1361
  %v1365 = vmul.f32 1.0, %v1364
  %v1366 = vtanh.pop %v1336
  %v1367 = vtanh.pop %v1340
  %v1368 = vxor.u32 %v1337, 2147483648
  %v1369 = vxor.u32 %v1341, 2147483648
  %v1370 = vmul.f32 %v1368, 1.442695
  %v1371 = vpow.pop %v1370
  %v1372 = vmul.f32 %v1369, 1.442695
  %v1373 = vpow.pop %v1372
  %v1374 = vadd.f32 %v1371, 1.0
  %v1375 = vadd.f32 %v1373, 1.0
  %v1376 = vrcp.pop %v1374
  %v1377 = vmul.f32 1.0, %v1376
  %v1378 = vrcp.pop %v1375
  %v1379 = vmul.f32 1.0, %v1378
  %v1380 = vmul.f32 %v1363, %v1223
  %v1381 = vmul.f32 %v1365, %v1224
  %v1382 = vmul.f32 %v1351, %v1366
  %v1383 = vmul.f32 %v1353, %v1367
  %v1384 = vadd.f32 %v1380, %v1382
  %v1385 = vadd.f32 %v1381, %v1383
  %v1386 = vtanh.pop %v1384
  %v1387 = vtanh.pop %v1385
  %v1388 = vmul.f32 %v1377, %v1386
  %v1389 = vmul.f32 %v1379, %v1387
  %v1390 = vpack.c.bf16 %v1389, %v1388
  %v1392 = vunpack.c.l.b16 %v1390
  %v1393 = vunpack.c.h.b16 %v1390
  %v1394 = vpack.c.b16 %v1392, %v1392
  %v1395 = vpack.c.b16 %v1393, %v1393
  %s1398 = scalar_lea.vmem %s4, 8
  %1399 = vst [vmem:[%s1398] sm:$0xf] %v1394
  %1400 = vst [vmem:[%s1398 + $0x4] sm:$0xf] %v1395
  %s1401 = scalar_lea.vmem [#allocation4], 128
  %v1402 = vld [vmem:[%s1401] sm:$0xff]
  %v1403 = vld [vmem:[%s1401 + $0x8] sm:$0xff]
  %v1404 = vld [vmem:[%s1401 + $0x10] sm:$0xff]
  %v1405 = vld [vmem:[%s1401 + $0x18] sm:$0xff]
  %v1406 = vld [vmem:[%s1401 + $0x20] sm:$0xff]
  %v1407 = vld [vmem:[%s1401 + $0x28] sm:$0xff]
  %v1408 = vld [vmem:[%s1401 + $0x30] sm:$0xff]
  %v1409 = vld [vmem:[%s1401 + $0x38] sm:$0xff]
  %1410 = vmatprep.subr.bf16.mxu0 %v1052
  %1411 = vmatpush1.bf16.msra.mxu0 %v1051
  %1412 = vmatprep.subr.bf16.mxu0 %v1048
  %1413 = vmatpush1.bf16.msra.mxu0 %v1047
  %1414 = vmatprep.subr.bf16.mxu0 %v1044
  %1415 = vmatpush1.bf16.msra.mxu0 %v1043
  %1416 = vmatprep.subr.bf16.mxu0 %v1040
  %1417 = vmatpush1.bf16.msra.mxu0 %v1039
  %1418 = vmatprep.subr.bf16.mxu0 %v1036
  %1419 = vmatpush1.bf16.msra.mxu0 %v1035
  %1420 = vmatprep.subr.bf16.mxu0 %v1032
  %1421 = vmatpush1.bf16.msra.mxu0 %v1031
  %1422 = vmatprep.subr.bf16.mxu0 %v1028
  %1423 = vmatpush1.bf16.msra.mxu0 %v1027
  %1424 = vmatprep.subr.bf16.mxu0 %v1024
  %1425 = vmatpush1.bf16.msra.mxu0 %v1023
  %1426 = vmatprep.subr.bf16.mxu0 0
  %1427 = vmatpush2.bf16.msra.mxu0 0
  %1428 = vmatprep.subr.bf16.mxu0 0
  %1429 = vmatpush2.bf16.msra.mxu0 0
  %1430 = vmatprep.subr.bf16.mxu0 0
  %1431 = vmatpush2.bf16.msra.mxu0 0
  %1432 = vmatprep.subr.bf16.mxu0 0
  %1433 = vmatpush2.bf16.msra.mxu0 0
  %1434 = vmatprep.subr.bf16.mxu0 0
  %1435 = vmatpush2.bf16.msra.mxu0 0
  %1436 = vmatprep.subr.bf16.mxu0 0
  %1437 = vmatpush2.bf16.msra.mxu0 0
  %1438 = vmatprep.subr.bf16.mxu0 0
  %1439 = vmatpush2.bf16.msra.mxu0 0
  %1440 = vmatprep.subr.bf16.mxu0 0
  %1441 = vmatpush2.bf16.msra.mxu0 0
  %1442 = vmatprep.mubr.bf16.mxu0 0
  %1443 = vmatmul.mubr.bf16.gmra.mxu0 %v1390
  %v1444 = vpop.f32.mrf.mxu0
  %v1445 = vadd.f32 0.0, %v1444
  %v1446 = vpop.f32.mrf.mxu0
  %v1447 = vadd.f32 0.0, %v1446
  %v1448 = vpop.f32.mrf.mxu0
  %v1449 = vadd.f32 0.0, %v1448
  %v1450 = vpop.f32.mrf.mxu0
  %v1451 = vadd.f32 0.0, %v1450
  %1452 = vdwg.mxu0
  %1453 = vmatprep.subr.bf16.mxu0 %v1054
  %1454 = vmatpush1.bf16.msra.mxu0 %v1053
  %1455 = vmatprep.subr.bf16.mxu0 %v1050
  %1456 = vmatpush1.bf16.msra.mxu0 %v1049
  %1457 = vmatprep.subr.bf16.mxu0 %v1046
  %1458 = vmatpush1.bf16.msra.mxu0 %v1045
  %1459 = vmatprep.subr.bf16.mxu0 %v1042
  %1460 = vmatpush1.bf16.msra.mxu0 %v1041
  %1461 = vmatprep.subr.bf16.mxu0 %v1038
  %1462 = vmatpush1.bf16.msra.mxu0 %v1037
  %1463 = vmatprep.subr.bf16.mxu0 %v1034
  %1464 = vmatpush1.bf16.msra.mxu0 %v1033
  %1465 = vmatprep.subr.bf16.mxu0 %v1030
  %1466 = vmatpush1.bf16.msra.mxu0 %v1029
  %1467 = vmatprep.subr.bf16.mxu0 %v1026
  %1468 = vmatpush1.bf16.msra.mxu0 %v1025
  %1469 = vmatprep.subr.bf16.mxu0 0
  %1470 = vmatpush2.bf16.msra.mxu0 0
  %1471 = vmatprep.subr.bf16.mxu0 0
  %1472 = vmatpush2.bf16.msra.mxu0 0
  %1473 = vmatprep.subr.bf16.mxu0 0
  %1474 = vmatpush2.bf16.msra.mxu0 0
  %1475 = vmatprep.subr.bf16.mxu0 0
  %1476 = vmatpush2.bf16.msra.mxu0 0
  %1477 = vmatprep.subr.bf16.mxu0 0
  %1478 = vmatpush2.bf16.msra.mxu0 0
  %1479 = vmatprep.subr.bf16.mxu0 0
  %1480 = vmatpush2.bf16.msra.mxu0 0
  %1481 = vmatprep.subr.bf16.mxu0 0
  %1482 = vmatpush2.bf16.msra.mxu0 0
  %1483 = vmatprep.subr.bf16.mxu0 0
  %1484 = vmatpush2.bf16.msra.mxu0 0
  %1485 = vmatprep.mubr.bf16.mxu0 0
  %1486 = vmatmul.mubr.bf16.gmra.mxu0 %v1390
  %v1487 = vpop.f32.mrf.mxu0
  %v1488 = vadd.f32 0.0, %v1487
  %v1489 = vpop.f32.mrf.mxu0
  %v1490 = vadd.f32 0.0, %v1489
  %v1491 = vpop.f32.mrf.mxu0
  %v1492 = vadd.f32 0.0, %v1491
  %v1493 = vpop.f32.mrf.mxu0
  %v1494 = vadd.f32 0.0, %v1493
  %1495 = vdwg.mxu0
  %v1496 = vadd.f32 %v1402, %v1445
  %v1497 = vadd.f32 %v1403, %v1447
  %v1498 = vadd.f32 %v1404, %v1488
  %v1499 = vadd.f32 %v1405, %v1490
  %v1500 = vadd.f32 %v1406, %v1449
  %v1501 = vadd.f32 %v1407, %v1451
  %v1502 = vadd.f32 %v1408, %v1492
  %v1503 = vadd.f32 %v1409, %v1494
  %v1504 = vxor.u32 %v1496, 2147483648
  %v1505 = vxor.u32 %v1500, 2147483648
  %v1506 = vmul.f32 %v1504, 1.442695
  %v1507 = vpow.pop %v1506
  %v1508 = vmul.f32 %v1505, 1.442695
  %v1509 = vpow.pop %v1508
  %v1510 = vadd.f32 %v1507, 1.0
  %v1511 = vadd.f32 %v1509, 1.0
  %v1512 = vrcp.pop %v1510
  %v1513 = vmul.f32 1.0, %v1512
  %v1514 = vrcp.pop %v1511
  %v1515 = vmul.f32 1.0, %v1514
  %v1516 = vxor.u32 %v1497, 2147483648
  %v1517 = vxor.u32 %v1501, 2147483648
  %v1518 = vmul.f32 %v1516, 1.442695
  %v1519 = vpow.pop %v1518
  %v1520 = vmul.f32 %v1517, 1.442695
  %v1521 = vpow.pop %v1520
  %v1522 = vadd.f32 %v1519, 1.0
  %v1523 = vadd.f32 %v1521, 1.0
  %v1524 = vrcp.pop %v1522
  %v1525 = vmul.f32 1.0, %v1524
  %v1526 = vrcp.pop %v1523
  %v1527 = vmul.f32 1.0, %v1526
  %v1528 = vtanh.pop %v1498
  %v1529 = vtanh.pop %v1502
  %v1530 = vxor.u32 %v1499, 2147483648
  %v1531 = vxor.u32 %v1503, 2147483648
  %v1532 = vmul.f32 %v1530, 1.442695
  %v1533 = vpow.pop %v1532
  %v1534 = vmul.f32 %v1531, 1.442695
  %v1535 = vpow.pop %v1534
  %v1536 = vadd.f32 %v1533, 1.0
  %v1537 = vadd.f32 %v1535, 1.0
  %v1538 = vrcp.pop %v1536
  %v1539 = vmul.f32 1.0, %v1538
  %v1540 = vrcp.pop %v1537
  %v1541 = vmul.f32 1.0, %v1540
  %v1542 = vmul.f32 %v1525, %v1384
  %v1543 = vmul.f32 %v1527, %v1385
  %v1544 = vmul.f32 %v1513, %v1528
  %v1545 = vmul.f32 %v1515, %v1529
  %v1546 = vadd.f32 %v1542, %v1544
  %v1547 = vadd.f32 %v1543, %v1545
  %v1548 = vtanh.pop %v1546
  %v1549 = vtanh.pop %v1547
  %v1550 = vmul.f32 %v1539, %v1548
  %v1551 = vmul.f32 %v1541, %v1549
  %v1552 = vpack.c.bf16 %v1551, %v1550
  %v1554 = vunpack.c.l.b16 %v1552
  %v1555 = vunpack.c.h.b16 %v1552
  %v1556 = vpack.c.b16 %v1554, %v1554
  %v1557 = vpack.c.b16 %v1555, %v1555
  %s1560 = scalar_lea.vmem %s4, 16
  %1561 = vst [vmem:[%s1560] sm:$0xf] %v1556
  %1562 = vst [vmem:[%s1560 + $0x4] sm:$0xf] %v1557
  %s1563 = scalar_lea.vmem [#allocation4], 192
  %v1564 = vld [vmem:[%s1563] sm:$0xff]
  %v1565 = vld [vmem:[%s1563 + $0x8] sm:$0xff]
  %v1566 = vld [vmem:[%s1563 + $0x10] sm:$0xff]
  %v1567 = vld [vmem:[%s1563 + $0x18] sm:$0xff]
  %v1568 = vld [vmem:[%s1563 + $0x20] sm:$0xff]
  %v1569 = vld [vmem:[%s1563 + $0x28] sm:$0xff]
  %v1570 = vld [vmem:[%s1563 + $0x30] sm:$0xff]
  %v1571 = vld [vmem:[%s1563 + $0x38] sm:$0xff]
  %1572 = vmatprep.subr.bf16.mxu0 %v1052
  %1573 = vmatpush1.bf16.msra.mxu0 %v1051
  %1574 = vmatprep.subr.bf16.mxu0 %v1048
  %1575 = vmatpush1.bf16.msra.mxu0 %v1047
  %1576 = vmatprep.subr.bf16.mxu0 %v1044
  %1577 = vmatpush1.bf16.msra.mxu0 %v1043
  %1578 = vmatprep.subr.bf16.mxu0 %v1040
  %1579 = vmatpush1.bf16.msra.mxu0 %v1039
  %1580 = vmatprep.subr.bf16.mxu0 %v1036
  %1581 = vmatpush1.bf16.msra.mxu0 %v1035
  %1582 = vmatprep.subr.bf16.mxu0 %v1032
  %1583 = vmatpush1.bf16.msra.mxu0 %v1031
  %1584 = vmatprep.subr.bf16.mxu0 %v1028
  %1585 = vmatpush1.bf16.msra.mxu0 %v1027
  %1586 = vmatprep.subr.bf16.mxu0 %v1024
  %1587 = vmatpush1.bf16.msra.mxu0 %v1023
  %1588 = vmatprep.subr.bf16.mxu0 0
  %1589 = vmatpush2.bf16.msra.mxu0 0
  %1590 = vmatprep.subr.bf16.mxu0 0
  %1591 = vmatpush2.bf16.msra.mxu0 0
  %1592 = vmatprep.subr.bf16.mxu0 0
  %1593 = vmatpush2.bf16.msra.mxu0 0
  %1594 = vmatprep.subr.bf16.mxu0 0
  %1595 = vmatpush2.bf16.msra.mxu0 0
  %1596 = vmatprep.subr.bf16.mxu0 0
  %1597 = vmatpush2.bf16.msra.mxu0 0
  %1598 = vmatprep.subr.bf16.mxu0 0
  %1599 = vmatpush2.bf16.msra.mxu0 0
  %1600 = vmatprep.subr.bf16.mxu0 0
  %1601 = vmatpush2.bf16.msra.mxu0 0
  %1602 = vmatprep.subr.bf16.mxu0 0
  %1603 = vmatpush2.bf16.msra.mxu0 0
  %1604 = vmatprep.mubr.bf16.mxu0 0
  %1605 = vmatmul.mubr.bf16.gmra.mxu0 %v1552
  %v1606 = vpop.f32.mrf.mxu0
  %v1607 = vadd.f32 0.0, %v1606
  %v1608 = vpop.f32.mrf.mxu0
  %v1609 = vadd.f32 0.0, %v1608
  %v1610 = vpop.f32.mrf.mxu0
  %v1611 = vadd.f32 0.0, %v1610
  %v1612 = vpop.f32.mrf.mxu0
  %v1613 = vadd.f32 0.0, %v1612
  %1614 = vdwg.mxu0
  %1615 = vmatprep.subr.bf16.mxu0 %v1054
  %1616 = vmatpush1.bf16.msra.mxu0 %v1053
  %1617 = vmatprep.subr.bf16.mxu0 %v1050
  %1618 = vmatpush1.bf16.msra.mxu0 %v1049
  %1619 = vmatprep.subr.bf16.mxu0 %v1046
  %1620 = vmatpush1.bf16.msra.mxu0 %v1045
  %1621 = vmatprep.subr.bf16.mxu0 %v1042
  %1622 = vmatpush1.bf16.msra.mxu0 %v1041
  %1623 = vmatprep.subr.bf16.mxu0 %v1038
  %1624 = vmatpush1.bf16.msra.mxu0 %v1037
  %1625 = vmatprep.subr.bf16.mxu0 %v1034
  %1626 = vmatpush1.bf16.msra.mxu0 %v1033
  %1627 = vmatprep.subr.bf16.mxu0 %v1030
  %1628 = vmatpush1.bf16.msra.mxu0 %v1029
  %1629 = vmatprep.subr.bf16.mxu0 %v1026
  %1630 = vmatpush1.bf16.msra.mxu0 %v1025
  %1631 = vmatprep.subr.bf16.mxu0 0
  %1632 = vmatpush2.bf16.msra.mxu0 0
  %1633 = vmatprep.subr.bf16.mxu0 0
  %1634 = vmatpush2.bf16.msra.mxu0 0
  %1635 = vmatprep.subr.bf16.mxu0 0
  %1636 = vmatpush2.bf16.msra.mxu0 0
  %1637 = vmatprep.subr.bf16.mxu0 0
  %1638 = vmatpush2.bf16.msra.mxu0 0
  %1639 = vmatprep.subr.bf16.mxu0 0
  %1640 = vmatpush2.bf16.msra.mxu0 0
  %1641 = vmatprep.subr.bf16.mxu0 0
  %1642 = vmatpush2.bf16.msra.mxu0 0
  %1643 = vmatprep.subr.bf16.mxu0 0
  %1644 = vmatpush2.bf16.msra.mxu0 0
  %1645 = vmatprep.subr.bf16.mxu0 0
  %1646 = vmatpush2.bf16.msra.mxu0 0
  %1647 = vmatprep.mubr.bf16.mxu0 0
  %1648 = vmatmul.mubr.bf16.gmra.mxu0 %v1552
  %v1649 = vpop.f32.mrf.mxu0
  %v1650 = vadd.f32 0.0, %v1649
  %v1651 = vpop.f32.mrf.mxu0
  %v1652 = vadd.f32 0.0, %v1651
  %v1653 = vpop.f32.mrf.mxu0
  %v1654 = vadd.f32 0.0, %v1653
  %v1655 = vpop.f32.mrf.mxu0
  %v1656 = vadd.f32 0.0, %v1655
  %1657 = vdwg.mxu0
  %v1658 = vadd.f32 %v1564, %v1607
  %v1659 = vadd.f32 %v1565, %v1609
  %v1660 = vadd.f32 %v1566, %v1650
  %v1661 = vadd.f32 %v1567, %v1652
  %v1662 = vadd.f32 %v1568, %v1611
  %v1663 = vadd.f32 %v1569, %v1613
  %v1664 = vadd.f32 %v1570, %v1654
  %v1665 = vadd.f32 %v1571, %v1656
  %v1666 = vxor.u32 %v1658, 2147483648
  %v1667 = vxor.u32 %v1662, 2147483648
  %v1668 = vmul.f32 %v1666, 1.442695
  %v1669 = vpow.pop %v1668
  %v1670 = vmul.f32 %v1667, 1.442695
  %v1671 = vpow.pop %v1670
  %v1672 = vadd.f32 %v1669, 1.0
  %v1673 = vadd.f32 %v1671, 1.0
  %v1674 = vrcp.pop %v1672
  %v1675 = vmul.f32 1.0, %v1674
  %v1676 = vrcp.pop %v1673
  %v1677 = vmul.f32 1.0, %v1676
  %v1678 = vxor.u32 %v1659, 2147483648
  %v1679 = vxor.u32 %v1663, 2147483648
  %v1680 = vmul.f32 %v1678, 1.442695
  %v1681 = vpow.pop %v1680
  %v1682 = vmul.f32 %v1679, 1.442695
  %v1683 = vpow.pop %v1682
  %v1684 = vadd.f32 %v1681, 1.0
  %v1685 = vadd.f32 %v1683, 1.0
  %v1686 = vrcp.pop %v1684
  %v1687 = vmul.f32 1.0, %v1686
  %v1688 = vrcp.pop %v1685
  %v1689 = vmul.f32 1.0, %v1688
  %v1690 = vtanh.pop %v1660
  %v1691 = vtanh.pop %v1664
  %v1692 = vxor.u32 %v1661, 2147483648
  %v1693 = vxor.u32 %v1665, 2147483648
  %v1694 = vmul.f32 %v1692, 1.442695
  %v1695 = vpow.pop %v1694
  %v1696 = vmul.f32 %v1693, 1.442695
  %v1697 = vpow.pop %v1696
  %v1698 = vadd.f32 %v1695, 1.0
  %v1699 = vadd.f32 %v1697, 1.0
  %v1700 = vrcp.pop %v1698
  %v1701 = vmul.f32 1.0, %v1700
  %v1702 = vrcp.pop %v1699
  %v1703 = vmul.f32 1.0, %v1702
  %v1704 = vmul.f32 %v1687, %v1546
  %v1705 = vmul.f32 %v1689, %v1547
  %v1706 = vmul.f32 %v1675, %v1690
  %v1707 = vmul.f32 %v1677, %v1691
  %v1708 = vadd.f32 %v1704, %v1706
  %v1709 = vadd.f32 %v1705, %v1707
  %v1710 = vtanh.pop %v1708
  %v1711 = vtanh.pop %v1709
  %v1712 = vmul.f32 %v1701, %v1710
  %v1713 = vmul.f32 %v1703, %v1711
  %v1714 = vpack.c.bf16 %v1713, %v1712
  %v1716 = vunpack.c.l.b16 %v1714
  %v1717 = vunpack.c.h.b16 %v1714
  %v1718 = vpack.c.b16 %v1716, %v1716
  %v1719 = vpack.c.b16 %v1717, %v1717
  %s1722 = scalar_lea.vmem %s4, 24
  %1723 = vst [vmem:[%s1722] sm:$0xf] %v1718
  %1724 = vst [vmem:[%s1722 + $0x4] sm:$0xf] %v1719
  %s1725 = scalar_lea.vmem [#allocation4], 256
  %v1726 = vld [vmem:[%s1725] sm:$0xff]
  %v1727 = vld [vmem:[%s1725 + $0x8] sm:$0xff]
  %v1728 = vld [vmem:[%s1725 + $0x10] sm:$0xff]
  %v1729 = vld [vmem:[%s1725 + $0x18] sm:$0xff]
  %v1730 = vld [vmem:[%s1725 + $0x20] sm:$0xff]
  %v1731 = vld [vmem:[%s1725 + $0x28] sm:$0xff]
  %v1732 = vld [vmem:[%s1725 + $0x30] sm:$0xff]
  %v1733 = vld [vmem:[%s1725 + $0x38] sm:$0xff]
  %1734 = vmatprep.subr.bf16.mxu0 %v1052
  %1735 = vmatpush1.bf16.msra.mxu0 %v1051
  %1736 = vmatprep.subr.bf16.mxu0 %v1048
  %1737 = vmatpush1.bf16.msra.mxu0 %v1047
  %1738 = vmatprep.subr.bf16.mxu0 %v1044
  %1739 = vmatpush1.bf16.msra.mxu0 %v1043
  %1740 = vmatprep.subr.bf16.mxu0 %v1040
  %1741 = vmatpush1.bf16.msra.mxu0 %v1039
  %1742 = vmatprep.subr.bf16.mxu0 %v1036
  %1743 = vmatpush1.bf16.msra.mxu0 %v1035
  %1744 = vmatprep.subr.bf16.mxu0 %v1032
  %1745 = vmatpush1.bf16.msra.mxu0 %v1031
  %1746 = vmatprep.subr.bf16.mxu0 %v1028
  %1747 = vmatpush1.bf16.msra.mxu0 %v1027
  %1748 = vmatprep.subr.bf16.mxu0 %v1024
  %1749 = vmatpush1.bf16.msra.mxu0 %v1023
  %1750 = vmatprep.subr.bf16.mxu0 0
  %1751 = vmatpush2.bf16.msra.mxu0 0
  %1752 = vmatprep.subr.bf16.mxu0 0
  %1753 = vmatpush2.bf16.msra.mxu0 0
  %1754 = vmatprep.subr.bf16.mxu0 0
  %1755 = vmatpush2.bf16.msra.mxu0 0
  %1756 = vmatprep.subr.bf16.mxu0 0
  %1757 = vmatpush2.bf16.msra.mxu0 0
  %1758 = vmatprep.subr.bf16.mxu0 0
  %1759 = vmatpush2.bf16.msra.mxu0 0
  %1760 = vmatprep.subr.bf16.mxu0 0
  %1761 = vmatpush2.bf16.msra.mxu0 0
  %1762 = vmatprep.subr.bf16.mxu0 0
  %1763 = vmatpush2.bf16.msra.mxu0 0
  %1764 = vmatprep.subr.bf16.mxu0 0
  %1765 = vmatpush2.bf16.msra.mxu0 0
  %1766 = vmatprep.mubr.bf16.mxu0 0
  %1767 = vmatmul.mubr.bf16.gmra.mxu0 %v1714
  %v1768 = vpop.f32.mrf.mxu0
  %v1769 = vadd.f32 0.0, %v1768
  %v1770 = vpop.f32.mrf.mxu0
  %v1771 = vadd.f32 0.0, %v1770
  %v1772 = vpop.f32.mrf.mxu0
  %v1773 = vadd.f32 0.0, %v1772
  %v1774 = vpop.f32.mrf.mxu0
  %v1775 = vadd.f32 0.0, %v1774
  %1776 = vdwg.mxu0
  %1777 = vmatprep.subr.bf16.mxu0 %v1054
  %1778 = vmatpush1.bf16.msra.mxu0 %v1053
  %1779 = vmatprep.subr.bf16.mxu0 %v1050
  %1780 = vmatpush1.bf16.msra.mxu0 %v1049
  %1781 = vmatprep.subr.bf16.mxu0 %v1046
  %1782 = vmatpush1.bf16.msra.mxu0 %v1045
  %1783 = vmatprep.subr.bf16.mxu0 %v1042
  %1784 = vmatpush1.bf16.msra.mxu0 %v1041
  %1785 = vmatprep.subr.bf16.mxu0 %v1038
  %1786 = vmatpush1.bf16.msra.mxu0 %v1037
  %1787 = vmatprep.subr.bf16.mxu0 %v1034
  %1788 = vmatpush1.bf16.msra.mxu0 %v1033
  %1789 = vmatprep.subr.bf16.mxu0 %v1030
  %1790 = vmatpush1.bf16.msra.mxu0 %v1029
  %1791 = vmatprep.subr.bf16.mxu0 %v1026
  %1792 = vmatpush1.bf16.msra.mxu0 %v1025
  %1793 = vmatprep.subr.bf16.mxu0 0
  %1794 = vmatpush2.bf16.msra.mxu0 0
  %1795 = vmatprep.subr.bf16.mxu0 0
  %1796 = vmatpush2.bf16.msra.mxu0 0
  %1797 = vmatprep.subr.bf16.mxu0 0
  %1798 = vmatpush2.bf16.msra.mxu0 0
  %1799 = vmatprep.subr.bf16.mxu0 0
  %1800 = vmatpush2.bf16.msra.mxu0 0
  %1801 = vmatprep.subr.bf16.mxu0 0
  %1802 = vmatpush2.bf16.msra.mxu0 0
  %1803 = vmatprep.subr.bf16.mxu0 0
  %1804 = vmatpush2.bf16.msra.mxu0 0
  %1805 = vmatprep.subr.bf16.mxu0 0
  %1806 = vmatpush2.bf16.msra.mxu0 0
  %1807 = vmatprep.subr.bf16.mxu0 0
  %1808 = vmatpush2.bf16.msra.mxu0 0
  %1809 = vmatprep.mubr.bf16.mxu0 0
  %1810 = vmatmul.mubr.bf16.gmra.mxu0 %v1714
  %v1811 = vpop.f32.mrf.mxu0
  %v1812 = vadd.f32 0.0, %v1811
  %v1813 = vpop.f32.mrf.mxu0
  %v1814 = vadd.f32 0.0, %v1813
  %v1815 = vpop.f32.mrf.mxu0
  %v1816 = vadd.f32 0.0, %v1815
  %v1817 = vpop.f32.mrf.mxu0
  %v1818 = vadd.f32 0.0, %v1817
  %1819 = vdwg.mxu0
  %v1820 = vadd.f32 %v1726, %v1769
  %v1821 = vadd.f32 %v1727, %v1771
  %v1822 = vadd.f32 %v1728, %v1812
  %v1823 = vadd.f32 %v1729, %v1814
  %v1824 = vadd.f32 %v1730, %v1773
  %v1825 = vadd.f32 %v1731, %v1775
  %v1826 = vadd.f32 %v1732, %v1816
  %v1827 = vadd.f32 %v1733, %v1818
  %v1828 = vxor.u32 %v1820, 2147483648
  %v1829 = vxor.u32 %v1824, 2147483648
  %v1830 = vmul.f32 %v1828, 1.442695
  %v1831 = vpow.pop %v1830
  %v1832 = vmul.f32 %v1829, 1.442695
  %v1833 = vpow.pop %v1832
  %v1834 = vadd.f32 %v1831, 1.0
  %v1835 = vadd.f32 %v1833, 1.0
  %v1836 = vrcp.pop %v1834
  %v1837 = vmul.f32 1.0, %v1836
  %v1838 = vrcp.pop %v1835
  %v1839 = vmul.f32 1.0, %v1838
  %v1840 = vxor.u32 %v1821, 2147483648
  %v1841 = vxor.u32 %v1825, 2147483648
  %v1842 = vmul.f32 %v1840, 1.442695
  %v1843 = vpow.pop %v1842
  %v1844 = vmul.f32 %v1841, 1.442695
  %v1845 = vpow.pop %v1844
  %v1846 = vadd.f32 %v1843, 1.0
  %v1847 = vadd.f32 %v1845, 1.0
  %v1848 = vrcp.pop %v1846
  %v1849 = vmul.f32 1.0, %v1848
  %v1850 = vrcp.pop %v1847
  %v1851 = vmul.f32 1.0, %v1850
  %v1852 = vtanh.pop %v1822
  %v1853 = vtanh.pop %v1826
  %v1854 = vxor.u32 %v1823, 2147483648
  %v1855 = vxor.u32 %v1827, 2147483648
  %v1856 = vmul.f32 %v1854, 1.442695
  %v1857 = vpow.pop %v1856
  %v1858 = vmul.f32 %v1855, 1.442695
  %v1859 = vpow.pop %v1858
  %v1860 = vadd.f32 %v1857, 1.0
  %v1861 = vadd.f32 %v1859, 1.0
  %v1862 = vrcp.pop %v1860
  %v1863 = vmul.f32 1.0, %v1862
  %v1864 = vrcp.pop %v1861
  %v1865 = vmul.f32 1.0, %v1864
  %v1866 = vmul.f32 %v1849, %v1708
  %v1867 = vmul.f32 %v1851, %v1709
  %v1868 = vmul.f32 %v1837, %v1852
  %v1869 = vmul.f32 %v1839, %v1853
  %v1870 = vadd.f32 %v1866, %v1868
  %v1871 = vadd.f32 %v1867, %v1869
  %v1872 = vtanh.pop %v1870
  %v1873 = vtanh.pop %v1871
  %v1874 = vmul.f32 %v1863, %v1872
  %v1875 = vmul.f32 %v1865, %v1873
  %v1876 = vpack.c.bf16 %v1875, %v1874
  %v1878 = vunpack.c.l.b16 %v1876
  %v1879 = vunpack.c.h.b16 %v1876
  %v1880 = vpack.c.b16 %v1878, %v1878
  %v1881 = vpack.c.b16 %v1879, %v1879
  %s1884 = scalar_lea.vmem %s4, 32
  %1885 = vst [vmem:[%s1884] sm:$0xf] %v1880
  %1886 = vst [vmem:[%s1884 + $0x4] sm:$0xf] %v1881
  %s1887 = scalar_lea.vmem [#allocation4], 320
  %v1888 = vld [vmem:[%s1887] sm:$0xff]
  %v1889 = vld [vmem:[%s1887 + $0x8] sm:$0xff]
  %v1890 = vld [vmem:[%s1887 + $0x10] sm:$0xff]
  %v1891 = vld [vmem:[%s1887 + $0x18] sm:$0xff]
  %v1892 = vld [vmem:[%s1887 + $0x20] sm:$0xff]
  %v1893 = vld [vmem:[%s1887 + $0x28] sm:$0xff]
  %v1894 = vld [vmem:[%s1887 + $0x30] sm:$0xff]
  %v1895 = vld [vmem:[%s1887 + $0x38] sm:$0xff]
  %1896 = vmatprep.subr.bf16.mxu0 %v1052
  %1897 = vmatpush1.bf16.msra.mxu0 %v1051
  %1898 = vmatprep.subr.bf16.mxu0 %v1048
  %1899 = vmatpush1.bf16.msra.mxu0 %v1047
  %1900 = vmatprep.subr.bf16.mxu0 %v1044
  %1901 = vmatpush1.bf16.msra.mxu0 %v1043
  %1902 = vmatprep.subr.bf16.mxu0 %v1040
  %1903 = vmatpush1.bf16.msra.mxu0 %v1039
  %1904 = vmatprep.subr.bf16.mxu0 %v1036
  %1905 = vmatpush1.bf16.msra.mxu0 %v1035
  %1906 = vmatprep.subr.bf16.mxu0 %v1032
  %1907 = vmatpush1.bf16.msra.mxu0 %v1031
  %1908 = vmatprep.subr.bf16.mxu0 %v1028
  %1909 = vmatpush1.bf16.msra.mxu0 %v1027
  %1910 = vmatprep.subr.bf16.mxu0 %v1024
  %1911 = vmatpush1.bf16.msra.mxu0 %v1023
  %1912 = vmatprep.subr.bf16.mxu0 0
  %1913 = vmatpush2.bf16.msra.mxu0 0
  %1914 = vmatprep.subr.bf16.mxu0 0
  %1915 = vmatpush2.bf16.msra.mxu0 0
  %1916 = vmatprep.subr.bf16.mxu0 0
  %1917 = vmatpush2.bf16.msra.mxu0 0
  %1918 = vmatprep.subr.bf16.mxu0 0
  %1919 = vmatpush2.bf16.msra.mxu0 0
  %1920 = vmatprep.subr.bf16.mxu0 0
  %1921 = vmatpush2.bf16.msra.mxu0 0
  %1922 = vmatprep.subr.bf16.mxu0 0
  %1923 = vmatpush2.bf16.msra.mxu0 0
  %1924 = vmatprep.subr.bf16.mxu0 0
  %1925 = vmatpush2.bf16.msra.mxu0 0
  %1926 = vmatprep.subr.bf16.mxu0 0
  %1927 = vmatpush2.bf16.msra.mxu0 0
  %1928 = vmatprep.mubr.bf16.mxu0 0
  %1929 = vmatmul.mubr.bf16.gmra.mxu0 %v1876
  %v1930 = vpop.f32.mrf.mxu0
  %v1931 = vadd.f32 0.0, %v1930
  %v1932 = vpop.f32.mrf.mxu0
  %v1933 = vadd.f32 0.0, %v1932
  %v1934 = vpop.f32.mrf.mxu0
  %v1935 = vadd.f32 0.0, %v1934
  %v1936 = vpop.f32.mrf.mxu0
  %v1937 = vadd.f32 0.0, %v1936
  %1938 = vdwg.mxu0
  %1939 = vmatprep.subr.bf16.mxu0 %v1054
  %1940 = vmatpush1.bf16.msra.mxu0 %v1053
  %1941 = vmatprep.subr.bf16.mxu0 %v1050
  %1942 = vmatpush1.bf16.msra.mxu0 %v1049
  %1943 = vmatprep.subr.bf16.mxu0 %v1046
  %1944 = vmatpush1.bf16.msra.mxu0 %v1045
  %1945 = vmatprep.subr.bf16.mxu0 %v1042
  %1946 = vmatpush1.bf16.msra.mxu0 %v1041
  %1947 = vmatprep.subr.bf16.mxu0 %v1038
  %1948 = vmatpush1.bf16.msra.mxu0 %v1037
  %1949 = vmatprep.subr.bf16.mxu0 %v1034
  %1950 = vmatpush1.bf16.msra.mxu0 %v1033
  %1951 = vmatprep.subr.bf16.mxu0 %v1030
  %1952 = vmatpush1.bf16.msra.mxu0 %v1029
  %1953 = vmatprep.subr.bf16.mxu0 %v1026
  %1954 = vmatpush1.bf16.msra.mxu0 %v1025
  %1955 = vmatprep.subr.bf16.mxu0 0
  %1956 = vmatpush2.bf16.msra.mxu0 0
  %1957 = vmatprep.subr.bf16.mxu0 0
  %1958 = vmatpush2.bf16.msra.mxu0 0
  %1959 = vmatprep.subr.bf16.mxu0 0
  %1960 = vmatpush2.bf16.msra.mxu0 0
  %1961 = vmatprep.subr.bf16.mxu0 0
  %1962 = vmatpush2.bf16.msra.mxu0 0
  %1963 = vmatprep.subr.bf16.mxu0 0
  %1964 = vmatpush2.bf16.msra.mxu0 0
  %1965 = vmatprep.subr.bf16.mxu0 0
  %1966 = vmatpush2.bf16.msra.mxu0 0
  %1967 = vmatprep.subr.bf16.mxu0 0
  %1968 = vmatpush2.bf16.msra.mxu0 0
  %1969 = vmatprep.subr.bf16.mxu0 0
  %1970 = vmatpush2.bf16.msra.mxu0 0
  %1971 = vmatprep.mubr.bf16.mxu0 0
  %1972 = vmatmul.mubr.bf16.gmra.mxu0 %v1876
  %v1973 = vpop.f32.mrf.mxu0
  %v1974 = vadd.f32 0.0, %v1973
  %v1975 = vpop.f32.mrf.mxu0
  %v1976 = vadd.f32 0.0, %v1975
  %v1977 = vpop.f32.mrf.mxu0
  %v1978 = vadd.f32 0.0, %v1977
  %v1979 = vpop.f32.mrf.mxu0
  %v1980 = vadd.f32 0.0, %v1979
  %1981 = vdwg.mxu0
  %v1982 = vadd.f32 %v1888, %v1931
  %v1983 = vadd.f32 %v1889, %v1933
  %v1984 = vadd.f32 %v1890, %v1974
  %v1985 = vadd.f32 %v1891, %v1976
  %v1986 = vadd.f32 %v1892, %v1935
  %v1987 = vadd.f32 %v1893, %v1937
  %v1988 = vadd.f32 %v1894, %v1978
  %v1989 = vadd.f32 %v1895, %v1980
  %v1990 = vxor.u32 %v1982, 2147483648
  %v1991 = vxor.u32 %v1986, 2147483648
  %v1992 = vmul.f32 %v1990, 1.442695
  %v1993 = vpow.pop %v1992
  %v1994 = vmul.f32 %v1991, 1.442695
  %v1995 = vpow.pop %v1994
  %v1996 = vadd.f32 %v1993, 1.0
  %v1997 = vadd.f32 %v1995, 1.0
  %v1998 = vrcp.pop %v1996
  %v1999 = vmul.f32 1.0, %v1998
  %v2000 = vrcp.pop %v1997
  %v2001 = vmul.f32 1.0, %v2000
  %v2002 = vxor.u32 %v1983, 2147483648
  %v2003 = vxor.u32 %v1987, 2147483648
  %v2004 = vmul.f32 %v2002, 1.442695
  %v2005 = vpow.pop %v2004
  %v2006 = vmul.f32 %v2003, 1.442695
  %v2007 = vpow.pop %v2006
  %v2008 = vadd.f32 %v2005, 1.0
  %v2009 = vadd.f32 %v2007, 1.0
  %v2010 = vrcp.pop %v2008
  %v2011 = vmul.f32 1.0, %v2010
  %v2012 = vrcp.pop %v2009
  %v2013 = vmul.f32 1.0, %v2012
  %v2014 = vtanh.pop %v1984
  %v2015 = vtanh.pop %v1988
  %v2016 = vxor.u32 %v1985, 2147483648
  %v2017 = vxor.u32 %v1989, 2147483648
  %v2018 = vmul.f32 %v2016, 1.442695
  %v2019 = vpow.pop %v2018
  %v2020 = vmul.f32 %v2017, 1.442695
  %v2021 = vpow.pop %v2020
  %v2022 = vadd.f32 %v2019, 1.0
  %v2023 = vadd.f32 %v2021, 1.0
  %v2024 = vrcp.pop %v2022
  %v2025 = vmul.f32 1.0, %v2024
  %v2026 = vrcp.pop %v2023
  %v2027 = vmul.f32 1.0, %v2026
  %v2028 = vmul.f32 %v2011, %v1870
  %v2029 = vmul.f32 %v2013, %v1871
  %v2030 = vmul.f32 %v1999, %v2014
  %v2031 = vmul.f32 %v2001, %v2015
  %v2032 = vadd.f32 %v2028, %v2030
  %v2033 = vadd.f32 %v2029, %v2031
  %v2034 = vtanh.pop %v2032
  %v2035 = vtanh.pop %v2033
  %v2036 = vmul.f32 %v2025, %v2034
  %v2037 = vmul.f32 %v2027, %v2035
  %v2038 = vpack.c.bf16 %v2037, %v2036
  %v2040 = vunpack.c.l.b16 %v2038
  %v2041 = vunpack.c.h.b16 %v2038
  %v2042 = vpack.c.b16 %v2040, %v2040
  %v2043 = vpack.c.b16 %v2041, %v2041
  %s2046 = scalar_lea.vmem %s4, 40
  %2047 = vst [vmem:[%s2046] sm:$0xf] %v2042
  %2048 = vst [vmem:[%s2046 + $0x4] sm:$0xf] %v2043
  %s2049 = scalar_lea.vmem [#allocation4], 384
  %v2050 = vld [vmem:[%s2049] sm:$0xff]
  %v2051 = vld [vmem:[%s2049 + $0x8] sm:$0xff]
  %v2052 = vld [vmem:[%s2049 + $0x10] sm:$0xff]
  %v2053 = vld [vmem:[%s2049 + $0x18] sm:$0xff]
  %v2054 = vld [vmem:[%s2049 + $0x20] sm:$0xff]
  %v2055 = vld [vmem:[%s2049 + $0x28] sm:$0xff]
  %v2056 = vld [vmem:[%s2049 + $0x30] sm:$0xff]
  %v2057 = vld [vmem:[%s2049 + $0x38] sm:$0xff]
  %2058 = vmatprep.subr.bf16.mxu0 %v1052
  %2059 = vmatpush1.bf16.msra.mxu0 %v1051
  %2060 = vmatprep.subr.bf16.mxu0 %v1048
  %2061 = vmatpush1.bf16.msra.mxu0 %v1047
  %2062 = vmatprep.subr.bf16.mxu0 %v1044
  %2063 = vmatpush1.bf16.msra.mxu0 %v1043
  %2064 = vmatprep.subr.bf16.mxu0 %v1040
  %2065 = vmatpush1.bf16.msra.mxu0 %v1039
  %2066 = vmatprep.subr.bf16.mxu0 %v1036
  %2067 = vmatpush1.bf16.msra.mxu0 %v1035
  %2068 = vmatprep.subr.bf16.mxu0 %v1032
  %2069 = vmatpush1.bf16.msra.mxu0 %v1031
  %2070 = vmatprep.subr.bf16.mxu0 %v1028
  %2071 = vmatpush1.bf16.msra.mxu0 %v1027
  %2072 = vmatprep.subr.bf16.mxu0 %v1024
  %2073 = vmatpush1.bf16.msra.mxu0 %v1023
  %2074 = vmatprep.subr.bf16.mxu0 0
  %2075 = vmatpush2.bf16.msra.mxu0 0
  %2076 = vmatprep.subr.bf16.mxu0 0
  %2077 = vmatpush2.bf16.msra.mxu0 0
  %2078 = vmatprep.subr.bf16.mxu0 0
  %2079 = vmatpush2.bf16.msra.mxu0 0
  %2080 = vmatprep.subr.bf16.mxu0 0
  %2081 = vmatpush2.bf16.msra.mxu0 0
  %2082 = vmatprep.subr.bf16.mxu0 0
  %2083 = vmatpush2.bf16.msra.mxu0 0
  %2084 = vmatprep.subr.bf16.mxu0 0
  %2085 = vmatpush2.bf16.msra.mxu0 0
  %2086 = vmatprep.subr.bf16.mxu0 0
  %2087 = vmatpush2.bf16.msra.mxu0 0
  %2088 = vmatprep.subr.bf16.mxu0 0
  %2089 = vmatpush2.bf16.msra.mxu0 0
  %2090 = vmatprep.mubr.bf16.mxu0 0
  %2091 = vmatmul.mubr.bf16.gmra.mxu0 %v2038
  %v2092 = vpop.f32.mrf.mxu0
  %v2093 = vadd.f32 0.0, %v2092
  %v2094 = vpop.f32.mrf.mxu0
  %v2095 = vadd.f32 0.0, %v2094
  %v2096 = vpop.f32.mrf.mxu0
  %v2097 = vadd.f32 0.0, %v2096
  %v2098 = vpop.f32.mrf.mxu0
  %v2099 = vadd.f32 0.0, %v2098
  %2100 = vdwg.mxu0
  %2101 = vmatprep.subr.bf16.mxu0 %v1054
  %2102 = vmatpush1.bf16.msra.mxu0 %v1053
  %2103 = vmatprep.subr.bf16.mxu0 %v1050
  %2104 = vmatpush1.bf16.msra.mxu0 %v1049
  %2105 = vmatprep.subr.bf16.mxu0 %v1046
  %2106 = vmatpush1.bf16.msra.mxu0 %v1045
  %2107 = vmatprep.subr.bf16.mxu0 %v1042
  %2108 = vmatpush1.bf16.msra.mxu0 %v1041
  %2109 = vmatprep.subr.bf16.mxu0 %v1038
  %2110 = vmatpush1.bf16.msra.mxu0 %v1037
  %2111 = vmatprep.subr.bf16.mxu0 %v1034
  %2112 = vmatpush1.bf16.msra.mxu0 %v1033
  %2113 = vmatprep.subr.bf16.mxu0 %v1030
  %2114 = vmatpush1.bf16.msra.mxu0 %v1029
  %2115 = vmatprep.subr.bf16.mxu0 %v1026
  %2116 = vmatpush1.bf16.msra.mxu0 %v1025
  %2117 = vmatprep.subr.bf16.mxu0 0
  %2118 = vmatpush2.bf16.msra.mxu0 0
  %2119 = vmatprep.subr.bf16.mxu0 0
  %2120 = vmatpush2.bf16.msra.mxu0 0
  %2121 = vmatprep.subr.bf16.mxu0 0
  %2122 = vmatpush2.bf16.msra.mxu0 0
  %2123 = vmatprep.subr.bf16.mxu0 0
  %2124 = vmatpush2.bf16.msra.mxu0 0
  %2125 = vmatprep.subr.bf16.mxu0 0
  %2126 = vmatpush2.bf16.msra.mxu0 0
  %2127 = vmatprep.subr.bf16.mxu0 0
  %2128 = vmatpush2.bf16.msra.mxu0 0
  %2129 = vmatprep.subr.bf16.mxu0 0
  %2130 = vmatpush2.bf16.msra.mxu0 0
  %2131 = vmatprep.subr.bf16.mxu0 0
  %2132 = vmatpush2.bf16.msra.mxu0 0
  %2133 = vmatprep.mubr.bf16.mxu0 0
  %2134 = vmatmul.mubr.bf16.gmra.mxu0 %v2038
  %v2135 = vpop.f32.mrf.mxu0
  %v2136 = vadd.f32 0.0, %v2135
  %v2137 = vpop.f32.mrf.mxu0
  %v2138 = vadd.f32 0.0, %v2137
  %v2139 = vpop.f32.mrf.mxu0
  %v2140 = vadd.f32 0.0, %v2139
  %v2141 = vpop.f32.mrf.mxu0
  %v2142 = vadd.f32 0.0, %v2141
  %2143 = vdwg.mxu0
  %v2144 = vadd.f32 %v2050, %v2093
  %v2145 = vadd.f32 %v2051, %v2095
  %v2146 = vadd.f32 %v2052, %v2136
  %v2147 = vadd.f32 %v2053, %v2138
  %v2148 = vadd.f32 %v2054, %v2097
  %v2149 = vadd.f32 %v2055, %v2099
  %v2150 = vadd.f32 %v2056, %v2140
  %v2151 = vadd.f32 %v2057, %v2142
  %v2152 = vxor.u32 %v2144, 2147483648
  %v2153 = vxor.u32 %v2148, 2147483648
  %v2154 = vmul.f32 %v2152, 1.442695
  %v2155 = vpow.pop %v2154
  %v2156 = vmul.f32 %v2153, 1.442695
  %v2157 = vpow.pop %v2156
  %v2158 = vadd.f32 %v2155, 1.0
  %v2159 = vadd.f32 %v2157, 1.0
  %v2160 = vrcp.pop %v2158
  %v2161 = vmul.f32 1.0, %v2160
  %v2162 = vrcp.pop %v2159
  %v2163 = vmul.f32 1.0, %v2162
  %v2164 = vxor.u32 %v2145, 2147483648
  %v2165 = vxor.u32 %v2149, 2147483648
  %v2166 = vmul.f32 %v2164, 1.442695
  %v2167 = vpow.pop %v2166
  %v2168 = vmul.f32 %v2165, 1.442695
  %v2169 = vpow.pop %v2168
  %v2170 = vadd.f32 %v2167, 1.0
  %v2171 = vadd.f32 %v2169, 1.0
  %v2172 = vrcp.pop %v2170
  %v2173 = vmul.f32 1.0, %v2172
  %v2174 = vrcp.pop %v2171
  %v2175 = vmul.f32 1.0, %v2174
  %v2176 = vtanh.pop %v2146
  %v2177 = vtanh.pop %v2150
  %v2178 = vxor.u32 %v2147, 2147483648
  %v2179 = vxor.u32 %v2151, 2147483648
  %v2180 = vmul.f32 %v2178, 1.442695
  %v2181 = vpow.pop %v2180
  %v2182 = vmul.f32 %v2179, 1.442695
  %v2183 = vpow.pop %v2182
  %v2184 = vadd.f32 %v2181, 1.0
  %v2185 = vadd.f32 %v2183, 1.0
  %v2186 = vrcp.pop %v2184
  %v2187 = vmul.f32 1.0, %v2186
  %v2188 = vrcp.pop %v2185
  %v2189 = vmul.f32 1.0, %v2188
  %v2190 = vmul.f32 %v2173, %v2032
  %v2191 = vmul.f32 %v2175, %v2033
  %v2192 = vmul.f32 %v2161, %v2176
  %v2193 = vmul.f32 %v2163, %v2177
  %v2194 = vadd.f32 %v2190, %v2192
  %v2195 = vadd.f32 %v2191, %v2193
  %v2196 = vtanh.pop %v2194
  %v2197 = vtanh.pop %v2195
  %v2198 = vmul.f32 %v2187, %v2196
  %v2199 = vmul.f32 %v2189, %v2197
  %v2200 = vpack.c.bf16 %v2199, %v2198
  %v2202 = vunpack.c.l.b16 %v2200
  %v2203 = vunpack.c.h.b16 %v2200
  %v2204 = vpack.c.b16 %v2202, %v2202
  %v2205 = vpack.c.b16 %v2203, %v2203
  %s2208 = scalar_lea.vmem %s4, 48
  %2209 = vst [vmem:[%s2208] sm:$0xf] %v2204
  %2210 = vst [vmem:[%s2208 + $0x4] sm:$0xf] %v2205
  %s2211 = scalar_lea.vmem [#allocation4], 448
  %v2212 = vld [vmem:[%s2211] sm:$0xff]
  %v2213 = vld [vmem:[%s2211 + $0x8] sm:$0xff]
  %v2214 = vld [vmem:[%s2211 + $0x10] sm:$0xff]
  %v2215 = vld [vmem:[%s2211 + $0x18] sm:$0xff]
  %v2216 = vld [vmem:[%s2211 + $0x20] sm:$0xff]
  %v2217 = vld [vmem:[%s2211 + $0x28] sm:$0xff]
  %v2218 = vld [vmem:[%s2211 + $0x30] sm:$0xff]
  %v2219 = vld [vmem:[%s2211 + $0x38] sm:$0xff]
  %2220 = vmatprep.subr.bf16.mxu0 %v1052
  %2221 = vmatpush1.bf16.msra.mxu0 %v1051
  %2222 = vmatprep.subr.bf16.mxu0 %v1048
  %2223 = vmatpush1.bf16.msra.mxu0 %v1047
  %2224 = vmatprep.subr.bf16.mxu0 %v1044
  %2225 = vmatpush1.bf16.msra.mxu0 %v1043
  %2226 = vmatprep.subr.bf16.mxu0 %v1040
  %2227 = vmatpush1.bf16.msra.mxu0 %v1039
  %2228 = vmatprep.subr.bf16.mxu0 %v1036
  %2229 = vmatpush1.bf16.msra.mxu0 %v1035
  %2230 = vmatprep.subr.bf16.mxu0 %v1032
  %2231 = vmatpush1.bf16.msra.mxu0 %v1031
  %2232 = vmatprep.subr.bf16.mxu0 %v1028
  %2233 = vmatpush1.bf16.msra.mxu0 %v1027
  %2234 = vmatprep.subr.bf16.mxu0 %v1024
  %2235 = vmatpush1.bf16.msra.mxu0 %v1023
  %2236 = vmatprep.subr.bf16.mxu0 0
  %2237 = vmatpush2.bf16.msra.mxu0 0
  %2238 = vmatprep.subr.bf16.mxu0 0
  %2239 = vmatpush2.bf16.msra.mxu0 0
  %2240 = vmatprep.subr.bf16.mxu0 0
  %2241 = vmatpush2.bf16.msra.mxu0 0
  %2242 = vmatprep.subr.bf16.mxu0 0
  %2243 = vmatpush2.bf16.msra.mxu0 0
  %2244 = vmatprep.subr.bf16.mxu0 0
  %2245 = vmatpush2.bf16.msra.mxu0 0
  %2246 = vmatprep.subr.bf16.mxu0 0
  %2247 = vmatpush2.bf16.msra.mxu0 0
  %2248 = vmatprep.subr.bf16.mxu0 0
  %2249 = vmatpush2.bf16.msra.mxu0 0
  %2250 = vmatprep.subr.bf16.mxu0 0
  %2251 = vmatpush2.bf16.msra.mxu0 0
  %2252 = vmatprep.mubr.bf16.mxu0 0
  %2253 = vmatmul.mubr.bf16.gmra.mxu0 %v2200
  %v2254 = vpop.f32.mrf.mxu0
  %v2255 = vadd.f32 0.0, %v2254
  %v2256 = vpop.f32.mrf.mxu0
  %v2257 = vadd.f32 0.0, %v2256
  %v2258 = vpop.f32.mrf.mxu0
  %v2259 = vadd.f32 0.0, %v2258
  %v2260 = vpop.f32.mrf.mxu0
  %v2261 = vadd.f32 0.0, %v2260
  %2262 = vdwg.mxu0
  %2263 = vmatprep.subr.bf16.mxu0 %v1054
  %2264 = vmatpush1.bf16.msra.mxu0 %v1053
  %2265 = vmatprep.subr.bf16.mxu0 %v1050
  %2266 = vmatpush1.bf16.msra.mxu0 %v1049
  %2267 = vmatprep.subr.bf16.mxu0 %v1046
  %2268 = vmatpush1.bf16.msra.mxu0 %v1045
  %2269 = vmatprep.subr.bf16.mxu0 %v1042
  %2270 = vmatpush1.bf16.msra.mxu0 %v1041
  %2271 = vmatprep.subr.bf16.mxu0 %v1038
  %2272 = vmatpush1.bf16.msra.mxu0 %v1037
  %2273 = vmatprep.subr.bf16.mxu0 %v1034
  %2274 = vmatpush1.bf16.msra.mxu0 %v1033
  %2275 = vmatprep.subr.bf16.mxu0 %v1030
  %2276 = vmatpush1.bf16.msra.mxu0 %v1029
  %2277 = vmatprep.subr.bf16.mxu0 %v1026
  %2278 = vmatpush1.bf16.msra.mxu0 %v1025
  %2279 = vmatprep.subr.bf16.mxu0 0
  %2280 = vmatpush2.bf16.msra.mxu0 0
  %2281 = vmatprep.subr.bf16.mxu0 0
  %2282 = vmatpush2.bf16.msra.mxu0 0
  %2283 = vmatprep.subr.bf16.mxu0 0
  %2284 = vmatpush2.bf16.msra.mxu0 0
  %2285 = vmatprep.subr.bf16.mxu0 0
  %2286 = vmatpush2.bf16.msra.mxu0 0
  %2287 = vmatprep.subr.bf16.mxu0 0
  %2288 = vmatpush2.bf16.msra.mxu0 0
  %2289 = vmatprep.subr.bf16.mxu0 0
  %2290 = vmatpush2.bf16.msra.mxu0 0
  %2291 = vmatprep.subr.bf16.mxu0 0
  %2292 = vmatpush2.bf16.msra.mxu0 0
  %2293 = vmatprep.subr.bf16.mxu0 0
  %2294 = vmatpush2.bf16.msra.mxu0 0
  %2295 = vmatprep.mubr.bf16.mxu0 0
  %2296 = vmatmul.mubr.bf16.gmra.mxu0 %v2200
  %v2297 = vpop.f32.mrf.mxu0
  %v2298 = vadd.f32 0.0, %v2297
  %v2299 = vpop.f32.mrf.mxu0
  %v2300 = vadd.f32 0.0, %v2299
  %v2301 = vpop.f32.mrf.mxu0
  %v2302 = vadd.f32 0.0, %v2301
  %v2303 = vpop.f32.mrf.mxu0
  %v2304 = vadd.f32 0.0, %v2303
  %2305 = vdwg.mxu0
  %v2306 = vadd.f32 %v2212, %v2255
  %v2307 = vadd.f32 %v2213, %v2257
  %v2308 = vadd.f32 %v2214, %v2298
  %v2309 = vadd.f32 %v2215, %v2300
  %v2310 = vadd.f32 %v2216, %v2259
  %v2311 = vadd.f32 %v2217, %v2261
  %v2312 = vadd.f32 %v2218, %v2302
  %v2313 = vadd.f32 %v2219, %v2304
  %v2314 = vxor.u32 %v2306, 2147483648
  %v2315 = vxor.u32 %v2310, 2147483648
  %v2316 = vmul.f32 %v2314, 1.442695
  %v2317 = vpow.pop %v2316
  %v2318 = vmul.f32 %v2315, 1.442695
  %v2319 = vpow.pop %v2318
  %v2320 = vadd.f32 %v2317, 1.0
  %v2321 = vadd.f32 %v2319, 1.0
  %v2322 = vrcp.pop %v2320
  %v2323 = vmul.f32 1.0, %v2322
  %v2324 = vrcp.pop %v2321
  %v2325 = vmul.f32 1.0, %v2324
  %v2326 = vxor.u32 %v2307, 2147483648
  %v2327 = vxor.u32 %v2311, 2147483648
  %v2328 = vmul.f32 %v2326, 1.442695
  %v2329 = vpow.pop %v2328
  %v2330 = vmul.f32 %v2327, 1.442695
  %v2331 = vpow.pop %v2330
  %v2332 = vadd.f32 %v2329, 1.0
  %v2333 = vadd.f32 %v2331, 1.0
  %v2334 = vrcp.pop %v2332
  %v2335 = vmul.f32 1.0, %v2334
  %v2336 = vrcp.pop %v2333
  %v2337 = vmul.f32 1.0, %v2336
  %v2338 = vtanh.pop %v2308
  %v2339 = vtanh.pop %v2312
  %v2340 = vxor.u32 %v2309, 2147483648
  %v2341 = vxor.u32 %v2313, 2147483648
  %v2342 = vmul.f32 %v2340, 1.442695
  %v2343 = vpow.pop %v2342
  %v2344 = vmul.f32 %v2341, 1.442695
  %v2345 = vpow.pop %v2344
  %v2346 = vadd.f32 %v2343, 1.0
  %v2347 = vadd.f32 %v2345, 1.0
  %v2348 = vrcp.pop %v2346
  %v2349 = vmul.f32 1.0, %v2348
  %v2350 = vrcp.pop %v2347
  %v2351 = vmul.f32 1.0, %v2350
  %v2352 = vmul.f32 %v2335, %v2194
  %v2353 = vmul.f32 %v2337, %v2195
  %v2354 = vmul.f32 %v2323, %v2338
  %v2355 = vmul.f32 %v2325, %v2339
  %v2356 = vadd.f32 %v2352, %v2354
  %v2357 = vadd.f32 %v2353, %v2355
  %v2358 = vtanh.pop %v2356
  %v2359 = vtanh.pop %v2357
  %v2360 = vmul.f32 %v2349, %v2358
  %v2361 = vmul.f32 %v2351, %v2359
  %v2362 = vpack.c.bf16 %v2361, %v2360
  %v2364 = vunpack.c.l.b16 %v2362
  %v2365 = vunpack.c.h.b16 %v2362
  %v2366 = vpack.c.b16 %v2364, %v2364
  %v2367 = vpack.c.b16 %v2365, %v2365
  %s2370 = scalar_lea.vmem %s4, 56
  %2371 = vst [vmem:[%s2370] sm:$0xf] %v2366
  %2372 = vst [vmem:[%s2370 + $0x4] sm:$0xf] %v2367
  %s2373 = scalar_lea.vmem [#allocation4], 512
  %v2374 = vld [vmem:[%s2373] sm:$0xff]
  %v2375 = vld [vmem:[%s2373 + $0x8] sm:$0xff]
  %v2376 = vld [vmem:[%s2373 + $0x10] sm:$0xff]
  %v2377 = vld [vmem:[%s2373 + $0x18] sm:$0xff]
  %v2378 = vld [vmem:[%s2373 + $0x20] sm:$0xff]
  %v2379 = vld [vmem:[%s2373 + $0x28] sm:$0xff]
  %v2380 = vld [vmem:[%s2373 + $0x30] sm:$0xff]
  %v2381 = vld [vmem:[%s2373 + $0x38] sm:$0xff]
  %2382 = vmatprep.subr.bf16.mxu0 %v1052
  %2383 = vmatpush1.bf16.msra.mxu0 %v1051
  %2384 = vmatprep.subr.bf16.mxu0 %v1048
  %2385 = vmatpush1.bf16.msra.mxu0 %v1047
  %2386 = vmatprep.subr.bf16.mxu0 %v1044
  %2387 = vmatpush1.bf16.msra.mxu0 %v1043
  %2388 = vmatprep.subr.bf16.mxu0 %v1040
  %2389 = vmatpush1.bf16.msra.mxu0 %v1039
  %2390 = vmatprep.subr.bf16.mxu0 %v1036
  %2391 = vmatpush1.bf16.msra.mxu0 %v1035
  %2392 = vmatprep.subr.bf16.mxu0 %v1032
  %2393 = vmatpush1.bf16.msra.mxu0 %v1031
  %2394 = vmatprep.subr.bf16.mxu0 %v1028
  %2395 = vmatpush1.bf16.msra.mxu0 %v1027
  %2396 = vmatprep.subr.bf16.mxu0 %v1024
  %2397 = vmatpush1.bf16.msra.mxu0 %v1023
  %2398 = vmatprep.subr.bf16.mxu0 0
  %2399 = vmatpush2.bf16.msra.mxu0 0
  %2400 = vmatprep.subr.bf16.mxu0 0
  %2401 = vmatpush2.bf16.msra.mxu0 0
  %2402 = vmatprep.subr.bf16.mxu0 0
  %2403 = vmatpush2.bf16.msra.mxu0 0
  %2404 = vmatprep.subr.bf16.mxu0 0
  %2405 = vmatpush2.bf16.msra.mxu0 0
  %2406 = vmatprep.subr.bf16.mxu0 0
  %2407 = vmatpush2.bf16.msra.mxu0 0
  %2408 = vmatprep.subr.bf16.mxu0 0
  %2409 = vmatpush2.bf16.msra.mxu0 0
  %2410 = vmatprep.subr.bf16.mxu0 0
  %2411 = vmatpush2.bf16.msra.mxu0 0
  %2412 = vmatprep.subr.bf16.mxu0 0
  %2413 = vmatpush2.bf16.msra.mxu0 0
  %2414 = vmatprep.mubr.bf16.mxu0 0
  %2415 = vmatmul.mubr.bf16.gmra.mxu0 %v2362
  %v2416 = vpop.f32.mrf.mxu0
  %v2417 = vadd.f32 0.0, %v2416
  %v2418 = vpop.f32.mrf.mxu0
  %v2419 = vadd.f32 0.0, %v2418
  %v2420 = vpop.f32.mrf.mxu0
  %v2421 = vadd.f32 0.0, %v2420
  %v2422 = vpop.f32.mrf.mxu0
  %v2423 = vadd.f32 0.0, %v2422
  %2424 = vdwg.mxu0
  %2425 = vmatprep.subr.bf16.mxu0 %v1054
  %2426 = vmatpush1.bf16.msra.mxu0 %v1053
  %2427 = vmatprep.subr.bf16.mxu0 %v1050
  %2428 = vmatpush1.bf16.msra.mxu0 %v1049
  %2429 = vmatprep.subr.bf16.mxu0 %v1046
  %2430 = vmatpush1.bf16.msra.mxu0 %v1045
  %2431 = vmatprep.subr.bf16.mxu0 %v1042
  %2432 = vmatpush1.bf16.msra.mxu0 %v1041
  %2433 = vmatprep.subr.bf16.mxu0 %v1038
  %2434 = vmatpush1.bf16.msra.mxu0 %v1037
  %2435 = vmatprep.subr.bf16.mxu0 %v1034
  %2436 = vmatpush1.bf16.msra.mxu0 %v1033
  %2437 = vmatprep.subr.bf16.mxu0 %v1030
  %2438 = vmatpush1.bf16.msra.mxu0 %v1029
  %2439 = vmatprep.subr.bf16.mxu0 %v1026
  %2440 = vmatpush1.bf16.msra.mxu0 %v1025
  %2441 = vmatprep.subr.bf16.mxu0 0
  %2442 = vmatpush2.bf16.msra.mxu0 0
  %2443 = vmatprep.subr.bf16.mxu0 0
  %2444 = vmatpush2.bf16.msra.mxu0 0
  %2445 = vmatprep.subr.bf16.mxu0 0
  %2446 = vmatpush2.bf16.msra.mxu0 0
  %2447 = vmatprep.subr.bf16.mxu0 0
  %2448 = vmatpush2.bf16.msra.mxu0 0
  %2449 = vmatprep.subr.bf16.mxu0 0
  %2450 = vmatpush2.bf16.msra.mxu0 0
  %2451 = vmatprep.subr.bf16.mxu0 0
  %2452 = vmatpush2.bf16.msra.mxu0 0
  %2453 = vmatprep.subr.bf16.mxu0 0
  %2454 = vmatpush2.bf16.msra.mxu0 0
  %2455 = vmatprep.subr.bf16.mxu0 0
  %2456 = vmatpush2.bf16.msra.mxu0 0
  %2457 = vmatprep.mubr.bf16.mxu0 0
  %2458 = vmatmul.mubr.bf16.gmra.mxu0 %v2362
  %v2459 = vpop.f32.mrf.mxu0
  %v2460 = vadd.f32 0.0, %v2459
  %v2461 = vpop.f32.mrf.mxu0
  %v2462 = vadd.f32 0.0, %v2461
  %v2463 = vpop.f32.mrf.mxu0
  %v2464 = vadd.f32 0.0, %v2463
  %v2465 = vpop.f32.mrf.mxu0
  %v2466 = vadd.f32 0.0, %v2465
  %2467 = vdwg.mxu0
  %v2468 = vadd.f32 %v2374, %v2417
  %v2469 = vadd.f32 %v2375, %v2419
  %v2470 = vadd.f32 %v2376, %v2460
  %v2471 = vadd.f32 %v2377, %v2462
  %v2472 = vadd.f32 %v2378, %v2421
  %v2473 = vadd.f32 %v2379, %v2423
  %v2474 = vadd.f32 %v2380, %v2464
  %v2475 = vadd.f32 %v2381, %v2466
  %v2476 = vxor.u32 %v2468, 2147483648
  %v2477 = vxor.u32 %v2472, 2147483648
  %v2478 = vmul.f32 %v2476, 1.442695
  %v2479 = vpow.pop %v2478
  %v2480 = vmul.f32 %v2477, 1.442695
  %v2481 = vpow.pop %v2480
  %v2482 = vadd.f32 %v2479, 1.0
  %v2483 = vadd.f32 %v2481, 1.0
  %v2484 = vrcp.pop %v2482
  %v2485 = vmul.f32 1.0, %v2484
  %v2486 = vrcp.pop %v2483
  %v2487 = vmul.f32 1.0, %v2486
  %v2488 = vxor.u32 %v2469, 2147483648
  %v2489 = vxor.u32 %v2473, 2147483648
  %v2490 = vmul.f32 %v2488, 1.442695
  %v2491 = vpow.pop %v2490
  %v2492 = vmul.f32 %v2489, 1.442695
  %v2493 = vpow.pop %v2492
  %v2494 = vadd.f32 %v2491, 1.0
  %v2495 = vadd.f32 %v2493, 1.0
  %v2496 = vrcp.pop %v2494
  %v2497 = vmul.f32 1.0, %v2496
  %v2498 = vrcp.pop %v2495
  %v2499 = vmul.f32 1.0, %v2498
  %v2500 = vtanh.pop %v2470
  %v2501 = vtanh.pop %v2474
  %v2502 = vxor.u32 %v2471, 2147483648
  %v2503 = vxor.u32 %v2475, 2147483648
  %v2504 = vmul.f32 %v2502, 1.442695
  %v2505 = vpow.pop %v2504
  %v2506 = vmul.f32 %v2503, 1.442695
  %v2507 = vpow.pop %v2506
  %v2508 = vadd.f32 %v2505, 1.0
  %v2509 = vadd.f32 %v2507, 1.0
  %v2510 = vrcp.pop %v2508
  %v2511 = vmul.f32 1.0, %v2510
  %v2512 = vrcp.pop %v2509
  %v2513 = vmul.f32 1.0, %v2512
  %v2514 = vmul.f32 %v2497, %v2356
  %v2515 = vmul.f32 %v2499, %v2357
  %v2516 = vmul.f32 %v2485, %v2500
  %v2517 = vmul.f32 %v2487, %v2501
  %v2518 = vadd.f32 %v2514, %v2516
  %v2519 = vadd.f32 %v2515, %v2517
  %v2520 = vtanh.pop %v2518
  %v2521 = vtanh.pop %v2519
  %v2522 = vmul.f32 %v2511, %v2520
  %v2523 = vmul.f32 %v2513, %v2521
  %v2524 = vpack.c.bf16 %v2523, %v2522
  %v2526 = vunpack.c.l.b16 %v2524
  %v2527 = vunpack.c.h.b16 %v2524
  %v2528 = vpack.c.b16 %v2526, %v2526
  %v2529 = vpack.c.b16 %v2527, %v2527
  %s2532 = scalar_lea.vmem %s4, 64
  %2533 = vst [vmem:[%s2532] sm:$0xf] %v2528
  %2534 = vst [vmem:[%s2532 + $0x4] sm:$0xf] %v2529
  %s2535 = scalar_lea.vmem [#allocation4], 576
  %v2536 = vld [vmem:[%s2535] sm:$0xff]
  %v2537 = vld [vmem:[%s2535 + $0x8] sm:$0xff]
  %v2538 = vld [vmem:[%s2535 + $0x10] sm:$0xff]
  %v2539 = vld [vmem:[%s2535 + $0x18] sm:$0xff]
  %v2540 = vld [vmem:[%s2535 + $0x20] sm:$0xff]
  %v2541 = vld [vmem:[%s2535 + $0x28] sm:$0xff]
  %v2542 = vld [vmem:[%s2535 + $0x30] sm:$0xff]
  %v2543 = vld [vmem:[%s2535 + $0x38] sm:$0xff]
  %2544 = vmatprep.subr.bf16.mxu0 %v1052
  %2545 = vmatpush1.bf16.msra.mxu0 %v1051
  %2546 = vmatprep.subr.bf16.mxu0 %v1048
  %2547 = vmatpush1.bf16.msra.mxu0 %v1047
  %2548 = vmatprep.subr.bf16.mxu0 %v1044
  %2549 = vmatpush1.bf16.msra.mxu0 %v1043
  %2550 = vmatprep.subr.bf16.mxu0 %v1040
  %2551 = vmatpush1.bf16.msra.mxu0 %v1039
  %2552 = vmatprep.subr.bf16.mxu0 %v1036
  %2553 = vmatpush1.bf16.msra.mxu0 %v1035
  %2554 = vmatprep.subr.bf16.mxu0 %v1032
  %2555 = vmatpush1.bf16.msra.mxu0 %v1031
  %2556 = vmatprep.subr.bf16.mxu0 %v1028
  %2557 = vmatpush1.bf16.msra.mxu0 %v1027
  %2558 = vmatprep.subr.bf16.mxu0 %v1024
  %2559 = vmatpush1.bf16.msra.mxu0 %v1023
  %2560 = vmatprep.subr.bf16.mxu0 0
  %2561 = vmatpush2.bf16.msra.mxu0 0
  %2562 = vmatprep.subr.bf16.mxu0 0
  %2563 = vmatpush2.bf16.msra.mxu0 0
  %2564 = vmatprep.subr.bf16.mxu0 0
  %2565 = vmatpush2.bf16.msra.mxu0 0
  %2566 = vmatprep.subr.bf16.mxu0 0
  %2567 = vmatpush2.bf16.msra.mxu0 0
  %2568 = vmatprep.subr.bf16.mxu0 0
  %2569 = vmatpush2.bf16.msra.mxu0 0
  %2570 = vmatprep.subr.bf16.mxu0 0
  %2571 = vmatpush2.bf16.msra.mxu0 0
  %2572 = vmatprep.subr.bf16.mxu0 0
  %2573 = vmatpush2.bf16.msra.mxu0 0
  %2574 = vmatprep.subr.bf16.mxu0 0
  %2575 = vmatpush2.bf16.msra.mxu0 0
  %2576 = vmatprep.mubr.bf16.mxu0 0
  %2577 = vmatmul.mubr.bf16.gmra.mxu0 %v2524
  %v2578 = vpop.f32.mrf.mxu0
  %v2579 = vadd.f32 0.0, %v2578
  %v2580 = vpop.f32.mrf.mxu0
  %v2581 = vadd.f32 0.0, %v2580
  %v2582 = vpop.f32.mrf.mxu0
  %v2583 = vadd.f32 0.0, %v2582
  %v2584 = vpop.f32.mrf.mxu0
  %v2585 = vadd.f32 0.0, %v2584
  %2586 = vdwg.mxu0
  %2587 = vmatprep.subr.bf16.mxu0 %v1054
  %2588 = vmatpush1.bf16.msra.mxu0 %v1053
  %2589 = vmatprep.subr.bf16.mxu0 %v1050
  %2590 = vmatpush1.bf16.msra.mxu0 %v1049
  %2591 = vmatprep.subr.bf16.mxu0 %v1046
  %2592 = vmatpush1.bf16.msra.mxu0 %v1045
  %2593 = vmatprep.subr.bf16.mxu0 %v1042
  %2594 = vmatpush1.bf16.msra.mxu0 %v1041
  %2595 = vmatprep.subr.bf16.mxu0 %v1038
  %2596 = vmatpush1.bf16.msra.mxu0 %v1037
  %2597 = vmatprep.subr.bf16.mxu0 %v1034
  %2598 = vmatpush1.bf16.msra.mxu0 %v1033
  %2599 = vmatprep.subr.bf16.mxu0 %v1030
  %2600 = vmatpush1.bf16.msra.mxu0 %v1029
  %2601 = vmatprep.subr.bf16.mxu0 %v1026
  %2602 = vmatpush1.bf16.msra.mxu0 %v1025
  %2603 = vmatprep.subr.bf16.mxu0 0
  %2604 = vmatpush2.bf16.msra.mxu0 0
  %2605 = vmatprep.subr.bf16.mxu0 0
  %2606 = vmatpush2.bf16.msra.mxu0 0
  %2607 = vmatprep.subr.bf16.mxu0 0
  %2608 = vmatpush2.bf16.msra.mxu0 0
  %2609 = vmatprep.subr.bf16.mxu0 0
  %2610 = vmatpush2.bf16.msra.mxu0 0
  %2611 = vmatprep.subr.bf16.mxu0 0
  %2612 = vmatpush2.bf16.msra.mxu0 0
  %2613 = vmatprep.subr.bf16.mxu0 0
  %2614 = vmatpush2.bf16.msra.mxu0 0
  %2615 = vmatprep.subr.bf16.mxu0 0
  %2616 = vmatpush2.bf16.msra.mxu0 0
  %2617 = vmatprep.subr.bf16.mxu0 0
  %2618 = vmatpush2.bf16.msra.mxu0 0
  %2619 = vmatprep.mubr.bf16.mxu0 0
  %2620 = vmatmul.mubr.bf16.gmra.mxu0 %v2524
  %v2621 = vpop.f32.mrf.mxu0
  %v2622 = vadd.f32 0.0, %v2621
  %v2623 = vpop.f32.mrf.mxu0
  %v2624 = vadd.f32 0.0, %v2623
  %v2625 = vpop.f32.mrf.mxu0
  %v2626 = vadd.f32 0.0, %v2625
  %v2627 = vpop.f32.mrf.mxu0
  %v2628 = vadd.f32 0.0, %v2627
  %2629 = vdwg.mxu0
  %v2630 = vadd.f32 %v2536, %v2579
  %v2631 = vadd.f32 %v2537, %v2581
  %v2632 = vadd.f32 %v2538, %v2622
  %v2633 = vadd.f32 %v2539, %v2624
  %v2634 = vadd.f32 %v2540, %v2583
  %v2635 = vadd.f32 %v2541, %v2585
  %v2636 = vadd.f32 %v2542, %v2626
  %v2637 = vadd.f32 %v2543, %v2628
  %v2638 = vxor.u32 %v2630, 2147483648
  %v2639 = vxor.u32 %v2634, 2147483648
  %v2640 = vmul.f32 %v2638, 1.442695
  %v2641 = vpow.pop %v2640
  %v2642 = vmul.f32 %v2639, 1.442695
  %v2643 = vpow.pop %v2642
  %v2644 = vadd.f32 %v2641, 1.0
  %v2645 = vadd.f32 %v2643, 1.0
  %v2646 = vrcp.pop %v2644
  %v2647 = vmul.f32 1.0, %v2646
  %v2648 = vrcp.pop %v2645
  %v2649 = vmul.f32 1.0, %v2648
  %v2650 = vxor.u32 %v2631, 2147483648
  %v2651 = vxor.u32 %v2635, 2147483648
  %v2652 = vmul.f32 %v2650, 1.442695
  %v2653 = vpow.pop %v2652
  %v2654 = vmul.f32 %v2651, 1.442695
  %v2655 = vpow.pop %v2654
  %v2656 = vadd.f32 %v2653, 1.0
  %v2657 = vadd.f32 %v2655, 1.0
  %v2658 = vrcp.pop %v2656
  %v2659 = vmul.f32 1.0, %v2658
  %v2660 = vrcp.pop %v2657
  %v2661 = vmul.f32 1.0, %v2660
  %v2662 = vtanh.pop %v2632
  %v2663 = vtanh.pop %v2636
  %v2664 = vxor.u32 %v2633, 2147483648
  %v2665 = vxor.u32 %v2637, 2147483648
  %v2666 = vmul.f32 %v2664, 1.442695
  %v2667 = vpow.pop %v2666
  %v2668 = vmul.f32 %v2665, 1.442695
  %v2669 = vpow.pop %v2668
  %v2670 = vadd.f32 %v2667, 1.0
  %v2671 = vadd.f32 %v2669, 1.0
  %v2672 = vrcp.pop %v2670
  %v2673 = vmul.f32 1.0, %v2672
  %v2674 = vrcp.pop %v2671
  %v2675 = vmul.f32 1.0, %v2674
  %v2676 = vmul.f32 %v2659, %v2518
  %v2677 = vmul.f32 %v2661, %v2519
  %v2678 = vmul.f32 %v2647, %v2662
  %v2679 = vmul.f32 %v2649, %v2663
  %v2680 = vadd.f32 %v2676, %v2678
  %v2681 = vadd.f32 %v2677, %v2679
  %v2682 = vtanh.pop %v2680
  %v2683 = vtanh.pop %v2681
  %v2684 = vmul.f32 %v2673, %v2682
  %v2685 = vmul.f32 %v2675, %v2683
  %v2686 = vpack.c.bf16 %v2685, %v2684
  %v2688 = vunpack.c.l.b16 %v2686
  %v2689 = vunpack.c.h.b16 %v2686
  %v2690 = vpack.c.b16 %v2688, %v2688
  %v2691 = vpack.c.b16 %v2689, %v2689
  %s2694 = scalar_lea.vmem %s4, 72
  %2695 = vst [vmem:[%s2694] sm:$0xf] %v2690
  %2696 = vst [vmem:[%s2694 + $0x4] sm:$0xf] %v2691
  %s2697 = scalar_lea.vmem [#allocation4], 640
  %v2698 = vld [vmem:[%s2697] sm:$0xff]
  %v2699 = vld [vmem:[%s2697 + $0x8] sm:$0xff]
  %v2700 = vld [vmem:[%s2697 + $0x10] sm:$0xff]
  %v2701 = vld [vmem:[%s2697 + $0x18] sm:$0xff]
  %v2702 = vld [vmem:[%s2697 + $0x20] sm:$0xff]
  %v2703 = vld [vmem:[%s2697 + $0x28] sm:$0xff]
  %v2704 = vld [vmem:[%s2697 + $0x30] sm:$0xff]
  %v2705 = vld [vmem:[%s2697 + $0x38] sm:$0xff]
  %2706 = vmatprep.subr.bf16.mxu0 %v1052
  %2707 = vmatpush1.bf16.msra.mxu0 %v1051
  %2708 = vmatprep.subr.bf16.mxu0 %v1048
  %2709 = vmatpush1.bf16.msra.mxu0 %v1047
  %2710 = vmatprep.subr.bf16.mxu0 %v1044
  %2711 = vmatpush1.bf16.msra.mxu0 %v1043
  %2712 = vmatprep.subr.bf16.mxu0 %v1040
  %2713 = vmatpush1.bf16.msra.mxu0 %v1039
  %2714 = vmatprep.subr.bf16.mxu0 %v1036
  %2715 = vmatpush1.bf16.msra.mxu0 %v1035
  %2716 = vmatprep.subr.bf16.mxu0 %v1032
  %2717 = vmatpush1.bf16.msra.mxu0 %v1031
  %2718 = vmatprep.subr.bf16.mxu0 %v1028
  %2719 = vmatpush1.bf16.msra.mxu0 %v1027
  %2720 = vmatprep.subr.bf16.mxu0 %v1024
  %2721 = vmatpush1.bf16.msra.mxu0 %v1023
  %2722 = vmatprep.subr.bf16.mxu0 0
  %2723 = vmatpush2.bf16.msra.mxu0 0
  %2724 = vmatprep.subr.bf16.mxu0 0
  %2725 = vmatpush2.bf16.msra.mxu0 0
  %2726 = vmatprep.subr.bf16.mxu0 0
  %2727 = vmatpush2.bf16.msra.mxu0 0
  %2728 = vmatprep.subr.bf16.mxu0 0
  %2729 = vmatpush2.bf16.msra.mxu0 0
  %2730 = vmatprep.subr.bf16.mxu0 0
  %2731 = vmatpush2.bf16.msra.mxu0 0
  %2732 = vmatprep.subr.bf16.mxu0 0
  %2733 = vmatpush2.bf16.msra.mxu0 0
  %2734 = vmatprep.subr.bf16.mxu0 0
  %2735 = vmatpush2.bf16.msra.mxu0 0
  %2736 = vmatprep.subr.bf16.mxu0 0
  %2737 = vmatpush2.bf16.msra.mxu0 0
  %2738 = vmatprep.mubr.bf16.mxu0 0
  %2739 = vmatmul.mubr.bf16.gmra.mxu0 %v2686
  %v2740 = vpop.f32.mrf.mxu0
  %v2741 = vadd.f32 0.0, %v2740
  %v2742 = vpop.f32.mrf.mxu0
  %v2743 = vadd.f32 0.0, %v2742
  %v2744 = vpop.f32.mrf.mxu0
  %v2745 = vadd.f32 0.0, %v2744
  %v2746 = vpop.f32.mrf.mxu0
  %v2747 = vadd.f32 0.0, %v2746
  %2748 = vdwg.mxu0
  %2749 = vmatprep.subr.bf16.mxu0 %v1054
  %2750 = vmatpush1.bf16.msra.mxu0 %v1053
  %2751 = vmatprep.subr.bf16.mxu0 %v1050
  %2752 = vmatpush1.bf16.msra.mxu0 %v1049
  %2753 = vmatprep.subr.bf16.mxu0 %v1046
  %2754 = vmatpush1.bf16.msra.mxu0 %v1045
  %2755 = vmatprep.subr.bf16.mxu0 %v1042
  %2756 = vmatpush1.bf16.msra.mxu0 %v1041
  %2757 = vmatprep.subr.bf16.mxu0 %v1038
  %2758 = vmatpush1.bf16.msra.mxu0 %v1037
  %2759 = vmatprep.subr.bf16.mxu0 %v1034
  %2760 = vmatpush1.bf16.msra.mxu0 %v1033
  %2761 = vmatprep.subr.bf16.mxu0 %v1030
  %2762 = vmatpush1.bf16.msra.mxu0 %v1029
  %2763 = vmatprep.subr.bf16.mxu0 %v1026
  %2764 = vmatpush1.bf16.msra.mxu0 %v1025
  %2765 = vmatprep.subr.bf16.mxu0 0
  %2766 = vmatpush2.bf16.msra.mxu0 0
  %2767 = vmatprep.subr.bf16.mxu0 0
  %2768 = vmatpush2.bf16.msra.mxu0 0
  %2769 = vmatprep.subr.bf16.mxu0 0
  %2770 = vmatpush2.bf16.msra.mxu0 0
  %2771 = vmatprep.subr.bf16.mxu0 0
  %2772 = vmatpush2.bf16.msra.mxu0 0
  %2773 = vmatprep.subr.bf16.mxu0 0
  %2774 = vmatpush2.bf16.msra.mxu0 0
  %2775 = vmatprep.subr.bf16.mxu0 0
  %2776 = vmatpush2.bf16.msra.mxu0 0
  %2777 = vmatprep.subr.bf16.mxu0 0
  %2778 = vmatpush2.bf16.msra.mxu0 0
  %2779 = vmatprep.subr.bf16.mxu0 0
  %2780 = vmatpush2.bf16.msra.mxu0 0
  %2781 = vmatprep.mubr.bf16.mxu0 0
  %2782 = vmatmul.mubr.bf16.gmra.mxu0 %v2686
  %v2783 = vpop.f32.mrf.mxu0
  %v2784 = vadd.f32 0.0, %v2783
  %v2785 = vpop.f32.mrf.mxu0
  %v2786 = vadd.f32 0.0, %v2785
  %v2787 = vpop.f32.mrf.mxu0
  %v2788 = vadd.f32 0.0, %v2787
  %v2789 = vpop.f32.mrf.mxu0
  %v2790 = vadd.f32 0.0, %v2789
  %2791 = vdwg.mxu0
  %v2792 = vadd.f32 %v2698, %v2741
  %v2793 = vadd.f32 %v2699, %v2743
  %v2794 = vadd.f32 %v2700, %v2784
  %v2795 = vadd.f32 %v2701, %v2786
  %v2796 = vadd.f32 %v2702, %v2745
  %v2797 = vadd.f32 %v2703, %v2747
  %v2798 = vadd.f32 %v2704, %v2788
  %v2799 = vadd.f32 %v2705, %v2790
  %v2800 = vxor.u32 %v2792, 2147483648
  %v2801 = vxor.u32 %v2796, 2147483648
  %v2802 = vmul.f32 %v2800, 1.442695
  %v2803 = vpow.pop %v2802
  %v2804 = vmul.f32 %v2801, 1.442695
  %v2805 = vpow.pop %v2804
  %v2806 = vadd.f32 %v2803, 1.0
  %v2807 = vadd.f32 %v2805, 1.0
  %v2808 = vrcp.pop %v2806
  %v2809 = vmul.f32 1.0, %v2808
  %v2810 = vrcp.pop %v2807
  %v2811 = vmul.f32 1.0, %v2810
  %v2812 = vxor.u32 %v2793, 2147483648
  %v2813 = vxor.u32 %v2797, 2147483648
  %v2814 = vmul.f32 %v2812, 1.442695
  %v2815 = vpow.pop %v2814
  %v2816 = vmul.f32 %v2813, 1.442695
  %v2817 = vpow.pop %v2816
  %v2818 = vadd.f32 %v2815, 1.0
  %v2819 = vadd.f32 %v2817, 1.0
  %v2820 = vrcp.pop %v2818
  %v2821 = vmul.f32 1.0, %v2820
  %v2822 = vrcp.pop %v2819
  %v2823 = vmul.f32 1.0, %v2822
  %v2824 = vtanh.pop %v2794
  %v2825 = vtanh.pop %v2798
  %v2826 = vxor.u32 %v2795, 2147483648
  %v2827 = vxor.u32 %v2799, 2147483648
  %v2828 = vmul.f32 %v2826, 1.442695
  %v2829 = vpow.pop %v2828
  %v2830 = vmul.f32 %v2827, 1.442695
  %v2831 = vpow.pop %v2830
  %v2832 = vadd.f32 %v2829, 1.0
  %v2833 = vadd.f32 %v2831, 1.0
  %v2834 = vrcp.pop %v2832
  %v2835 = vmul.f32 1.0, %v2834
  %v2836 = vrcp.pop %v2833
  %v2837 = vmul.f32 1.0, %v2836
  %v2838 = vmul.f32 %v2821, %v2680
  %v2839 = vmul.f32 %v2823, %v2681
  %v2840 = vmul.f32 %v2809, %v2824
  %v2841 = vmul.f32 %v2811, %v2825
  %v2842 = vadd.f32 %v2838, %v2840
  %v2843 = vadd.f32 %v2839, %v2841
  %v2844 = vtanh.pop %v2842
  %v2845 = vtanh.pop %v2843
  %v2846 = vmul.f32 %v2835, %v2844
  %v2847 = vmul.f32 %v2837, %v2845
  %v2848 = vpack.c.bf16 %v2847, %v2846
  %v2850 = vunpack.c.l.b16 %v2848
  %v2851 = vunpack.c.h.b16 %v2848
  %v2852 = vpack.c.b16 %v2850, %v2850
  %v2853 = vpack.c.b16 %v2851, %v2851
  %s2856 = scalar_lea.vmem %s4, 80
  %2857 = vst [vmem:[%s2856] sm:$0xf] %v2852
  %2858 = vst [vmem:[%s2856 + $0x4] sm:$0xf] %v2853
  %s2859 = scalar_lea.vmem [#allocation4], 704
  %v2860 = vld [vmem:[%s2859] sm:$0xff]
  %v2861 = vld [vmem:[%s2859 + $0x8] sm:$0xff]
  %v2862 = vld [vmem:[%s2859 + $0x10] sm:$0xff]
  %v2863 = vld [vmem:[%s2859 + $0x18] sm:$0xff]
  %v2864 = vld [vmem:[%s2859 + $0x20] sm:$0xff]
  %v2865 = vld [vmem:[%s2859 + $0x28] sm:$0xff]
  %v2866 = vld [vmem:[%s2859 + $0x30] sm:$0xff]
  %v2867 = vld [vmem:[%s2859 + $0x38] sm:$0xff]
  %2868 = vmatprep.subr.bf16.mxu0 %v1052
  %2869 = vmatpush1.bf16.msra.mxu0 %v1051
  %2870 = vmatprep.subr.bf16.mxu0 %v1048
  %2871 = vmatpush1.bf16.msra.mxu0 %v1047
  %2872 = vmatprep.subr.bf16.mxu0 %v1044
  %2873 = vmatpush1.bf16.msra.mxu0 %v1043
  %2874 = vmatprep.subr.bf16.mxu0 %v1040
  %2875 = vmatpush1.bf16.msra.mxu0 %v1039
  %2876 = vmatprep.subr.bf16.mxu0 %v1036
  %2877 = vmatpush1.bf16.msra.mxu0 %v1035
  %2878 = vmatprep.subr.bf16.mxu0 %v1032
  %2879 = vmatpush1.bf16.msra.mxu0 %v1031
  %2880 = vmatprep.subr.bf16.mxu0 %v1028
  %2881 = vmatpush1.bf16.msra.mxu0 %v1027
  %2882 = vmatprep.subr.bf16.mxu0 %v1024
  %2883 = vmatpush1.bf16.msra.mxu0 %v1023
  %2884 = vmatprep.subr.bf16.mxu0 0
  %2885 = vmatpush2.bf16.msra.mxu0 0
  %2886 = vmatprep.subr.bf16.mxu0 0
  %2887 = vmatpush2.bf16.msra.mxu0 0
  %2888 = vmatprep.subr.bf16.mxu0 0
  %2889 = vmatpush2.bf16.msra.mxu0 0
  %2890 = vmatprep.subr.bf16.mxu0 0
  %2891 = vmatpush2.bf16.msra.mxu0 0
  %2892 = vmatprep.subr.bf16.mxu0 0
  %2893 = vmatpush2.bf16.msra.mxu0 0
  %2894 = vmatprep.subr.bf16.mxu0 0
  %2895 = vmatpush2.bf16.msra.mxu0 0
  %2896 = vmatprep.subr.bf16.mxu0 0
  %2897 = vmatpush2.bf16.msra.mxu0 0
  %2898 = vmatprep.subr.bf16.mxu0 0
  %2899 = vmatpush2.bf16.msra.mxu0 0
  %2900 = vmatprep.mubr.bf16.mxu0 0
  %2901 = vmatmul.mubr.bf16.gmra.mxu0 %v2848
  %v2902 = vpop.f32.mrf.mxu0
  %v2903 = vadd.f32 0.0, %v2902
  %v2904 = vpop.f32.mrf.mxu0
  %v2905 = vadd.f32 0.0, %v2904
  %v2906 = vpop.f32.mrf.mxu0
  %v2907 = vadd.f32 0.0, %v2906
  %v2908 = vpop.f32.mrf.mxu0
  %v2909 = vadd.f32 0.0, %v2908
  %2910 = vdwg.mxu0
  %2911 = vmatprep.subr.bf16.mxu0 %v1054
  %2912 = vmatpush1.bf16.msra.mxu0 %v1053
  %2913 = vmatprep.subr.bf16.mxu0 %v1050
  %2914 = vmatpush1.bf16.msra.mxu0 %v1049
  %2915 = vmatprep.subr.bf16.mxu0 %v1046
  %2916 = vmatpush1.bf16.msra.mxu0 %v1045
  %2917 = vmatprep.subr.bf16.mxu0 %v1042
  %2918 = vmatpush1.bf16.msra.mxu0 %v1041
  %2919 = vmatprep.subr.bf16.mxu0 %v1038
  %2920 = vmatpush1.bf16.msra.mxu0 %v1037
  %2921 = vmatprep.subr.bf16.mxu0 %v1034
  %2922 = vmatpush1.bf16.msra.mxu0 %v1033
  %2923 = vmatprep.subr.bf16.mxu0 %v1030
  %2924 = vmatpush1.bf16.msra.mxu0 %v1029
  %2925 = vmatprep.subr.bf16.mxu0 %v1026
  %2926 = vmatpush1.bf16.msra.mxu0 %v1025
  %2927 = vmatprep.subr.bf16.mxu0 0
  %2928 = vmatpush2.bf16.msra.mxu0 0
  %2929 = vmatprep.subr.bf16.mxu0 0
  %2930 = vmatpush2.bf16.msra.mxu0 0
  %2931 = vmatprep.subr.bf16.mxu0 0
  %2932 = vmatpush2.bf16.msra.mxu0 0
  %2933 = vmatprep.subr.bf16.mxu0 0
  %2934 = vmatpush2.bf16.msra.mxu0 0
  %2935 = vmatprep.subr.bf16.mxu0 0
  %2936 = vmatpush2.bf16.msra.mxu0 0
  %2937 = vmatprep.subr.bf16.mxu0 0
  %2938 = vmatpush2.bf16.msra.mxu0 0
  %2939 = vmatprep.subr.bf16.mxu0 0
  %2940 = vmatpush2.bf16.msra.mxu0 0
  %2941 = vmatprep.subr.bf16.mxu0 0
  %2942 = vmatpush2.bf16.msra.mxu0 0
  %2943 = vmatprep.mubr.bf16.mxu0 0
  %2944 = vmatmul.mubr.bf16.gmra.mxu0 %v2848
  %v2945 = vpop.f32.mrf.mxu0
  %v2946 = vadd.f32 0.0, %v2945
  %v2947 = vpop.f32.mrf.mxu0
  %v2948 = vadd.f32 0.0, %v2947
  %v2949 = vpop.f32.mrf.mxu0
  %v2950 = vadd.f32 0.0, %v2949
  %v2951 = vpop.f32.mrf.mxu0
  %v2952 = vadd.f32 0.0, %v2951
  %2953 = vdwg.mxu0
  %v2954 = vadd.f32 %v2860, %v2903
  %v2955 = vadd.f32 %v2861, %v2905
  %v2956 = vadd.f32 %v2862, %v2946
  %v2957 = vadd.f32 %v2863, %v2948
  %v2958 = vadd.f32 %v2864, %v2907
  %v2959 = vadd.f32 %v2865, %v2909
  %v2960 = vadd.f32 %v2866, %v2950
  %v2961 = vadd.f32 %v2867, %v2952
  %v2962 = vxor.u32 %v2954, 2147483648
  %v2963 = vxor.u32 %v2958, 2147483648
  %v2964 = vmul.f32 %v2962, 1.442695
  %v2965 = vpow.pop %v2964
  %v2966 = vmul.f32 %v2963, 1.442695
  %v2967 = vpow.pop %v2966
  %v2968 = vadd.f32 %v2965, 1.0
  %v2969 = vadd.f32 %v2967, 1.0
  %v2970 = vrcp.pop %v2968
  %v2971 = vmul.f32 1.0, %v2970
  %v2972 = vrcp.pop %v2969
  %v2973 = vmul.f32 1.0, %v2972
  %v2974 = vxor.u32 %v2955, 2147483648
  %v2975 = vxor.u32 %v2959, 2147483648
  %v2976 = vmul.f32 %v2974, 1.442695
  %v2977 = vpow.pop %v2976
  %v2978 = vmul.f32 %v2975, 1.442695
  %v2979 = vpow.pop %v2978
  %v2980 = vadd.f32 %v2977, 1.0
  %v2981 = vadd.f32 %v2979, 1.0
  %v2982 = vrcp.pop %v2980
  %v2983 = vmul.f32 1.0, %v2982
  %v2984 = vrcp.pop %v2981
  %v2985 = vmul.f32 1.0, %v2984
  %v2986 = vtanh.pop %v2956
  %v2987 = vtanh.pop %v2960
  %v2988 = vxor.u32 %v2957, 2147483648
  %v2989 = vxor.u32 %v2961, 2147483648
  %v2990 = vmul.f32 %v2988, 1.442695
  %v2991 = vpow.pop %v2990
  %v2992 = vmul.f32 %v2989, 1.442695
  %v2993 = vpow.pop %v2992
  %v2994 = vadd.f32 %v2991, 1.0
  %v2995 = vadd.f32 %v2993, 1.0
  %v2996 = vrcp.pop %v2994
  %v2997 = vmul.f32 1.0, %v2996
  %v2998 = vrcp.pop %v2995
  %v2999 = vmul.f32 1.0, %v2998
  %v3000 = vmul.f32 %v2983, %v2842
  %v3001 = vmul.f32 %v2985, %v2843
  %v3002 = vmul.f32 %v2971, %v2986
  %v3003 = vmul.f32 %v2973, %v2987
  %v3004 = vadd.f32 %v3000, %v3002
  %v3005 = vadd.f32 %v3001, %v3003
  %v3006 = vtanh.pop %v3004
  %v3007 = vtanh.pop %v3005
  %v3008 = vmul.f32 %v2997, %v3006
  %v3009 = vmul.f32 %v2999, %v3007
  %v3010 = vpack.c.bf16 %v3009, %v3008
  %v3012 = vunpack.c.l.b16 %v3010
  %v3013 = vunpack.c.h.b16 %v3010
  %v3014 = vpack.c.b16 %v3012, %v3012
  %v3015 = vpack.c.b16 %v3013, %v3013
  %s3018 = scalar_lea.vmem %s4, 88
  %3019 = vst [vmem:[%s3018] sm:$0xf] %v3014
  %3020 = vst [vmem:[%s3018 + $0x4] sm:$0xf] %v3015
  %s3021 = scalar_lea.vmem [#allocation4], 768
  %v3022 = vld [vmem:[%s3021] sm:$0xff]
  %v3023 = vld [vmem:[%s3021 + $0x8] sm:$0xff]
  %v3024 = vld [vmem:[%s3021 + $0x10] sm:$0xff]
  %v3025 = vld [vmem:[%s3021 + $0x18] sm:$0xff]
  %v3026 = vld [vmem:[%s3021 + $0x20] sm:$0xff]
  %v3027 = vld [vmem:[%s3021 + $0x28] sm:$0xff]
  %v3028 = vld [vmem:[%s3021 + $0x30] sm:$0xff]
  %v3029 = vld [vmem:[%s3021 + $0x38] sm:$0xff]
  %3030 = vmatprep.subr.bf16.mxu0 %v1052
  %3031 = vmatpush1.bf16.msra.mxu0 %v1051
  %3032 = vmatprep.subr.bf16.mxu0 %v1048
  %3033 = vmatpush1.bf16.msra.mxu0 %v1047
  %3034 = vmatprep.subr.bf16.mxu0 %v1044
  %3035 = vmatpush1.bf16.msra.mxu0 %v1043
  %3036 = vmatprep.subr.bf16.mxu0 %v1040
  %3037 = vmatpush1.bf16.msra.mxu0 %v1039
  %3038 = vmatprep.subr.bf16.mxu0 %v1036
  %3039 = vmatpush1.bf16.msra.mxu0 %v1035
  %3040 = vmatprep.subr.bf16.mxu0 %v1032
  %3041 = vmatpush1.bf16.msra.mxu0 %v1031
  %3042 = vmatprep.subr.bf16.mxu0 %v1028
  %3043 = vmatpush1.bf16.msra.mxu0 %v1027
  %3044 = vmatprep.subr.bf16.mxu0 %v1024
  %3045 = vmatpush1.bf16.msra.mxu0 %v1023
  %3046 = vmatprep.subr.bf16.mxu0 0
  %3047 = vmatpush2.bf16.msra.mxu0 0
  %3048 = vmatprep.subr.bf16.mxu0 0
  %3049 = vmatpush2.bf16.msra.mxu0 0
  %3050 = vmatprep.subr.bf16.mxu0 0
  %3051 = vmatpush2.bf16.msra.mxu0 0
  %3052 = vmatprep.subr.bf16.mxu0 0
  %3053 = vmatpush2.bf16.msra.mxu0 0
  %3054 = vmatprep.subr.bf16.mxu0 0
  %3055 = vmatpush2.bf16.msra.mxu0 0
  %3056 = vmatprep.subr.bf16.mxu0 0
  %3057 = vmatpush2.bf16.msra.mxu0 0
  %3058 = vmatprep.subr.bf16.mxu0 0
  %3059 = vmatpush2.bf16.msra.mxu0 0
  %3060 = vmatprep.subr.bf16.mxu0 0
  %3061 = vmatpush2.bf16.msra.mxu0 0
  %3062 = vmatprep.mubr.bf16.mxu0 0
  %3063 = vmatmul.mubr.bf16.gmra.mxu0 %v3010
  %v3064 = vpop.f32.mrf.mxu0
  %v3065 = vadd.f32 0.0, %v3064
  %v3066 = vpop.f32.mrf.mxu0
  %v3067 = vadd.f32 0.0, %v3066
  %v3068 = vpop.f32.mrf.mxu0
  %v3069 = vadd.f32 0.0, %v3068
  %v3070 = vpop.f32.mrf.mxu0
  %v3071 = vadd.f32 0.0, %v3070
  %3072 = vdwg.mxu0
  %3073 = vmatprep.subr.bf16.mxu0 %v1054
  %3074 = vmatpush1.bf16.msra.mxu0 %v1053
  %3075 = vmatprep.subr.bf16.mxu0 %v1050
  %3076 = vmatpush1.bf16.msra.mxu0 %v1049
  %3077 = vmatprep.subr.bf16.mxu0 %v1046
  %3078 = vmatpush1.bf16.msra.mxu0 %v1045
  %3079 = vmatprep.subr.bf16.mxu0 %v1042
  %3080 = vmatpush1.bf16.msra.mxu0 %v1041
  %3081 = vmatprep.subr.bf16.mxu0 %v1038
  %3082 = vmatpush1.bf16.msra.mxu0 %v1037
  %3083 = vmatprep.subr.bf16.mxu0 %v1034
  %3084 = vmatpush1.bf16.msra.mxu0 %v1033
  %3085 = vmatprep.subr.bf16.mxu0 %v1030
  %3086 = vmatpush1.bf16.msra.mxu0 %v1029
  %3087 = vmatprep.subr.bf16.mxu0 %v1026
  %3088 = vmatpush1.bf16.msra.mxu0 %v1025
  %3089 = vmatprep.subr.bf16.mxu0 0
  %3090 = vmatpush2.bf16.msra.mxu0 0
  %3091 = vmatprep.subr.bf16.mxu0 0
  %3092 = vmatpush2.bf16.msra.mxu0 0
  %3093 = vmatprep.subr.bf16.mxu0 0
  %3094 = vmatpush2.bf16.msra.mxu0 0
  %3095 = vmatprep.subr.bf16.mxu0 0
  %3096 = vmatpush2.bf16.msra.mxu0 0
  %3097 = vmatprep.subr.bf16.mxu0 0
  %3098 = vmatpush2.bf16.msra.mxu0 0
  %3099 = vmatprep.subr.bf16.mxu0 0
  %3100 = vmatpush2.bf16.msra.mxu0 0
  %3101 = vmatprep.subr.bf16.mxu0 0
  %3102 = vmatpush2.bf16.msra.mxu0 0
  %3103 = vmatprep.subr.bf16.mxu0 0
  %3104 = vmatpush2.bf16.msra.mxu0 0
  %3105 = vmatprep.mubr.bf16.mxu0 0
  %3106 = vmatmul.mubr.bf16.gmra.mxu0 %v3010
  %v3107 = vpop.f32.mrf.mxu0
  %v3108 = vadd.f32 0.0, %v3107
  %v3109 = vpop.f32.mrf.mxu0
  %v3110 = vadd.f32 0.0, %v3109
  %v3111 = vpop.f32.mrf.mxu0
  %v3112 = vadd.f32 0.0, %v3111
  %v3113 = vpop.f32.mrf.mxu0
  %v3114 = vadd.f32 0.0, %v3113
  %3115 = vdwg.mxu0
  %v3116 = vadd.f32 %v3022, %v3065
  %v3117 = vadd.f32 %v3023, %v3067
  %v3118 = vadd.f32 %v3024, %v3108
  %v3119 = vadd.f32 %v3025, %v3110
  %v3120 = vadd.f32 %v3026, %v3069
  %v3121 = vadd.f32 %v3027, %v3071
  %v3122 = vadd.f32 %v3028, %v3112
  %v3123 = vadd.f32 %v3029, %v3114
  %v3124 = vxor.u32 %v3116, 2147483648
  %v3125 = vxor.u32 %v3120, 2147483648
  %v3126 = vmul.f32 %v3124, 1.442695
  %v3127 = vpow.pop %v3126
  %v3128 = vmul.f32 %v3125, 1.442695
  %v3129 = vpow.pop %v3128
  %v3130 = vadd.f32 %v3127, 1.0
  %v3131 = vadd.f32 %v3129, 1.0
  %v3132 = vrcp.pop %v3130
  %v3133 = vmul.f32 1.0, %v3132
  %v3134 = vrcp.pop %v3131
  %v3135 = vmul.f32 1.0, %v3134
  %v3136 = vxor.u32 %v3117, 2147483648
  %v3137 = vxor.u32 %v3121, 2147483648
  %v3138 = vmul.f32 %v3136, 1.442695
  %v3139 = vpow.pop %v3138
  %v3140 = vmul.f32 %v3137, 1.442695
  %v3141 = vpow.pop %v3140
  %v3142 = vadd.f32 %v3139, 1.0
  %v3143 = vadd.f32 %v3141, 1.0
  %v3144 = vrcp.pop %v3142
  %v3145 = vmul.f32 1.0, %v3144
  %v3146 = vrcp.pop %v3143
  %v3147 = vmul.f32 1.0, %v3146
  %v3148 = vtanh.pop %v3118
  %v3149 = vtanh.pop %v3122
  %v3150 = vxor.u32 %v3119, 2147483648
  %v3151 = vxor.u32 %v3123, 2147483648
  %v3152 = vmul.f32 %v3150, 1.442695
  %v3153 = vpow.pop %v3152
  %v3154 = vmul.f32 %v3151, 1.442695
  %v3155 = vpow.pop %v3154
  %v3156 = vadd.f32 %v3153, 1.0
  %v3157 = vadd.f32 %v3155, 1.0
  %v3158 = vrcp.pop %v3156
  %v3159 = vmul.f32 1.0, %v3158
  %v3160 = vrcp.pop %v3157
  %v3161 = vmul.f32 1.0, %v3160
  %v3162 = vmul.f32 %v3145, %v3004
  %v3163 = vmul.f32 %v3147, %v3005
  %v3164 = vmul.f32 %v3133, %v3148
  %v3165 = vmul.f32 %v3135, %v3149
  %v3166 = vadd.f32 %v3162, %v3164
  %v3167 = vadd.f32 %v3163, %v3165
  %v3168 = vtanh.pop %v3166
  %v3169 = vtanh.pop %v3167
  %v3170 = vmul.f32 %v3159, %v3168
  %v3171 = vmul.f32 %v3161, %v3169
  %v3172 = vpack.c.bf16 %v3171, %v3170
  %v3174 = vunpack.c.l.b16 %v3172
  %v3175 = vunpack.c.h.b16 %v3172
  %v3176 = vpack.c.b16 %v3174, %v3174
  %v3177 = vpack.c.b16 %v3175, %v3175
  %s3180 = scalar_lea.vmem %s4, 96
  %3181 = vst [vmem:[%s3180] sm:$0xf] %v3176
  %3182 = vst [vmem:[%s3180 + $0x4] sm:$0xf] %v3177
  %s3183 = scalar_lea.vmem [#allocation4], 832
  %v3184 = vld [vmem:[%s3183] sm:$0xff]
  %v3185 = vld [vmem:[%s3183 + $0x8] sm:$0xff]
  %v3186 = vld [vmem:[%s3183 + $0x10] sm:$0xff]
  %v3187 = vld [vmem:[%s3183 + $0x18] sm:$0xff]
  %v3188 = vld [vmem:[%s3183 + $0x20] sm:$0xff]
  %v3189 = vld [vmem:[%s3183 + $0x28] sm:$0xff]
  %v3190 = vld [vmem:[%s3183 + $0x30] sm:$0xff]
  %v3191 = vld [vmem:[%s3183 + $0x38] sm:$0xff]
  %3192 = vmatprep.subr.bf16.mxu0 %v1052
  %3193 = vmatpush1.bf16.msra.mxu0 %v1051
  %3194 = vmatprep.subr.bf16.mxu0 %v1048
  %3195 = vmatpush1.bf16.msra.mxu0 %v1047
  %3196 = vmatprep.subr.bf16.mxu0 %v1044
  %3197 = vmatpush1.bf16.msra.mxu0 %v1043
  %3198 = vmatprep.subr.bf16.mxu0 %v1040
  %3199 = vmatpush1.bf16.msra.mxu0 %v1039
  %3200 = vmatprep.subr.bf16.mxu0 %v1036
  %3201 = vmatpush1.bf16.msra.mxu0 %v1035
  %3202 = vmatprep.subr.bf16.mxu0 %v1032
  %3203 = vmatpush1.bf16.msra.mxu0 %v1031
  %3204 = vmatprep.subr.bf16.mxu0 %v1028
  %3205 = vmatpush1.bf16.msra.mxu0 %v1027
  %3206 = vmatprep.subr.bf16.mxu0 %v1024
  %3207 = vmatpush1.bf16.msra.mxu0 %v1023
  %3208 = vmatprep.subr.bf16.mxu0 0
  %3209 = vmatpush2.bf16.msra.mxu0 0
  %3210 = vmatprep.subr.bf16.mxu0 0
  %3211 = vmatpush2.bf16.msra.mxu0 0
  %3212 = vmatprep.subr.bf16.mxu0 0
  %3213 = vmatpush2.bf16.msra.mxu0 0
  %3214 = vmatprep.subr.bf16.mxu0 0
  %3215 = vmatpush2.bf16.msra.mxu0 0
  %3216 = vmatprep.subr.bf16.mxu0 0
  %3217 = vmatpush2.bf16.msra.mxu0 0
  %3218 = vmatprep.subr.bf16.mxu0 0
  %3219 = vmatpush2.bf16.msra.mxu0 0
  %3220 = vmatprep.subr.bf16.mxu0 0
  %3221 = vmatpush2.bf16.msra.mxu0 0
  %3222 = vmatprep.subr.bf16.mxu0 0
  %3223 = vmatpush2.bf16.msra.mxu0 0
  %3224 = vmatprep.mubr.bf16.mxu0 0
  %3225 = vmatmul.mubr.bf16.gmra.mxu0 %v3172
  %v3226 = vpop.f32.mrf.mxu0
  %v3227 = vadd.f32 0.0, %v3226
  %v3228 = vpop.f32.mrf.mxu0
  %v3229 = vadd.f32 0.0, %v3228
  %v3230 = vpop.f32.mrf.mxu0
  %v3231 = vadd.f32 0.0, %v3230
  %v3232 = vpop.f32.mrf.mxu0
  %v3233 = vadd.f32 0.0, %v3232
  %3234 = vdwg.mxu0
  %3235 = vmatprep.subr.bf16.mxu0 %v1054
  %3236 = vmatpush1.bf16.msra.mxu0 %v1053
  %3237 = vmatprep.subr.bf16.mxu0 %v1050
  %3238 = vmatpush1.bf16.msra.mxu0 %v1049
  %3239 = vmatprep.subr.bf16.mxu0 %v1046
  %3240 = vmatpush1.bf16.msra.mxu0 %v1045
  %3241 = vmatprep.subr.bf16.mxu0 %v1042
  %3242 = vmatpush1.bf16.msra.mxu0 %v1041
  %3243 = vmatprep.subr.bf16.mxu0 %v1038
  %3244 = vmatpush1.bf16.msra.mxu0 %v1037
  %3245 = vmatprep.subr.bf16.mxu0 %v1034
  %3246 = vmatpush1.bf16.msra.mxu0 %v1033
  %3247 = vmatprep.subr.bf16.mxu0 %v1030
  %3248 = vmatpush1.bf16.msra.mxu0 %v1029
  %3249 = vmatprep.subr.bf16.mxu0 %v1026
  %3250 = vmatpush1.bf16.msra.mxu0 %v1025
  %3251 = vmatprep.subr.bf16.mxu0 0
  %3252 = vmatpush2.bf16.msra.mxu0 0
  %3253 = vmatprep.subr.bf16.mxu0 0
  %3254 = vmatpush2.bf16.msra.mxu0 0
  %3255 = vmatprep.subr.bf16.mxu0 0
  %3256 = vmatpush2.bf16.msra.mxu0 0
  %3257 = vmatprep.subr.bf16.mxu0 0
  %3258 = vmatpush2.bf16.msra.mxu0 0
  %3259 = vmatprep.subr.bf16.mxu0 0
  %3260 = vmatpush2.bf16.msra.mxu0 0
  %3261 = vmatprep.subr.bf16.mxu0 0
  %3262 = vmatpush2.bf16.msra.mxu0 0
  %3263 = vmatprep.subr.bf16.mxu0 0
  %3264 = vmatpush2.bf16.msra.mxu0 0
  %3265 = vmatprep.subr.bf16.mxu0 0
  %3266 = vmatpush2.bf16.msra.mxu0 0
  %3267 = vmatprep.mubr.bf16.mxu0 0
  %3268 = vmatmul.mubr.bf16.gmra.mxu0 %v3172
  %v3269 = vpop.f32.mrf.mxu0
  %v3270 = vadd.f32 0.0, %v3269
  %v3271 = vpop.f32.mrf.mxu0
  %v3272 = vadd.f32 0.0, %v3271
  %v3273 = vpop.f32.mrf.mxu0
  %v3274 = vadd.f32 0.0, %v3273
  %v3275 = vpop.f32.mrf.mxu0
  %v3276 = vadd.f32 0.0, %v3275
  %3277 = vdwg.mxu0
  %v3278 = vadd.f32 %v3184, %v3227
  %v3279 = vadd.f32 %v3185, %v3229
  %v3280 = vadd.f32 %v3186, %v3270
  %v3281 = vadd.f32 %v3187, %v3272
  %v3282 = vadd.f32 %v3188, %v3231
  %v3283 = vadd.f32 %v3189, %v3233
  %v3284 = vadd.f32 %v3190, %v3274
  %v3285 = vadd.f32 %v3191, %v3276
  %v3286 = vxor.u32 %v3278, 2147483648
  %v3287 = vxor.u32 %v3282, 2147483648
  %v3288 = vmul.f32 %v3286, 1.442695
  %v3289 = vpow.pop %v3288
  %v3290 = vmul.f32 %v3287, 1.442695
  %v3291 = vpow.pop %v3290
  %v3292 = vadd.f32 %v3289, 1.0
  %v3293 = vadd.f32 %v3291, 1.0
  %v3294 = vrcp.pop %v3292
  %v3295 = vmul.f32 1.0, %v3294
  %v3296 = vrcp.pop %v3293
  %v3297 = vmul.f32 1.0, %v3296
  %v3298 = vxor.u32 %v3279, 2147483648
  %v3299 = vxor.u32 %v3283, 2147483648
  %v3300 = vmul.f32 %v3298, 1.442695
  %v3301 = vpow.pop %v3300
  %v3302 = vmul.f32 %v3299, 1.442695
  %v3303 = vpow.pop %v3302
  %v3304 = vadd.f32 %v3301, 1.0
  %v3305 = vadd.f32 %v3303, 1.0
  %v3306 = vrcp.pop %v3304
  %v3307 = vmul.f32 1.0, %v3306
  %v3308 = vrcp.pop %v3305
  %v3309 = vmul.f32 1.0, %v3308
  %v3310 = vtanh.pop %v3280
  %v3311 = vtanh.pop %v3284
  %v3312 = vxor.u32 %v3281, 2147483648
  %v3313 = vxor.u32 %v3285, 2147483648
  %v3314 = vmul.f32 %v3312, 1.442695
  %v3315 = vpow.pop %v3314
  %v3316 = vmul.f32 %v3313, 1.442695
  %v3317 = vpow.pop %v3316
  %v3318 = vadd.f32 %v3315, 1.0
  %v3319 = vadd.f32 %v3317, 1.0
  %v3320 = vrcp.pop %v3318
  %v3321 = vmul.f32 1.0, %v3320
  %v3322 = vrcp.pop %v3319
  %v3323 = vmul.f32 1.0, %v3322
  %v3324 = vmul.f32 %v3307, %v3166
  %v3325 = vmul.f32 %v3309, %v3167
  %v3326 = vmul.f32 %v3295, %v3310
  %v3327 = vmul.f32 %v3297, %v3311
  %v3328 = vadd.f32 %v3324, %v3326
  %v3329 = vadd.f32 %v3325, %v3327
  %v3330 = vtanh.pop %v3328
  %v3331 = vtanh.pop %v3329
  %v3332 = vmul.f32 %v3321, %v3330
  %v3333 = vmul.f32 %v3323, %v3331
  %v3334 = vpack.c.bf16 %v3333, %v3332
  %v3336 = vunpack.c.l.b16 %v3334
  %v3337 = vunpack.c.h.b16 %v3334
  %v3338 = vpack.c.b16 %v3336, %v3336
  %v3339 = vpack.c.b16 %v3337, %v3337
  %s3342 = scalar_lea.vmem %s4, 104
  %3343 = vst [vmem:[%s3342] sm:$0xf] %v3338
  %3344 = vst [vmem:[%s3342 + $0x4] sm:$0xf] %v3339
  %s3345 = scalar_lea.vmem [#allocation4], 896
  %v3346 = vld [vmem:[%s3345] sm:$0xff]
  %v3347 = vld [vmem:[%s3345 + $0x8] sm:$0xff]
  %v3348 = vld [vmem:[%s3345 + $0x10] sm:$0xff]
  %v3349 = vld [vmem:[%s3345 + $0x18] sm:$0xff]
  %v3350 = vld [vmem:[%s3345 + $0x20] sm:$0xff]
  %v3351 = vld [vmem:[%s3345 + $0x28] sm:$0xff]
  %v3352 = vld [vmem:[%s3345 + $0x30] sm:$0xff]
  %v3353 = vld [vmem:[%s3345 + $0x38] sm:$0xff]
  %3354 = vmatprep.subr.bf16.mxu0 %v1052
  %3355 = vmatpush1.bf16.msra.mxu0 %v1051
  %3356 = vmatprep.subr.bf16.mxu0 %v1048
  %3357 = vmatpush1.bf16.msra.mxu0 %v1047
  %3358 = vmatprep.subr.bf16.mxu0 %v1044
  %3359 = vmatpush1.bf16.msra.mxu0 %v1043
  %3360 = vmatprep.subr.bf16.mxu0 %v1040
  %3361 = vmatpush1.bf16.msra.mxu0 %v1039
  %3362 = vmatprep.subr.bf16.mxu0 %v1036
  %3363 = vmatpush1.bf16.msra.mxu0 %v1035
  %3364 = vmatprep.subr.bf16.mxu0 %v1032
  %3365 = vmatpush1.bf16.msra.mxu0 %v1031
  %3366 = vmatprep.subr.bf16.mxu0 %v1028
  %3367 = vmatpush1.bf16.msra.mxu0 %v1027
  %3368 = vmatprep.subr.bf16.mxu0 %v1024
  %3369 = vmatpush1.bf16.msra.mxu0 %v1023
  %3370 = vmatprep.subr.bf16.mxu0 0
  %3371 = vmatpush2.bf16.msra.mxu0 0
  %3372 = vmatprep.subr.bf16.mxu0 0
  %3373 = vmatpush2.bf16.msra.mxu0 0
  %3374 = vmatprep.subr.bf16.mxu0 0
  %3375 = vmatpush2.bf16.msra.mxu0 0
  %3376 = vmatprep.subr.bf16.mxu0 0
  %3377 = vmatpush2.bf16.msra.mxu0 0
  %3378 = vmatprep.subr.bf16.mxu0 0
  %3379 = vmatpush2.bf16.msra.mxu0 0
  %3380 = vmatprep.subr.bf16.mxu0 0
  %3381 = vmatpush2.bf16.msra.mxu0 0
  %3382 = vmatprep.subr.bf16.mxu0 0
  %3383 = vmatpush2.bf16.msra.mxu0 0
  %3384 = vmatprep.subr.bf16.mxu0 0
  %3385 = vmatpush2.bf16.msra.mxu0 0
  %3386 = vmatprep.mubr.bf16.mxu0 0
  %3387 = vmatmul.mubr.bf16.gmra.mxu0 %v3334
  %v3388 = vpop.f32.mrf.mxu0
  %v3389 = vadd.f32 0.0, %v3388
  %v3390 = vpop.f32.mrf.mxu0
  %v3391 = vadd.f32 0.0, %v3390
  %v3392 = vpop.f32.mrf.mxu0
  %v3393 = vadd.f32 0.0, %v3392
  %v3394 = vpop.f32.mrf.mxu0
  %v3395 = vadd.f32 0.0, %v3394
  %3396 = vdwg.mxu0
  %3397 = vmatprep.subr.bf16.mxu0 %v1054
  %3398 = vmatpush1.bf16.msra.mxu0 %v1053
  %3399 = vmatprep.subr.bf16.mxu0 %v1050
  %3400 = vmatpush1.bf16.msra.mxu0 %v1049
  %3401 = vmatprep.subr.bf16.mxu0 %v1046
  %3402 = vmatpush1.bf16.msra.mxu0 %v1045
  %3403 = vmatprep.subr.bf16.mxu0 %v1042
  %3404 = vmatpush1.bf16.msra.mxu0 %v1041
  %3405 = vmatprep.subr.bf16.mxu0 %v1038
  %3406 = vmatpush1.bf16.msra.mxu0 %v1037
  %3407 = vmatprep.subr.bf16.mxu0 %v1034
  %3408 = vmatpush1.bf16.msra.mxu0 %v1033
  %3409 = vmatprep.subr.bf16.mxu0 %v1030
  %3410 = vmatpush1.bf16.msra.mxu0 %v1029
  %3411 = vmatprep.subr.bf16.mxu0 %v1026
  %3412 = vmatpush1.bf16.msra.mxu0 %v1025
  %3413 = vmatprep.subr.bf16.mxu0 0
  %3414 = vmatpush2.bf16.msra.mxu0 0
  %3415 = vmatprep.subr.bf16.mxu0 0
  %3416 = vmatpush2.bf16.msra.mxu0 0
  %3417 = vmatprep.subr.bf16.mxu0 0
  %3418 = vmatpush2.bf16.msra.mxu0 0
  %3419 = vmatprep.subr.bf16.mxu0 0
  %3420 = vmatpush2.bf16.msra.mxu0 0
  %3421 = vmatprep.subr.bf16.mxu0 0
  %3422 = vmatpush2.bf16.msra.mxu0 0
  %3423 = vmatprep.subr.bf16.mxu0 0
  %3424 = vmatpush2.bf16.msra.mxu0 0
  %3425 = vmatprep.subr.bf16.mxu0 0
  %3426 = vmatpush2.bf16.msra.mxu0 0
  %3427 = vmatprep.subr.bf16.mxu0 0
  %3428 = vmatpush2.bf16.msra.mxu0 0
  %3429 = vmatprep.mubr.bf16.mxu0 0
  %3430 = vmatmul.mubr.bf16.gmra.mxu0 %v3334
  %v3431 = vpop.f32.mrf.mxu0
  %v3432 = vadd.f32 0.0, %v3431
  %v3433 = vpop.f32.mrf.mxu0
  %v3434 = vadd.f32 0.0, %v3433
  %v3435 = vpop.f32.mrf.mxu0
  %v3436 = vadd.f32 0.0, %v3435
  %v3437 = vpop.f32.mrf.mxu0
  %v3438 = vadd.f32 0.0, %v3437
  %3439 = vdwg.mxu0
  %v3440 = vadd.f32 %v3346, %v3389
  %v3441 = vadd.f32 %v3347, %v3391
  %v3442 = vadd.f32 %v3348, %v3432
  %v3443 = vadd.f32 %v3349, %v3434
  %v3444 = vadd.f32 %v3350, %v3393
  %v3445 = vadd.f32 %v3351, %v3395
  %v3446 = vadd.f32 %v3352, %v3436
  %v3447 = vadd.f32 %v3353, %v3438
  %v3448 = vxor.u32 %v3440, 2147483648
  %v3449 = vxor.u32 %v3444, 2147483648
  %v3450 = vmul.f32 %v3448, 1.442695
  %v3451 = vpow.pop %v3450
  %v3452 = vmul.f32 %v3449, 1.442695
  %v3453 = vpow.pop %v3452
  %v3454 = vadd.f32 %v3451, 1.0
  %v3455 = vadd.f32 %v3453, 1.0
  %v3456 = vrcp.pop %v3454
  %v3457 = vmul.f32 1.0, %v3456
  %v3458 = vrcp.pop %v3455
  %v3459 = vmul.f32 1.0, %v3458
  %v3460 = vxor.u32 %v3441, 2147483648
  %v3461 = vxor.u32 %v3445, 2147483648
  %v3462 = vmul.f32 %v3460, 1.442695
  %v3463 = vpow.pop %v3462
  %v3464 = vmul.f32 %v3461, 1.442695
  %v3465 = vpow.pop %v3464
  %v3466 = vadd.f32 %v3463, 1.0
  %v3467 = vadd.f32 %v3465, 1.0
  %v3468 = vrcp.pop %v3466
  %v3469 = vmul.f32 1.0, %v3468
  %v3470 = vrcp.pop %v3467
  %v3471 = vmul.f32 1.0, %v3470
  %v3472 = vtanh.pop %v3442
  %v3473 = vtanh.pop %v3446
  %v3474 = vxor.u32 %v3443, 2147483648
  %v3475 = vxor.u32 %v3447, 2147483648
  %v3476 = vmul.f32 %v3474, 1.442695
  %v3477 = vpow.pop %v3476
  %v3478 = vmul.f32 %v3475, 1.442695
  %v3479 = vpow.pop %v3478
  %v3480 = vadd.f32 %v3477, 1.0
  %v3481 = vadd.f32 %v3479, 1.0
  %v3482 = vrcp.pop %v3480
  %v3483 = vmul.f32 1.0, %v3482
  %v3484 = vrcp.pop %v3481
  %v3485 = vmul.f32 1.0, %v3484
  %v3486 = vmul.f32 %v3469, %v3328
  %v3487 = vmul.f32 %v3471, %v3329
  %v3488 = vmul.f32 %v3457, %v3472
  %v3489 = vmul.f32 %v3459, %v3473
  %v3490 = vadd.f32 %v3486, %v3488
  %v3491 = vadd.f32 %v3487, %v3489
  %v3492 = vtanh.pop %v3490
  %v3493 = vtanh.pop %v3491
  %v3494 = vmul.f32 %v3483, %v3492
  %v3495 = vmul.f32 %v3485, %v3493
  %v3496 = vpack.c.bf16 %v3495, %v3494
  %v3498 = vunpack.c.l.b16 %v3496
  %v3499 = vunpack.c.h.b16 %v3496
  %v3500 = vpack.c.b16 %v3498, %v3498
  %v3501 = vpack.c.b16 %v3499, %v3499
  %s3504 = scalar_lea.vmem %s4, 112
  %3505 = vst [vmem:[%s3504] sm:$0xf] %v3500
  %3506 = vst [vmem:[%s3504 + $0x4] sm:$0xf] %v3501
  %s3507 = scalar_lea.vmem [#allocation4], 960
  %v3508 = vld [vmem:[%s3507] sm:$0xff]
  %v3509 = vld [vmem:[%s3507 + $0x8] sm:$0xff]
  %v3510 = vld [vmem:[%s3507 + $0x10] sm:$0xff]
  %v3511 = vld [vmem:[%s3507 + $0x18] sm:$0xff]
  %v3512 = vld [vmem:[%s3507 + $0x20] sm:$0xff]
  %v3513 = vld [vmem:[%s3507 + $0x28] sm:$0xff]
  %v3514 = vld [vmem:[%s3507 + $0x30] sm:$0xff]
  %v3515 = vld [vmem:[%s3507 + $0x38] sm:$0xff]
  %3516 = vmatprep.subr.bf16.mxu0 %v1052
  %3517 = vmatpush1.bf16.msra.mxu0 %v1051
  %3518 = vmatprep.subr.bf16.mxu0 %v1048
  %3519 = vmatpush1.bf16.msra.mxu0 %v1047
  %3520 = vmatprep.subr.bf16.mxu0 %v1044
  %3521 = vmatpush1.bf16.msra.mxu0 %v1043
  %3522 = vmatprep.subr.bf16.mxu0 %v1040
  %3523 = vmatpush1.bf16.msra.mxu0 %v1039
  %3524 = vmatprep.subr.bf16.mxu0 %v1036
  %3525 = vmatpush1.bf16.msra.mxu0 %v1035
  %3526 = vmatprep.subr.bf16.mxu0 %v1032
  %3527 = vmatpush1.bf16.msra.mxu0 %v1031
  %3528 = vmatprep.subr.bf16.mxu0 %v1028
  %3529 = vmatpush1.bf16.msra.mxu0 %v1027
  %3530 = vmatprep.subr.bf16.mxu0 %v1024
  %3531 = vmatpush1.bf16.msra.mxu0 %v1023
  %3532 = vmatprep.subr.bf16.mxu0 0
  %3533 = vmatpush2.bf16.msra.mxu0 0
  %3534 = vmatprep.subr.bf16.mxu0 0
  %3535 = vmatpush2.bf16.msra.mxu0 0
  %3536 = vmatprep.subr.bf16.mxu0 0
  %3537 = vmatpush2.bf16.msra.mxu0 0
  %3538 = vmatprep.subr.bf16.mxu0 0
  %3539 = vmatpush2.bf16.msra.mxu0 0
  %3540 = vmatprep.subr.bf16.mxu0 0
  %3541 = vmatpush2.bf16.msra.mxu0 0
  %3542 = vmatprep.subr.bf16.mxu0 0
  %3543 = vmatpush2.bf16.msra.mxu0 0
  %3544 = vmatprep.subr.bf16.mxu0 0
  %3545 = vmatpush2.bf16.msra.mxu0 0
  %3546 = vmatprep.subr.bf16.mxu0 0
  %3547 = vmatpush2.bf16.msra.mxu0 0
  %3548 = vmatprep.mubr.bf16.mxu0 0
  %3549 = vmatmul.mubr.bf16.gmra.mxu0 %v3496
  %v3550 = vpop.f32.mrf.mxu0
  %v3551 = vadd.f32 0.0, %v3550
  %v3552 = vpop.f32.mrf.mxu0
  %v3553 = vadd.f32 0.0, %v3552
  %v3554 = vpop.f32.mrf.mxu0
  %v3555 = vadd.f32 0.0, %v3554
  %v3556 = vpop.f32.mrf.mxu0
  %v3557 = vadd.f32 0.0, %v3556
  %3558 = vdwg.mxu0
  %3559 = vmatprep.subr.bf16.mxu0 %v1054
  %3560 = vmatpush1.bf16.msra.mxu0 %v1053
  %3561 = vmatprep.subr.bf16.mxu0 %v1050
  %3562 = vmatpush1.bf16.msra.mxu0 %v1049
  %3563 = vmatprep.subr.bf16.mxu0 %v1046
  %3564 = vmatpush1.bf16.msra.mxu0 %v1045
  %3565 = vmatprep.subr.bf16.mxu0 %v1042
  %3566 = vmatpush1.bf16.msra.mxu0 %v1041
  %3567 = vmatprep.subr.bf16.mxu0 %v1038
  %3568 = vmatpush1.bf16.msra.mxu0 %v1037
  %3569 = vmatprep.subr.bf16.mxu0 %v1034
  %3570 = vmatpush1.bf16.msra.mxu0 %v1033
  %3571 = vmatprep.subr.bf16.mxu0 %v1030
  %3572 = vmatpush1.bf16.msra.mxu0 %v1029
  %3573 = vmatprep.subr.bf16.mxu0 %v1026
  %3574 = vmatpush1.bf16.msra.mxu0 %v1025
  %3575 = vmatprep.subr.bf16.mxu0 0
  %3576 = vmatpush2.bf16.msra.mxu0 0
  %3577 = vmatprep.subr.bf16.mxu0 0
  %3578 = vmatpush2.bf16.msra.mxu0 0
  %3579 = vmatprep.subr.bf16.mxu0 0
  %3580 = vmatpush2.bf16.msra.mxu0 0
  %3581 = vmatprep.subr.bf16.mxu0 0
  %3582 = vmatpush2.bf16.msra.mxu0 0
  %3583 = vmatprep.subr.bf16.mxu0 0
  %3584 = vmatpush2.bf16.msra.mxu0 0
  %3585 = vmatprep.subr.bf16.mxu0 0
  %3586 = vmatpush2.bf16.msra.mxu0 0
  %3587 = vmatprep.subr.bf16.mxu0 0
  %3588 = vmatpush2.bf16.msra.mxu0 0
  %3589 = vmatprep.subr.bf16.mxu0 0
  %3590 = vmatpush2.bf16.msra.mxu0 0
  %3591 = vmatprep.mubr.bf16.mxu0 0
  %3592 = vmatmul.mubr.bf16.gmra.mxu0 %v3496
  %v3593 = vpop.f32.mrf.mxu0
  %v3594 = vadd.f32 0.0, %v3593
  %v3595 = vpop.f32.mrf.mxu0
  %v3596 = vadd.f32 0.0, %v3595
  %v3597 = vpop.f32.mrf.mxu0
  %v3598 = vadd.f32 0.0, %v3597
  %v3599 = vpop.f32.mrf.mxu0
  %v3600 = vadd.f32 0.0, %v3599
  %3601 = vdwg.mxu0
  %v3602 = vadd.f32 %v3508, %v3551
  %v3603 = vadd.f32 %v3509, %v3553
  %v3604 = vadd.f32 %v3510, %v3594
  %v3605 = vadd.f32 %v3511, %v3596
  %v3606 = vadd.f32 %v3512, %v3555
  %v3607 = vadd.f32 %v3513, %v3557
  %v3608 = vadd.f32 %v3514, %v3598
  %v3609 = vadd.f32 %v3515, %v3600
  %v3610 = vxor.u32 %v3602, 2147483648
  %v3611 = vxor.u32 %v3606, 2147483648
  %v3612 = vmul.f32 %v3610, 1.442695
  %v3613 = vpow.pop %v3612
  %v3614 = vmul.f32 %v3611, 1.442695
  %v3615 = vpow.pop %v3614
  %v3616 = vadd.f32 %v3613, 1.0
  %v3617 = vadd.f32 %v3615, 1.0
  %v3618 = vrcp.pop %v3616
  %v3619 = vmul.f32 1.0, %v3618
  %v3620 = vrcp.pop %v3617
  %v3621 = vmul.f32 1.0, %v3620
  %v3622 = vxor.u32 %v3603, 2147483648
  %v3623 = vxor.u32 %v3607, 2147483648
  %v3624 = vmul.f32 %v3622, 1.442695
  %v3625 = vpow.pop %v3624
  %v3626 = vmul.f32 %v3623, 1.442695
  %v3627 = vpow.pop %v3626
  %v3628 = vadd.f32 %v3625, 1.0
  %v3629 = vadd.f32 %v3627, 1.0
  %v3630 = vrcp.pop %v3628
  %v3631 = vmul.f32 1.0, %v3630
  %v3632 = vrcp.pop %v3629
  %v3633 = vmul.f32 1.0, %v3632
  %v3634 = vtanh.pop %v3604
  %v3635 = vtanh.pop %v3608
  %v3636 = vxor.u32 %v3605, 2147483648
  %v3637 = vxor.u32 %v3609, 2147483648
  %v3638 = vmul.f32 %v3636, 1.442695
  %v3639 = vpow.pop %v3638
  %v3640 = vmul.f32 %v3637, 1.442695
  %v3641 = vpow.pop %v3640
  %v3642 = vadd.f32 %v3639, 1.0
  %v3643 = vadd.f32 %v3641, 1.0
  %v3644 = vrcp.pop %v3642
  %v3645 = vmul.f32 1.0, %v3644
  %v3646 = vrcp.pop %v3643
  %v3647 = vmul.f32 1.0, %v3646
  %v3648 = vmul.f32 %v3631, %v3490
  %v3649 = vmul.f32 %v3633, %v3491
  %v3650 = vmul.f32 %v3619, %v3634
  %v3651 = vmul.f32 %v3621, %v3635
  %v3652 = vadd.f32 %v3648, %v3650
  %v3653 = vadd.f32 %v3649, %v3651
  %v3654 = vtanh.pop %v3652
  %v3655 = vtanh.pop %v3653
  %v3656 = vmul.f32 %v3645, %v3654
  %v3657 = vmul.f32 %v3647, %v3655
  %v3658 = vpack.c.bf16 %v3657, %v3656
  %v3660 = vunpack.c.l.b16 %v3658
  %v3661 = vunpack.c.h.b16 %v3658
  %v3662 = vpack.c.b16 %v3660, %v3660
  %v3663 = vpack.c.b16 %v3661, %v3661
  %s3666 = scalar_lea.vmem %s4, 120
  %3667 = vst [vmem:[%s3666] sm:$0xf] %v3662
  %3668 = vst [vmem:[%s3666 + $0x4] sm:$0xf] %v3663
  %3669 = vst [vmem:[#allocation2] sm:$0xff] %v3656
  %3670 = vst [vmem:[#allocation2 + $0x8] sm:$0xff] %v3657
  %3671 = vst [vmem:[#allocation3] sm:$0xff] %v3652
  %3672 = vst [vmem:[#allocation3 + $0x8] sm:$0xff] %v3653
  // Predicated region
  $region22: #{lm_lstm_forward.2} parent=0 // pred_check
    _
  $region23: #{lm_lstm_forward.2} parent=0 // pred_check_branch
    %3674 = sbr.rel (0) target = $region25
  $region24: #{lm_lstm_forward.2} parent=0 // pred_region
    _
  $region25: #{lm_lstm_forward.2} parent=0 // pred_fallthru
    _
  // Predicated region
  $region26: #{lm_lstm_forward.2} parent=0 // pred_check
    _
  $region27: #{lm_lstm_forward.2} parent=0 // pred_check_branch
    %3676 = sbr.rel (0) target = $region29
  $region28: #{lm_lstm_forward.2} parent=0 // pred_region
    _
  $region29: #{lm_lstm_forward.2} parent=0 // pred_fallthru
    _

</llo_original>
